<compile_context>
chip_gen: v6e
topology: v6e:2x2x1
jax: 0.10.0
libtpu: 0.0.40
codegen_flags: <defaults>
</compile_context>

<pallas_src>
import functools

import numpy as np
import jax
import jax.numpy as jnp
from jax.experimental import pallas as pl
from jax.experimental.pallas import tpu as pltpu

D_V = 32            # d_v
HID = 4 * D_V       # 128  (fc_no_code / fc1..fc3 width)
FEAT = 3 * D_V      # 96   (fc0 out + sin feats + cos feats)
NFREQ = D_V // 4    # 8    Fourier frequencies
XD_ROWS = 4         # x0, x1, angle, radius
MAX_TN = 2048       # lane (points) tile; sweep 1024..4096


def iphi_kernel(xd_ref, w0_ref, b0_ref, wnc_ref, wstack_ref, bstack_ref,
                w4_ref, b4_ref, o_ref, *, bf16_tanh):
    f32, bf16 = jnp.float32, jnp.bfloat16
    xd = xd_ref[...]                                    # (4, TN) f32

    # fc0 in f32 (tiny K=4 MXU matmul; keeps angle/radius mantissa bits).
    h0 = jnp.dot(w0_ref[...], xd, preferred_element_type=f32) + b0_ref[...]   # (32, TN)

    # Fourier features via angle doubling: sin/cos of pi*xd once per channel,
    # then 7 cheap VPU doublings instead of 64 large-argument sin/cos / point.
    base = xd * np.float32(np.pi)                       # (4, TN)
    s = jnp.sin(base)
    c = jnp.cos(base)
    sin_parts, cos_parts = [s], [c]
    for _ in range(NFREQ - 1):
        s, c = 2.0 * s * c, (c - s) * (c + s)           # sin(2t), cos(2t)
        sin_parts.append(s)
        cos_parts.append(c)
    x_sin = jnp.concatenate(sin_parts, axis=0).astype(bf16)   # (32, TN), row = k*4 + ch
    x_cos = jnp.concatenate(cos_parts, axis=0).astype(bf16)   # (32, TN)

    # fc_no_code as three accumulating K=32 dots (weights pre-permuted to the
    # k-major sin/cos row order in pack_params; no zero-padded 128-row concat).
    wnc_h = wnc_ref[0 * HID:1 * HID, :]
    wnc_s = wnc_ref[1 * HID:2 * HID, :]
    wnc_c = wnc_ref[2 * HID:3 * HID, :]
    bnc = bstack_ref[0 * HID:1 * HID, :]
    b1 = bstack_ref[1 * HID:2 * HID, :]
    b2 = bstack_ref[2 * HID:3 * HID, :]
    b3 = bstack_ref[3 * HID:4 * HID, :]
    w1 = wstack_ref[0 * HID:1 * HID, :]
    w2 = wstack_ref[1 * HID:2 * HID, :]
    w3 = wstack_ref[2 * HID:3 * HID, :]

    h = (jnp.dot(wnc_h, h0.astype(bf16), preferred_element_type=f32)
         + jnp.dot(wnc_s, x_sin, preferred_element_type=f32)
         + jnp.dot(wnc_c, x_cos, preferred_element_type=f32)
         + bnc)                                         # (128, TN) f32, no activation

    def act(v):                                         # bf16 tanh on v6e/v7x (packed EUP)
        if bf16_tanh:
            return jnp.tanh(v.astype(bf16))
        return jnp.tanh(v).astype(bf16)

    h = act(jnp.dot(w1, h.astype(bf16), preferred_element_type=f32) + b1)
    h = act(jnp.dot(w2, h, preferred_element_type=f32) + b2)
    h = act(jnp.dot(w3, h, preferred_element_type=f32) + b3)

    # fc4 padded to 4 output rows (rows 2:4 zero): lane-dense final store.
    out4 = jnp.dot(w4_ref[...], h, preferred_element_type=f32) + b4_ref[...]  # (4, TN)
    o_ref[...] = xd + xd * out4           # rows 0:2 = real result, 2:4 = passthrough


def init_params(key):
    """Deterministic PyTorch-Linear-style init. Weights stored (in, out)."""
    def linear(k, fan_in, fan_out):
        k1, k2 = jax.random.split(k)
        bound = 1.0 / np.sqrt(fan_in)
        w = jax.random.uniform(k1, (fan_in, fan_out), jnp.float32, -bound, bound)
        b = jax.random.uniform(k2, (1, fan_out), jnp.float32, -bound, bound)
        return w, b
    keys = jax.random.split(key, 6)
    p = {}
    p["w0"], p["b0"] = linear(keys[0], 4, D_V)        # fc0
    p["wnc"], p["bnc"] = linear(keys[1], FEAT, HID)   # fc_no_code
    p["w1"], p["b1"] = linear(keys[2], HID, HID)      # fc1
    p["w2"], p["b2"] = linear(keys[3], HID, HID)      # fc2
    p["w3"], p["b3"] = linear(keys[4], HID, HID)      # fc3
    p["w4"], p["b4"] = linear(keys[5], HID, 2)        # fc4
    # TODO(synk): fc_code / code!=None branch not implemented (code=None path only).
    return p


def pack_params(p):
    """Transpose to (out, in), permute/pad, concatenate into a few kernel inputs."""
    f32, bf16 = jnp.float32, jnp.bfloat16
    w0p = p["w0"].T.astype(f32)                                   # (32, 4)
    b0c = p["b0"].reshape(D_V, 1).astype(f32)                     # (32, 1)

    # fc_no_code split by input block (h0 / sin / cos).  The kernel emits the
    # sin/cos features in k-major order (row = k*4 + channel); the reference
    # order is channel-major (c*8 + k), so permute the weight columns here.
    sin_perm = np.array([ch * NFREQ + k for k in range(NFREQ) for ch in range(4)],
                        dtype=np.int32)
    wncT = p["wnc"].T                                             # (128, 96)
    wnc_stack = jnp.concatenate(
        [wncT[:, :D_V],
         wncT[:, D_V:2 * D_V][:, sin_perm],
         wncT[:, 2 * D_V:3 * D_V][:, sin_perm]], axis=0).astype(bf16)        # (384, 32)

    wstack = jnp.concatenate(
        [p["w1"].T, p["w2"].T, p["w3"].T], axis=0).astype(bf16)              # (384, 128)
    bstack = jnp.concatenate(
        [p["bnc"].reshape(HID, 1), p["b1"].reshape(HID, 1),
         p["b2"].reshape(HID, 1), p["b3"].reshape(HID, 1)], axis=0).astype(f32)  # (512, 1)

    w4p = jnp.zeros((XD_ROWS, HID), f32).at[:2, :].set(p["w4"].T).astype(bf16)   # (4, 128)
    b4p = jnp.zeros((XD_ROWS, 1), f32).at[:2, :].set(p["b4"].reshape(2, 1))      # (4, 1)
    return w0p, b0c, wnc_stack, wstack, bstack, w4p, b4p


def _row_tile(n_rows, max_tile=MAX_TN, min_steps=4):
    """Largest power-of-two lane tile (>=128) that keeps >= min_steps grid steps
    (>=4 so both v7x TensorCores get work and the pipeline has some depth)."""
    t = max_tile
    while t > 128 and n_rows < min_steps * t:
        t //= 2
    return t


def iphi_forward(x, params):
    b, n, _ = x.shape
    N = b * n
    tn = _row_tile(N)
    n_blocks = pl.cdiv(N, tn)
    n_pad = n_blocks * tn

    # ---- cheap feature glue in plain JAX (feature-major: lane dim = points) ----
    x_flat = x.reshape(N, 2).astype(jnp.float32)
    center = jnp.array([1e-4, 1e-4], dtype=jnp.float32)
    xc = x_flat - center
    # TODO(synk): atan2 stays in JAX glue (no guaranteed Mosaic lowering for atan2).
    angle = jnp.arctan2(xc[:, 1], xc[:, 0])
    radius = jnp.sqrt(jnp.sum(xc * xc, axis=-1))
    xdT = jnp.stack([x_flat[:, 0], x_flat[:, 1], angle, radius], axis=0)   # (4, N)
    xdT = jnp.pad(xdT, ((0, 0), (0, n_pad - N)))                           # (4, n_pad)

    w0p, b0c, wnc_stack, wstack, bstack, w4p, b4p = pack_params(params)

    # bf16 tanh only where the EUP has a packed bf16 path (v6e / v7x).
    kind = jax.devices()[0].device_kind.lower()
    bf16_tanh = ("v6" in kind) or ("v7" in kind)

    full = lambda shp: pl.BlockSpec(shp, lambda i: (0,) * len(shp))

    out4 = pl.pallas_call(
        functools.partial(iphi_kernel, bf16_tanh=bf16_tanh),
        out_shape=jax.ShapeDtypeStruct((XD_ROWS, n_pad), jnp.float32),
        grid_spec=pltpu.PrefetchScalarGridSpec(
            num_scalar_prefetch=0,
            grid=(n_blocks,),
            in_specs=[
                pl.BlockSpec((XD_ROWS, tn), lambda i: (0, i)),   # xd (feature-major)
                full((D_V, XD_ROWS)), full((D_V, 1)),            # fc0 weight / bias
                full((3 * HID, D_V)),                            # fc_no_code (split, permuted)
                full((3 * HID, HID)),                            # packed w1|w2|w3
                full((4 * HID, 1)),                              # bnc|b1|b2|b3
                full((XD_ROWS, HID)), full((XD_ROWS, 1)),        # fc4 (rows 2:4 zero)
            ],
            out_specs=pl.BlockSpec((XD_ROWS, tn), lambda i: (0, i)),
        ),
        compiler_params=pltpu.CompilerParams(
            # TODO(synk): if a v7x trace shows one idle TensorCore, switch this
            # axis to pltpu.CORE_PARALLEL.
            dimension_semantics=("parallel",),
            vmem_limit_bytes=32 * 1024 * 1024,
        ),
    )(xdT, w0p, b0c, wnc_stack, wstack, bstack, w4p, b4p)

    return out4[:2, :N].T.reshape(b, n, 2)


def iphi_reference(x, params):
    """Pure-JAX mirror of the PyTorch forward (code=None path)."""
    center = jnp.array([1e-4, 1e-4], dtype=jnp.float32).reshape(1, 1, 2)
    angle = jnp.arctan2(x[:, :, 1] - center[:, :, 1], x[:, :, 0] - center[:, :, 0])
    radius = jnp.linalg.norm(x - center, axis=-1)
    xd = jnp.stack([x[:, :, 0], x[:, :, 1], angle, radius], axis=-1)
    b, n, d = xd.shape
    B = np.pi * (2.0 ** np.arange(NFREQ, dtype=np.float32)).reshape(1, 1, 1, NFREQ)
    x_sin = jnp.sin(B * xd.reshape(b, n, d, 1)).reshape(b, n, d * NFREQ)
    x_cos = jnp.cos(B * xd.reshape(b, n, d, 1)).reshape(b, n, d * NFREQ)
    h = xd @ params["w0"] + params["b0"]
    h = jnp.concatenate([h, x_sin, x_cos], axis=-1)
    h = h @ params["wnc"] + params["bnc"]
    h = jnp.tanh(h @ params["w1"] + params["b1"])
    h = jnp.tanh(h @ params["w2"] + params["b2"])
    h = jnp.tanh(h @ params["w3"] + params["b3"])
    h = h @ params["w4"] + params["b4"]
    return x + x * h


if __name__ == "__main__":
    key = jax.random.PRNGKey(0)
    kx, kp = jax.random.split(key)
    b, n = 2, 1024                     # 2048 mesh points -> 4 lane tiles of 512
    x = jax.random.uniform(kx, (b, n, 2), jnp.float32, minval=0.0, maxval=1.0)
    params = init_params(kp)

    fwd = jax.jit(iphi_forward)
    out = jax.block_until_ready(fwd(x, params))

    ref = iphi_reference(x, params)
    assert out.shape == (b, n, 2)
    np.testing.assert_allclose(np.asarray(out), np.asarray(ref), rtol=2e-2, atol=2e-2)
    print("KERNEL_OK")
</pallas_src>

<mosaic_0001>
module attributes {stable_mosaic.version = 11 : i64} {
  func.func @iphi_kernel(%arg0: i32, %arg1: memref<4x512xf32, #tpu.memory_space<vmem>>, %arg2: memref<32x4xf32, #tpu.memory_space<vmem>>, %arg3: memref<32x1xf32, #tpu.memory_space<vmem>>, %arg4: memref<384x32xbf16, #tpu.memory_space<vmem>>, %arg5: memref<384x128xbf16, #tpu.memory_space<vmem>>, %arg6: memref<512x1xf32, #tpu.memory_space<vmem>>, %arg7: memref<4x128xbf16, #tpu.memory_space<vmem>>, %arg8: memref<4x1xf32, #tpu.memory_space<vmem>>, %arg9: memref<4x512xf32, #tpu.memory_space<vmem>>) attributes {dimension_semantics = [#tpu.dimension_semantics<parallel>], iteration_bounds = array<i64: 4>, scalar_prefetch = 0 : i64, scratch_operands = 0 : i64, tpu.core_type = #tpu.core_type<tc>, window_params = [{transform_indices = @transform_0, window_bounds = array<i64: 4, 512>}, {pipeline_mode = #tpu.pipeline_mode<synchronous>, transform_indices = @transform_1, window_bounds = array<i64: 32, 4>}, {pipeline_mode = #tpu.pipeline_mode<synchronous>, transform_indices = @transform_2, window_bounds = array<i64: 32, 1>}, {pipeline_mode = #tpu.pipeline_mode<synchronous>, transform_indices = @transform_3, window_bounds = array<i64: 384, 32>}, {pipeline_mode = #tpu.pipeline_mode<synchronous>, transform_indices = @transform_4, window_bounds = array<i64: 384, 128>}, {pipeline_mode = #tpu.pipeline_mode<synchronous>, transform_indices = @transform_5, window_bounds = array<i64: 512, 1>}, {pipeline_mode = #tpu.pipeline_mode<synchronous>, transform_indices = @transform_6, window_bounds = array<i64: 4, 128>}, {pipeline_mode = #tpu.pipeline_mode<synchronous>, transform_indices = @transform_7, window_bounds = array<i64: 4, 1>}, {transform_indices = @transform_8, window_bounds = array<i64: 4, 512>}]} {
    %c0 = arith.constant 0 : index
    %c0_0 = arith.constant 0 : index
    %0 = vector.load %arg1[%c0, %c0_0] : memref<4x512xf32, #tpu.memory_space<vmem>>, vector<4x512xf32>
    %c0_1 = arith.constant 0 : index
    %c0_2 = arith.constant 0 : index
    %1 = vector.load %arg2[%c0_1, %c0_2] : memref<32x4xf32, #tpu.memory_space<vmem>>, vector<32x4xf32>
    %cst = arith.constant dense<0.000000e+00> : vector<32x512xf32>
    %2 = tpu.matmul %1, %0, %cst {dimension_numbers = #tpu.dot_dimension_numbers<[1], [0], [0], [1], [0, 0, 1, 1], [], []>} : vector<32x4xf32>, vector<4x512xf32>, vector<32x512xf32> -> vector<32x512xf32>
    %c0_3 = arith.constant 0 : index
    %c0_4 = arith.constant 0 : index
    %3 = vector.load %arg3[%c0_3, %c0_4] : memref<32x1xf32, #tpu.memory_space<vmem>>, vector<32x1xf32>
    %4 = vector.broadcast %3 : vector<32x1xf32> to vector<32x512xf32>
    %5 = arith.addf %2, %4 : vector<32x512xf32>
    %cst_5 = arith.constant 3.14159274 : f32
    %6 = vector.broadcast %cst_5 : f32 to vector<4x512xf32>
    %7 = arith.mulf %0, %6 : vector<4x512xf32>
    %8 = math.sin %7 : vector<4x512xf32>
    %9 = math.cos %7 : vector<4x512xf32>
    %cst_6 = arith.constant 2.000000e+00 : f32
    %10 = vector.broadcast %cst_6 : f32 to vector<4x512xf32>
    %11 = arith.mulf %10, %8 : vector<4x512xf32>
    %12 = arith.mulf %11, %9 : vector<4x512xf32>
    %13 = arith.subf %9, %8 : vector<4x512xf32>
    %14 = arith.addf %9, %8 : vector<4x512xf32>
    %15 = arith.mulf %13, %14 : vector<4x512xf32>
    %cst_7 = arith.constant 2.000000e+00 : f32
    %16 = vector.broadcast %cst_7 : f32 to vector<4x512xf32>
    %17 = arith.mulf %16, %12 : vector<4x512xf32>
    %18 = arith.mulf %17, %15 : vector<4x512xf32>
    %19 = arith.subf %15, %12 : vector<4x512xf32>
    %20 = arith.addf %15, %12 : vector<4x512xf32>
    %21 = arith.mulf %19, %20 : vector<4x512xf32>
    %cst_8 = arith.constant 2.000000e+00 : f32
    %22 = vector.broadcast %cst_8 : f32 to vector<4x512xf32>
    %23 = arith.mulf %22, %18 : vector<4x512xf32>
    %24 = arith.mulf %23, %21 : vector<4x512xf32>
    %25 = arith.subf %21, %18 : vector<4x512xf32>
    %26 = arith.addf %21, %18 : vector<4x512xf32>
    %27 = arith.mulf %25, %26 : vector<4x512xf32>
    %cst_9 = arith.constant 2.000000e+00 : f32
    %28 = vector.broadcast %cst_9 : f32 to vector<4x512xf32>
    %29 = arith.mulf %28, %24 : vector<4x512xf32>
    %30 = arith.mulf %29, %27 : vector<4x512xf32>
    %31 = arith.subf %27, %24 : vector<4x512xf32>
    %32 = arith.addf %27, %24 : vector<4x512xf32>
    %33 = arith.mulf %31, %32 : vector<4x512xf32>
    %cst_10 = arith.constant 2.000000e+00 : f32
    %34 = vector.broadcast %cst_10 : f32 to vector<4x512xf32>
    %35 = arith.mulf %34, %30 : vector<4x512xf32>
    %36 = arith.mulf %35, %33 : vector<4x512xf32>
    %37 = arith.subf %33, %30 : vector<4x512xf32>
    %38 = arith.addf %33, %30 : vector<4x512xf32>
    %39 = arith.mulf %37, %38 : vector<4x512xf32>
    %cst_11 = arith.constant 2.000000e+00 : f32
    %40 = vector.broadcast %cst_11 : f32 to vector<4x512xf32>
    %41 = arith.mulf %40, %36 : vector<4x512xf32>
    %42 = arith.mulf %41, %39 : vector<4x512xf32>
    %43 = arith.subf %39, %36 : vector<4x512xf32>
    %44 = arith.addf %39, %36 : vector<4x512xf32>
    %45 = arith.mulf %43, %44 : vector<4x512xf32>
    %cst_12 = arith.constant 2.000000e+00 : f32
    %46 = vector.broadcast %cst_12 : f32 to vector<4x512xf32>
    %47 = arith.mulf %46, %42 : vector<4x512xf32>
    %48 = arith.mulf %47, %45 : vector<4x512xf32>
    %49 = arith.subf %45, %42 : vector<4x512xf32>
    %50 = arith.addf %45, %42 : vector<4x512xf32>
    %51 = arith.mulf %49, %50 : vector<4x512xf32>
    %52 = tpu.concatenate %8, %12, %18, %24, %30, %36, %42, %48 in 0 : vector<4x512xf32>, vector<4x512xf32>, vector<4x512xf32>, vector<4x512xf32>, vector<4x512xf32>, vector<4x512xf32>, vector<4x512xf32>, vector<4x512xf32> -> vector<32x512xf32>
    %53 = arith.truncf %52 : vector<32x512xf32> to vector<32x512xbf16>
    %54 = tpu.concatenate %9, %15, %21, %27, %33, %39, %45, %51 in 0 : vector<4x512xf32>, vector<4x512xf32>, vector<4x512xf32>, vector<4x512xf32>, vector<4x512xf32>, vector<4x512xf32>, vector<4x512xf32>, vector<4x512xf32> -> vector<32x512xf32>
    %55 = arith.truncf %54 : vector<32x512xf32> to vector<32x512xbf16>
    %c0_13 = arith.constant 0 : index
    %c0_14 = arith.constant 0 : index
    %56 = vector.load %arg4[%c0_13, %c0_14] : memref<384x32xbf16, #tpu.memory_space<vmem>>, vector<128x32xbf16>
    %c128 = arith.constant 128 : index
    %c0_15 = arith.constant 0 : index
    %57 = vector.load %arg4[%c128, %c0_15] : memref<384x32xbf16, #tpu.memory_space<vmem>>, vector<128x32xbf16>
    %c256 = arith.constant 256 : index
    %c0_16 = arith.constant 0 : index
    %58 = vector.load %arg4[%c256, %c0_16] : memref<384x32xbf16, #tpu.memory_space<vmem>>, vector<128x32xbf16>
    %c0_17 = arith.constant 0 : index
    %c0_18 = arith.constant 0 : index
    %59 = vector.load %arg6[%c0_17, %c0_18] : memref<512x1xf32, #tpu.memory_space<vmem>>, vector<128x1xf32>
    %c128_19 = arith.constant 128 : index
    %c0_20 = arith.constant 0 : index
    %60 = vector.load %arg6[%c128_19, %c0_20] : memref<512x1xf32, #tpu.memory_space<vmem>>, vector<128x1xf32>
    %c256_21 = arith.constant 256 : index
    %c0_22 = arith.constant 0 : index
    %61 = vector.load %arg6[%c256_21, %c0_22] : memref<512x1xf32, #tpu.memory_space<vmem>>, vector<128x1xf32>
    %c384 = arith.constant 384 : index
    %c0_23 = arith.constant 0 : index
    %62 = vector.load %arg6[%c384, %c0_23] : memref<512x1xf32, #tpu.memory_space<vmem>>, vector<128x1xf32>
    %c0_24 = arith.constant 0 : index
    %c0_25 = arith.constant 0 : index
    %63 = vector.load %arg5[%c0_24, %c0_25] : memref<384x128xbf16, #tpu.memory_space<vmem>>, vector<128x128xbf16>
    %c128_26 = arith.constant 128 : index
    %c0_27 = arith.constant 0 : index
    %64 = vector.load %arg5[%c128_26, %c0_27] : memref<384x128xbf16, #tpu.memory_space<vmem>>, vector<128x128xbf16>
    %c256_28 = arith.constant 256 : index
    %c0_29 = arith.constant 0 : index
    %65 = vector.load %arg5[%c256_28, %c0_29] : memref<384x128xbf16, #tpu.memory_space<vmem>>, vector<128x128xbf16>
    %66 = arith.truncf %5 : vector<32x512xf32> to vector<32x512xbf16>
    %cst_30 = arith.constant dense<0.000000e+00> : vector<128x512xf32>
    %67 = tpu.matmul %56, %66, %cst_30 {dimension_numbers = #tpu.dot_dimension_numbers<[1], [0], [0], [1], [0, 0, 1, 1], [], []>} : vector<128x32xbf16>, vector<32x512xbf16>, vector<128x512xf32> -> vector<128x512xf32>
    %cst_31 = arith.constant dense<0.000000e+00> : vector<128x512xf32>
    %68 = tpu.matmul %57, %53, %cst_31 {dimension_numbers = #tpu.dot_dimension_numbers<[1], [0], [0], [1], [0, 0, 1, 1], [], []>} : vector<128x32xbf16>, vector<32x512xbf16>, vector<128x512xf32> -> vector<128x512xf32>
    %69 = arith.addf %67, %68 : vector<128x512xf32>
    %cst_32 = arith.constant dense<0.000000e+00> : vector<128x512xf32>
    %70 = tpu.matmul %58, %55, %cst_32 {dimension_numbers = #tpu.dot_dimension_numbers<[1], [0], [0], [1], [0, 0, 1, 1], [], []>} : vector<128x32xbf16>, vector<32x512xbf16>, vector<128x512xf32> -> vector<128x512xf32>
    %71 = arith.addf %69, %70 : vector<128x512xf32>
    %72 = vector.broadcast %59 : vector<128x1xf32> to vector<128x512xf32>
    %73 = arith.addf %71, %72 : vector<128x512xf32>
    %74 = arith.truncf %73 : vector<128x512xf32> to vector<128x512xbf16>
    %cst_33 = arith.constant dense<0.000000e+00> : vector<128x512xf32>
    %75 = tpu.matmul %63, %74, %cst_33 {dimension_numbers = #tpu.dot_dimension_numbers<[1], [0], [0], [1], [0, 0, 1, 1], [], []>} : vector<128x128xbf16>, vector<128x512xbf16>, vector<128x512xf32> -> vector<128x512xf32>
    %76 = vector.broadcast %60 : vector<128x1xf32> to vector<128x512xf32>
    %77 = arith.addf %75, %76 : vector<128x512xf32>
    %78 = math.tanh %77 : vector<128x512xf32>
    %79 = arith.truncf %78 : vector<128x512xf32> to vector<128x512xbf16>
    %cst_34 = arith.constant dense<0.000000e+00> : vector<128x512xf32>
    %80 = tpu.matmul %64, %79, %cst_34 {dimension_numbers = #tpu.dot_dimension_numbers<[1], [0], [0], [1], [0, 0, 1, 1], [], []>} : vector<128x128xbf16>, vector<128x512xbf16>, vector<128x512xf32> -> vector<128x512xf32>
    %81 = vector.broadcast %61 : vector<128x1xf32> to vector<128x512xf32>
    %82 = arith.addf %80, %81 : vector<128x512xf32>
    %83 = math.tanh %82 : vector<128x512xf32>
    %84 = arith.truncf %83 : vector<128x512xf32> to vector<128x512xbf16>
    %cst_35 = arith.constant dense<0.000000e+00> : vector<128x512xf32>
    %85 = tpu.matmul %65, %84, %cst_35 {dimension_numbers = #tpu.dot_dimension_numbers<[1], [0], [0], [1], [0, 0, 1, 1], [], []>} : vector<128x128xbf16>, vector<128x512xbf16>, vector<128x512xf32> -> vector<128x512xf32>
    %86 = vector.broadcast %62 : vector<128x1xf32> to vector<128x512xf32>
    %87 = arith.addf %85, %86 : vector<128x512xf32>
    %88 = math.tanh %87 : vector<128x512xf32>
    %89 = arith.truncf %88 : vector<128x512xf32> to vector<128x512xbf16>
    %c0_36 = arith.constant 0 : index
    %c0_37 = arith.constant 0 : index
    %90 = vector.load %arg7[%c0_36, %c0_37] : memref<4x128xbf16, #tpu.memory_space<vmem>>, vector<4x128xbf16>
    %cst_38 = arith.constant dense<0.000000e+00> : vector<4x512xf32>
    %91 = tpu.matmul %90, %89, %cst_38 {dimension_numbers = #tpu.dot_dimension_numbers<[1], [0], [0], [1], [0, 0, 1, 1], [], []>} : vector<4x128xbf16>, vector<128x512xbf16>, vector<4x512xf32> -> vector<4x512xf32>
    %c0_39 = arith.constant 0 : index
    %c0_40 = arith.constant 0 : index
    %92 = vector.load %arg8[%c0_39, %c0_40] : memref<4x1xf32, #tpu.memory_space<vmem>>, vector<4x1xf32>
    %93 = vector.broadcast %92 : vector<4x1xf32> to vector<4x512xf32>
    %94 = arith.addf %91, %93 : vector<4x512xf32>
    %95 = arith.mulf %0, %94 : vector<4x512xf32>
    %96 = arith.addf %0, %95 : vector<4x512xf32>
    %c0_41 = arith.constant 0 : index
    %c0_42 = arith.constant 0 : index
    %97 = vector.load %arg9[%c0_41, %c0_42] : memref<4x512xf32, #tpu.memory_space<vmem>>, vector<4x512xf32>
    tpu.vector_store %arg9[%c0_41, %c0_42], %96 {strides = array<i32>} : memref<4x512xf32, #tpu.memory_space<vmem>>, vector<4x512xf32>,
    return
  }
  func.func @transform_0(%arg0: i32) -> (i32, i32) {
    %c0_i32 = arith.constant 0 : i32
    %c0_i32_0 = arith.constant 0 : i32
    return %c0_i32, %arg0 : i32, i32
  }
  func.func @transform_1(%arg0: i32) -> (i32, i32) {
    %c0_i32 = arith.constant 0 : i32
    %c0_i32_0 = arith.constant 0 : i32
    %c0_i32_1 = arith.constant 0 : i32
    return %c0_i32, %c0_i32_0 : i32, i32
  }
  func.func @transform_2(%arg0: i32) -> (i32, i32) {
    %c0_i32 = arith.constant 0 : i32
    %c0_i32_0 = arith.constant 0 : i32
    %c0_i32_1 = arith.constant 0 : i32
    return %c0_i32, %c0_i32_0 : i32, i32
  }
  func.func @transform_3(%arg0: i32) -> (i32, i32) {
    %c0_i32 = arith.constant 0 : i32
    %c0_i32_0 = arith.constant 0 : i32
    %c0_i32_1 = arith.constant 0 : i32
    return %c0_i32, %c0_i32_0 : i32, i32
  }
  func.func @transform_4(%arg0: i32) -> (i32, i32) {
    %c0_i32 = arith.constant 0 : i32
    %c0_i32_0 = arith.constant 0 : i32
    %c0_i32_1 = arith.constant 0 : i32
    return %c0_i32, %c0_i32_0 : i32, i32
  }
  func.func @transform_5(%arg0: i32) -> (i32, i32) {
    %c0_i32 = arith.constant 0 : i32
    %c0_i32_0 = arith.constant 0 : i32
    %c0_i32_1 = arith.constant 0 : i32
    return %c0_i32, %c0_i32_0 : i32, i32
  }
  func.func @transform_6(%arg0: i32) -> (i32, i32) {
    %c0_i32 = arith.constant 0 : i32
    %c0_i32_0 = arith.constant 0 : i32
    %c0_i32_1 = arith.constant 0 : i32
    return %c0_i32, %c0_i32_0 : i32, i32
  }
  func.func @transform_7(%arg0: i32) -> (i32, i32) {
    %c0_i32 = arith.constant 0 : i32
    %c0_i32_0 = arith.constant 0 : i32
    %c0_i32_1 = arith.constant 0 : i32
    return %c0_i32, %c0_i32_0 : i32, i32
  }
  func.func @transform_8(%arg0: i32) -> (i32, i32) {
    %c0_i32 = arith.constant 0 : i32
    %c0_i32_0 = arith.constant 0 : i32
    return %c0_i32, %arg0 : i32, i32
  }
}

</mosaic_0001>

<llo_original>
// kernel: iphi_forward.1
$region0: #{iphi_forward.1}
  #allocation0 [shape = 'u32[]', space=smem, size = 0x4, offset = 0x4, fixed_abs, tag = 'smem constant byte address 0x4 - core index']
  #allocation1 [shape = 'u32[144,128]{1,0:T(1,128)}', space=vmem, size = 0x12000, scoped, tag = 'internal scratch']
  %s0 = inlined_call_operand.vmem [shape: f32[4,2048], index: 0, kind: input, shape index: {}]
  %s1 = inlined_call_operand.vmem [shape: f32[32,4], index: 1, kind: input, shape index: {}]
  %s2 = inlined_call_operand.vmem [shape: f32[32,1], index: 2, kind: input, shape index: {}]
  %s3 = inlined_call_operand.vmem [shape: bf16[384,32], index: 3, kind: input, shape index: {}]
  %s4 = inlined_call_operand.vmem [shape: bf16[384,128], index: 4, kind: input, shape index: {}]
  %s5 = inlined_call_operand.vmem [shape: f32[512,1], index: 5, kind: input, shape index: {}]
  %s6 = inlined_call_operand.vmem [shape: bf16[4,128], index: 6, kind: input, shape index: {}]
  %s7 = inlined_call_operand.vmem [shape: f32[4,1], index: 7, kind: input, shape index: {}]
  %s8 = inlined_call_operand.vmem [shape: f32[4,2048], index: 8, kind: output, shape index: {}]
  %s9 = sld [smem:[#allocation0]]
  $region65: #{iphi_forward.1} parent=0
    _
  %s11 = ssub.s32 1, %s9
  %s12 = scalar_select 0, %s11, %s9
  loop: start=0, step=1, limit=6
  $region2: #{iphi_forward.1} parent=0 // loop_pre_header
    _
  $region3: #{iphi_forward.1} parent=0 // loop_header
    %s14 = sphi 0, %s18
    %p15 = scmp.ge.s32.totalorder %s14, 6
    %s24 = sphi 0, %s26
    %s27 = sphi 0, %s24
    %s28 = sphi 0, %s27
    %s44 = sphi 0, %s28
    %s48 = sphi 0, %s48
    %s50 = sphi 0, %s48
    %s51 = sphi 0, %s50
    %s65 = sphi 0, %s51
    %s69 = sphi 0, %s69
    %s71 = sphi 0, %s69
    %s72 = sphi 0, %s71
    %s86 = sphi 0, %s72
    %s90 = sphi 0, %s90
    %s92 = sphi 0, %s90
    %s93 = sphi 0, %s92
    %s107 = sphi 0, %s93
    %s111 = sphi 0, %s111
    %s113 = sphi 0, %s111
    %s114 = sphi 0, %s113
    %s128 = sphi 0, %s114
    %s132 = sphi 0, %s132
    %s134 = sphi 0, %s132
    %s135 = sphi 0, %s134
    %s149 = sphi 0, %s135
    %s153 = sphi 0, %s153
    %s155 = sphi 0, %s153
    %s156 = sphi 0, %s155
    %s170 = sphi 0, %s156
    %s174 = sphi 0, %s174
    %s176 = sphi 0, %s174
    %s177 = sphi 0, %s176
    %s191 = sphi 0, %s177
    %s197 = sphi 0, %s199
    %s200 = sphi 0, %s197
    %s201 = sphi 0, %s200
    %s217 = sphi 0, %s201
  $region4: #{iphi_forward.1} parent=0 // loop_header_branch
    %17 = sbr.rel (%p15) target = $region8
  $region5: #{iphi_forward.1} parent=0 // loop_body
    %s19 = ssub.s32 %s14, 1
    %s20 = ssub.s32 %s14, 2
    %s21 = sadd.s32 %s14, 1
    %s22 = ssub.s32 %s14, %s21
    %p23 = scmp.eq.s32.totalorder %s22, 0
    %s25 = sadd.s32 %s24, 1
    %s26 = scalar_select %p23, %s24, %s25
    %p29 = pneg %p23
    %p30 = scmp.eq.s32.totalorder %s14, 3
    %p31 = por %p29, %p30
    %p32 = scmp.ne.s32.totalorder %s24, %s27
    %p33 = scmp.eq.s32.totalorder %s14, 0
    %p34 = por %p32, %p33
    %p35 = scmp.ne.s32.totalorder %s24, %s27
    %p36 = scmp.eq.s32.totalorder %s19, 3
    %p37 = por %p35, %p36
    %p38 = scmp.ne.s32.totalorder %s27, %s28
    %p39 = scmp.eq.s32.totalorder %s19, 0
    %p40 = por %p38, %p39
    %p41 = scmp.ne.s32.totalorder %s27, %s28
    %p42 = scmp.eq.s32.totalorder %s20, 3
    %p43 = por %p41, %p42
    %p45 = scmp.ne.s32.totalorder %s28, %s44
    %p46 = scmp.eq.s32.totalorder %s20, 0
    %p47 = por %p45, %p46
    %s49 = sadd.s32 %s48, 1
    %p52 = scmp.eq.s32.totalorder %s14, 3
    %p53 = scmp.ne.s32.totalorder %s48, %s50
    %p54 = scmp.eq.s32.totalorder %s14, 0
    %p55 = por %p53, %p54
    %p56 = scmp.ne.s32.totalorder %s48, %s50
    %p57 = scmp.eq.s32.totalorder %s19, 3
    %p58 = por %p56, %p57
    %p59 = scmp.ne.s32.totalorder %s50, %s51
    %p60 = scmp.eq.s32.totalorder %s19, 0
    %p61 = por %p59, %p60
    %p62 = scmp.ne.s32.totalorder %s50, %s51
    %p63 = scmp.eq.s32.totalorder %s20, 3
    %p64 = por %p62, %p63
    %p66 = scmp.ne.s32.totalorder %s51, %s65
    %p67 = scmp.eq.s32.totalorder %s20, 0
    %p68 = por %p66, %p67
    %s70 = sadd.s32 %s69, 1
    %p73 = scmp.eq.s32.totalorder %s14, 3
    %p74 = scmp.ne.s32.totalorder %s69, %s71
    %p75 = scmp.eq.s32.totalorder %s14, 0
    %p76 = por %p74, %p75
    %p77 = scmp.ne.s32.totalorder %s69, %s71
    %p78 = scmp.eq.s32.totalorder %s19, 3
    %p79 = por %p77, %p78
    %p80 = scmp.ne.s32.totalorder %s71, %s72
    %p81 = scmp.eq.s32.totalorder %s19, 0
    %p82 = por %p80, %p81
    %p83 = scmp.ne.s32.totalorder %s71, %s72
    %p84 = scmp.eq.s32.totalorder %s20, 3
    %p85 = por %p83, %p84
    %p87 = scmp.ne.s32.totalorder %s72, %s86
    %p88 = scmp.eq.s32.totalorder %s20, 0
    %p89 = por %p87, %p88
    %s91 = sadd.s32 %s90, 1
    %p94 = scmp.eq.s32.totalorder %s14, 3
    %p95 = scmp.ne.s32.totalorder %s90, %s92
    %p96 = scmp.eq.s32.totalorder %s14, 0
    %p97 = por %p95, %p96
    %p98 = scmp.ne.s32.totalorder %s90, %s92
    %p99 = scmp.eq.s32.totalorder %s19, 3
    %p100 = por %p98, %p99
    %p101 = scmp.ne.s32.totalorder %s92, %s93
    %p102 = scmp.eq.s32.totalorder %s19, 0
    %p103 = por %p101, %p102
    %p104 = scmp.ne.s32.totalorder %s92, %s93
    %p105 = scmp.eq.s32.totalorder %s20, 3
    %p106 = por %p104, %p105
    %p108 = scmp.ne.s32.totalorder %s93, %s107
    %p109 = scmp.eq.s32.totalorder %s20, 0
    %p110 = por %p108, %p109
    %s112 = sadd.s32 %s111, 1
    %p115 = scmp.eq.s32.totalorder %s14, 3
    %p116 = scmp.ne.s32.totalorder %s111, %s113
    %p117 = scmp.eq.s32.totalorder %s14, 0
    %p118 = por %p116, %p117
    %p119 = scmp.ne.s32.totalorder %s111, %s113
    %p120 = scmp.eq.s32.totalorder %s19, 3
    %p121 = por %p119, %p120
    %p122 = scmp.ne.s32.totalorder %s113, %s114
    %p123 = scmp.eq.s32.totalorder %s19, 0
    %p124 = por %p122, %p123
    %p125 = scmp.ne.s32.totalorder %s113, %s114
    %p126 = scmp.eq.s32.totalorder %s20, 3
    %p127 = por %p125, %p126
    %p129 = scmp.ne.s32.totalorder %s114, %s128
    %p130 = scmp.eq.s32.totalorder %s20, 0
    %p131 = por %p129, %p130
    %s133 = sadd.s32 %s132, 1
    %p136 = scmp.eq.s32.totalorder %s14, 3
    %p137 = scmp.ne.s32.totalorder %s132, %s134
    %p138 = scmp.eq.s32.totalorder %s14, 0
    %p139 = por %p137, %p138
    %p140 = scmp.ne.s32.totalorder %s132, %s134
    %p141 = scmp.eq.s32.totalorder %s19, 3
    %p142 = por %p140, %p141
    %p143 = scmp.ne.s32.totalorder %s134, %s135
    %p144 = scmp.eq.s32.totalorder %s19, 0
    %p145 = por %p143, %p144
    %p146 = scmp.ne.s32.totalorder %s134, %s135
    %p147 = scmp.eq.s32.totalorder %s20, 3
    %p148 = por %p146, %p147
    %p150 = scmp.ne.s32.totalorder %s135, %s149
    %p151 = scmp.eq.s32.totalorder %s20, 0
    %p152 = por %p150, %p151
    %s154 = sadd.s32 %s153, 1
    %p157 = scmp.eq.s32.totalorder %s14, 3
    %p158 = scmp.ne.s32.totalorder %s153, %s155
    %p159 = scmp.eq.s32.totalorder %s14, 0
    %p160 = por %p158, %p159
    %p161 = scmp.ne.s32.totalorder %s153, %s155
    %p162 = scmp.eq.s32.totalorder %s19, 3
    %p163 = por %p161, %p162
    %p164 = scmp.ne.s32.totalorder %s155, %s156
    %p165 = scmp.eq.s32.totalorder %s19, 0
    %p166 = por %p164, %p165
    %p167 = scmp.ne.s32.totalorder %s155, %s156
    %p168 = scmp.eq.s32.totalorder %s20, 3
    %p169 = por %p167, %p168
    %p171 = scmp.ne.s32.totalorder %s156, %s170
    %p172 = scmp.eq.s32.totalorder %s20, 0
    %p173 = por %p171, %p172
    %s175 = sadd.s32 %s174, 1
    %p178 = scmp.eq.s32.totalorder %s14, 3
    %p179 = scmp.ne.s32.totalorder %s174, %s176
    %p180 = scmp.eq.s32.totalorder %s14, 0
    %p181 = por %p179, %p180
    %p182 = scmp.ne.s32.totalorder %s174, %s176
    %p183 = scmp.eq.s32.totalorder %s19, 3
    %p184 = por %p182, %p183
    %p185 = scmp.ne.s32.totalorder %s176, %s177
    %p186 = scmp.eq.s32.totalorder %s19, 0
    %p187 = por %p185, %p186
    %p188 = scmp.ne.s32.totalorder %s176, %s177
    %p189 = scmp.eq.s32.totalorder %s20, 3
    %p190 = por %p188, %p189
    %p192 = scmp.ne.s32.totalorder %s177, %s191
    %p193 = scmp.eq.s32.totalorder %s20, 0
    %p194 = por %p192, %p193
    %s195 = ssub.s32 %s14, %s21
    %p196 = scmp.eq.s32.totalorder %s195, 0
    %s198 = sadd.s32 %s197, 1
    %s199 = scalar_select %p196, %s197, %s198
    %p202 = pneg %p196
    %p203 = scmp.eq.s32.totalorder %s14, 3
    %p204 = por %p202, %p203
    %p205 = scmp.ne.s32.totalorder %s197, %s200
    %p206 = scmp.eq.s32.totalorder %s14, 0
    %p207 = por %p205, %p206
    %p208 = scmp.ne.s32.totalorder %s197, %s200
    %p209 = scmp.eq.s32.totalorder %s19, 3
    %p210 = por %p208, %p209
    %p211 = scmp.ne.s32.totalorder %s200, %s201
    %p212 = scmp.eq.s32.totalorder %s19, 0
    %p213 = por %p211, %p212
    %p214 = scmp.ne.s32.totalorder %s200, %s201
    %p215 = scmp.eq.s32.totalorder %s20, 3
    %p216 = por %p214, %p215
    %p218 = scmp.ne.s32.totalorder %s201, %s217
    %p219 = scmp.eq.s32.totalorder %s20, 0
    %p220 = por %p218, %p219
    %p221 = scmp.le.s32.totalorder 1, %s14
    %p222 = scmp.lt.s32.totalorder %s14, 5
    %p223 = pnand %p221, %p222
    %p224 = pneg %p223
    // Predicated region
    $region9: #{iphi_forward.1} parent=5 // pred_check
      _
    $region10: #{iphi_forward.1} parent=5 // pred_check_branch
      %226 = sbr.rel (%p223) target = $region12
    $region11: #{iphi_forward.1} parent=5 // pred_region
      %s227 = ssub.s32 %s14, 1
      // Predicated region
      $region13: #{iphi_forward.1} parent=11 // pred_check
        %p228 = pneg %p61
      $region14: #{iphi_forward.1} parent=11 // pred_check_branch
        %230 = sbr.rel (%p228) target = $region16
      $region15: #{iphi_forward.1} parent=11 // pred_region
        _
      $region16: #{iphi_forward.1} parent=11 // pred_fallthru
        _
      // Predicated region
      $region17: #{iphi_forward.1} parent=11 // pred_check
        %p231 = pneg %p82
      $region18: #{iphi_forward.1} parent=11 // pred_check_branch
        %233 = sbr.rel (%p231) target = $region20
      $region19: #{iphi_forward.1} parent=11 // pred_region
        _
      $region20: #{iphi_forward.1} parent=11 // pred_fallthru
        _
      // Predicated region
      $region21: #{iphi_forward.1} parent=11 // pred_check
        %p234 = pneg %p103
      $region22: #{iphi_forward.1} parent=11 // pred_check_branch
        %236 = sbr.rel (%p234) target = $region24
      $region23: #{iphi_forward.1} parent=11 // pred_region
        _
      $region24: #{iphi_forward.1} parent=11 // pred_fallthru
        _
      // Predicated region
      $region25: #{iphi_forward.1} parent=11 // pred_check
        %p237 = pneg %p124
      $region26: #{iphi_forward.1} parent=11 // pred_check_branch
        %239 = sbr.rel (%p237) target = $region28
      $region27: #{iphi_forward.1} parent=11 // pred_region
        _
      $region28: #{iphi_forward.1} parent=11 // pred_fallthru
        _
      // Predicated region
      $region29: #{iphi_forward.1} parent=11 // pred_check
        %p240 = pneg %p145
      $region30: #{iphi_forward.1} parent=11 // pred_check_branch
        %242 = sbr.rel (%p240) target = $region32
      $region31: #{iphi_forward.1} parent=11 // pred_region
        _
      $region32: #{iphi_forward.1} parent=11 // pred_fallthru
        _
      // Predicated region
      $region33: #{iphi_forward.1} parent=11 // pred_check
        %p243 = pneg %p166
      $region34: #{iphi_forward.1} parent=11 // pred_check_branch
        %245 = sbr.rel (%p243) target = $region36
      $region35: #{iphi_forward.1} parent=11 // pred_region
        _
      $region36: #{iphi_forward.1} parent=11 // pred_fallthru
        _
      // Predicated region
      $region37: #{iphi_forward.1} parent=11 // pred_check
        %p246 = pneg %p187
      $region38: #{iphi_forward.1} parent=11 // pred_check_branch
        %248 = sbr.rel (%p246) target = $region40
      $region39: #{iphi_forward.1} parent=11 // pred_region
        _
      $region40: #{iphi_forward.1} parent=11 // pred_fallthru
        _
    $region12: #{iphi_forward.1} parent=5 // pred_fallthru
      _
    %p249 = scmp.lt.s32.totalorder %s14, 4
    // Predicated region
    $region41: #{iphi_forward.1} parent=5 // pred_check
      %p250 = pneg %p249
    $region42: #{iphi_forward.1} parent=5 // pred_check_branch
      %252 = sbr.rel (%p250) target = $region44
    $region43: #{iphi_forward.1} parent=5 // pred_region
      // Predicated region
      $region45: #{iphi_forward.1} parent=43 // pred_check
        %p253 = pneg %p34
      $region46: #{iphi_forward.1} parent=43 // pred_check_branch
        %255 = sbr.rel (%p253) target = $region48
      $region47: #{iphi_forward.1} parent=43 // pred_region
        %s256 = smul.u32 4, %s14
        %p257 = scmp.lt.s32.totalorder %s256, 15
        %s258 = scalar_select %p257, %s256, 15
        %s259 = smul.addr %s258, 4
        %s260 = scalar_lea.vmem %s0, %s259
        %s261 = smul.u32 4, %s14
      $region48: #{iphi_forward.1} parent=43 // pred_fallthru
        _
    $region44: #{iphi_forward.1} parent=5 // pred_fallthru
      _
    %p262 = scmp.le.s32.totalorder 1, %s14
    %p263 = scmp.lt.s32.totalorder %s14, 5
    %p264 = pnand %p262, %p263
    %p265 = pneg %p264
    // Predicated region
    $region49: #{iphi_forward.1} parent=5 // pred_check
      _
    $region50: #{iphi_forward.1} parent=5 // pred_check_branch
      %267 = sbr.rel (%p264) target = $region52
    $region51: #{iphi_forward.1} parent=5 // pred_region
      %s268 = ssub.s32 %s14, 1
      %s269 = smul.u32 4, %s19
      %p270 = scmp.lt.s32.totalorder %s269, 15
      %s271 = scalar_select %p270, %s269, 15
      %s272 = smul.addr %s271, 4
      %s273 = scalar_lea.vmem %s0, %s272
      %p274 = pneg %p40
      %p275 = pneg %p37
      %p276 = pneg %p61
      %p277 = pneg %p58
      %p278 = pneg %p82
      %p279 = pneg %p79
      %p280 = pneg %p103
      %p281 = pneg %p100
      %p282 = pneg %p124
      %p283 = pneg %p121
      %p284 = pneg %p145
      %p285 = pneg %p142
      %p286 = pneg %p166
      %p287 = pneg %p163
      %p288 = pneg %p187
      %p289 = pneg %p184
      %p290 = pneg %p213
      %p291 = pneg %p210
      %s292 = smul.u32 4, %s19
      %p293 = scmp.lt.s32.totalorder %s292, 15
      %s294 = scalar_select %p293, %s292, 15
      %s295 = smul.addr %s294, 4
      %s296 = scalar_lea.vmem %s8, %s295
      %s297 = smul.u32 4, %s19
      %p298 = scmp.lt.s32.totalorder %s297, 15
      %s299 = scalar_select %p298, %s297, 15
      %s300 = smul.addr %s299, 4
      %s301 = scalar_lea.vmem %s0, %s300
      %s302 = smul.u32 4, %s19
      %s303 = smul.u32 4, %s19
      %p304 = scmp.lt.s32.totalorder %s303, 15
      %s305 = scalar_select %p304, %s303, 15
      %s306 = smul.addr %s305, 4
      %s307 = scalar_lea.vmem %s8, %s306
      %s308 = smul.u32 4, %s19
      %v310 = vld [vmem:[%s301] sm:$0xff]
      %v311 = vld [vmem:[%s301 + $0x8] sm:$0xff]
      %v312 = vld [vmem:[%s1] sm:$0xff]
      %v313 = vld [vmem:[%s1 + $0x8] sm:$0xff]
      %v314 = vld [vmem:[%s1 + $0x10] sm:$0xff]
      %v315 = vld [vmem:[%s1 + $0x18] sm:$0xff]
      %v316 = vld [vmem:[%s2] sm:$0xff]
      %v317 = vld [vmem:[%s2 + $0x8] sm:$0xff]
      %v318 = vld [vmem:[%s2 + $0x10] sm:$0xff]
      %v319 = vld [vmem:[%s2 + $0x18] sm:$0xff]
      %321 = vset.pattern.permute.xlu0 0
      %322 = vperm.xlu0 %321, %v316
      %v323 = vpop.permute.xlu0 %322
      %326 = vset.pattern.permute.xlu0 0
      %327 = vperm.xlu0 %326, %v317
      %v328 = vpop.permute.xlu0 %327
      %331 = vset.pattern.permute.xlu0 0
      %332 = vperm.xlu0 %331, %v318
      %v333 = vpop.permute.xlu0 %332
      %336 = vset.pattern.permute.xlu0 0
      %337 = vperm.xlu0 %336, %v319
      %v338 = vpop.permute.xlu0 %337
      %v342 = vcombine.high %v310, %v310
      %v343 = vcombine.high %v311, %v311
      %vm344 = vcmask 31744
      %v346 = vsel %vm344, %v312, 0
      %v349 = vsel %vm344, %v313, 0
      %v352 = vsel %vm344, %v314, 0
      %v355 = vsel %vm344, %v315, 0
      %vm357 = vcmask 1043456
      %v358 = vsel %vm357, %v310, 0
      %v360 = vsel %vm357, %v342, 0
      %v362 = vsel %vm357, %v311, 0
      %v364 = vsel %vm357, %v343, 0
      %366 = vmatprep.subr.mxu0 0.0
      %367 = vmatpush1.msra.mxu0 0.0
      %368 = vmatprep.subr.mxu0 0.0
      %369 = vmatpush1.msra.mxu0 0.0
      %370 = vmatprep.subr.mxu0 0.0
      %371 = vmatpush1.msra.mxu0 0.0
      %372 = vmatprep.subr.mxu0 0.0
      %373 = vmatpush1.msra.mxu0 0.0
      %374 = vmatprep.subr.mxu0 0.0
      %375 = vmatpush1.msra.mxu0 0.0
      %376 = vmatprep.subr.mxu0 0.0
      %377 = vmatpush1.msra.mxu0 0.0
      %378 = vmatprep.subr.mxu0 0.0
      %379 = vmatpush1.msra.mxu0 0.0
      %380 = vmatprep.subr.mxu0 0.0
      %381 = vmatpush1.msra.mxu0 0.0
      %382 = vmatprep.subr.mxu0 0.0
      %383 = vmatpush1.msra.mxu0 0.0
      %384 = vmatprep.subr.mxu0 0.0
      %385 = vmatpush1.msra.mxu0 0.0
      %386 = vmatprep.subr.mxu0 0.0
      %387 = vmatpush1.msra.mxu0 0.0
      %388 = vmatprep.subr.mxu0 0.0
      %389 = vmatpush1.msra.mxu0 0.0
      %390 = vmatprep.subr.mxu0 0.0
      %391 = vmatpush1.msra.mxu0 0.0
      %392 = vmatprep.subr.mxu0 0.0
      %393 = vmatpush1.msra.mxu0 0.0
      %394 = vmatprep.subr.mxu0 0.0
      %395 = vmatpush1.msra.mxu0 0.0
      %396 = vmatprep.subr.mxu0 %v360
      %397 = vmatpush1.msra.mxu0 %v358
      %398 = vmatprep.subr.mxu0 0.0
      %399 = vmatpush2.msra.mxu0 0.0
      %400 = vmatprep.subr.mxu0 0.0
      %401 = vmatpush2.msra.mxu0 0.0
      %402 = vmatprep.subr.mxu0 0.0
      %403 = vmatpush2.msra.mxu0 0.0
      %404 = vmatprep.subr.mxu0 0.0
      %405 = vmatpush2.msra.mxu0 0.0
      %406 = vmatprep.subr.mxu0 0.0
      %407 = vmatpush2.msra.mxu0 0.0
      %408 = vmatprep.subr.mxu0 0.0
      %409 = vmatpush2.msra.mxu0 0.0
      %410 = vmatprep.subr.mxu0 0.0
      %411 = vmatpush2.msra.mxu0 0.0
      %412 = vmatprep.subr.mxu0 0.0
      %413 = vmatpush2.msra.mxu0 0.0
      %414 = vmatprep.subr.mxu0 0.0
      %415 = vmatpush2.msra.mxu0 0.0
      %416 = vmatprep.subr.mxu0 0.0
      %417 = vmatpush2.msra.mxu0 0.0
      %418 = vmatprep.subr.mxu0 0.0
      %419 = vmatpush2.msra.mxu0 0.0
      %420 = vmatprep.subr.mxu0 0.0
      %421 = vmatpush2.msra.mxu0 0.0
      %422 = vmatprep.subr.mxu0 0.0
      %423 = vmatpush2.msra.mxu0 0.0
      %424 = vmatprep.subr.mxu0 0.0
      %425 = vmatpush2.msra.mxu0 0.0
      %426 = vmatprep.subr.mxu0 0.0
      %427 = vmatpush2.msra.mxu0 0.0
      %428 = vmatprep.subr.mxu0 0.0
      %429 = vmatpush2.msra.mxu0 0.0
      %430 = vmatprep.mubr.f32.mxu0 0.0
      %431 = vmatmul.mubr.f32.gmra.mxu0 %v346
      %v432 = vpop.f32.mrf.mxu0
      %v433 = vadd.f32 %v323, %v432
      %v434 = vpop.f32.mrf.mxu0
      %v435 = vadd.f32 %v323, %v434
      %436 = vmatprep.mubr.f32.mxu0 0.0
      %437 = vmatmul.mubr.f32.gmra.mxu0 %v349
      %v438 = vpop.f32.mrf.mxu0
      %v439 = vadd.f32 %v328, %v438
      %v440 = vpop.f32.mrf.mxu0
      %v441 = vadd.f32 %v328, %v440
      %442 = vmatprep.mubr.f32.mxu0 0.0
      %443 = vmatmul.mubr.f32.gmra.mxu0 %v352
      %v444 = vpop.f32.mrf.mxu0
      %v445 = vadd.f32 %v333, %v444
      %v446 = vpop.f32.mrf.mxu0
      %v447 = vadd.f32 %v333, %v446
      %448 = vmatprep.mubr.f32.mxu0 0.0
      %449 = vmatmul.mubr.f32.gmra.mxu0 %v355
      %v450 = vpop.f32.mrf.mxu0
      %v451 = vadd.f32 %v338, %v450
      %v452 = vpop.f32.mrf.mxu0
      %v453 = vadd.f32 %v338, %v452
      %454 = vdwg.mxu0
      %455 = vmatprep.subr.mxu0 0.0
      %456 = vmatpush1.msra.mxu0 0.0
      %457 = vmatprep.subr.mxu0 0.0
      %458 = vmatpush1.msra.mxu0 0.0
      %459 = vmatprep.subr.mxu0 0.0
      %460 = vmatpush1.msra.mxu0 0.0
      %461 = vmatprep.subr.mxu0 0.0
      %462 = vmatpush1.msra.mxu0 0.0
      %463 = vmatprep.subr.mxu0 0.0
      %464 = vmatpush1.msra.mxu0 0.0
      %465 = vmatprep.subr.mxu0 0.0
      %466 = vmatpush1.msra.mxu0 0.0
      %467 = vmatprep.subr.mxu0 0.0
      %468 = vmatpush1.msra.mxu0 0.0
      %469 = vmatprep.subr.mxu0 0.0
      %470 = vmatpush1.msra.mxu0 0.0
      %471 = vmatprep.subr.mxu0 0.0
      %472 = vmatpush1.msra.mxu0 0.0
      %473 = vmatprep.subr.mxu0 0.0
      %474 = vmatpush1.msra.mxu0 0.0
      %475 = vmatprep.subr.mxu0 0.0
      %476 = vmatpush1.msra.mxu0 0.0
      %477 = vmatprep.subr.mxu0 0.0
      %478 = vmatpush1.msra.mxu0 0.0
      %479 = vmatprep.subr.mxu0 0.0
      %480 = vmatpush1.msra.mxu0 0.0
      %481 = vmatprep.subr.mxu0 0.0
      %482 = vmatpush1.msra.mxu0 0.0
      %483 = vmatprep.subr.mxu0 0.0
      %484 = vmatpush1.msra.mxu0 0.0
      %485 = vmatprep.subr.mxu0 %v364
      %486 = vmatpush1.msra.mxu0 %v362
      %487 = vmatprep.subr.mxu0 0.0
      %488 = vmatpush2.msra.mxu0 0.0
      %489 = vmatprep.subr.mxu0 0.0
      %490 = vmatpush2.msra.mxu0 0.0
      %491 = vmatprep.subr.mxu0 0.0
      %492 = vmatpush2.msra.mxu0 0.0
      %493 = vmatprep.subr.mxu0 0.0
      %494 = vmatpush2.msra.mxu0 0.0
      %495 = vmatprep.subr.mxu0 0.0
      %496 = vmatpush2.msra.mxu0 0.0
      %497 = vmatprep.subr.mxu0 0.0
      %498 = vmatpush2.msra.mxu0 0.0
      %499 = vmatprep.subr.mxu0 0.0
      %500 = vmatpush2.msra.mxu0 0.0
      %501 = vmatprep.subr.mxu0 0.0
      %502 = vmatpush2.msra.mxu0 0.0
      %503 = vmatprep.subr.mxu0 0.0
      %504 = vmatpush2.msra.mxu0 0.0
      %505 = vmatprep.subr.mxu0 0.0
      %506 = vmatpush2.msra.mxu0 0.0
      %507 = vmatprep.subr.mxu0 0.0
      %508 = vmatpush2.msra.mxu0 0.0
      %509 = vmatprep.subr.mxu0 0.0
      %510 = vmatpush2.msra.mxu0 0.0
      %511 = vmatprep.subr.mxu0 0.0
      %512 = vmatpush2.msra.mxu0 0.0
      %513 = vmatprep.subr.mxu0 0.0
      %514 = vmatpush2.msra.mxu0 0.0
      %515 = vmatprep.subr.mxu0 0.0
      %516 = vmatpush2.msra.mxu0 0.0
      %517 = vmatprep.subr.mxu0 0.0
      %518 = vmatpush2.msra.mxu0 0.0
      %519 = vmatprep.mubr.f32.mxu0 0.0
      %520 = vmatmul.mubr.f32.gmra.mxu0 %v346
      %v521 = vpop.f32.mrf.mxu0
      %v522 = vadd.f32 %v323, %v521
      %v523 = vpop.f32.mrf.mxu0
      %v524 = vadd.f32 %v323, %v523
      %525 = vmatprep.mubr.f32.mxu0 0.0
      %526 = vmatmul.mubr.f32.gmra.mxu0 %v349
      %v527 = vpop.f32.mrf.mxu0
      %v528 = vadd.f32 %v328, %v527
      %v529 = vpop.f32.mrf.mxu0
      %v530 = vadd.f32 %v328, %v529
      %531 = vmatprep.mubr.f32.mxu0 0.0
      %532 = vmatmul.mubr.f32.gmra.mxu0 %v352
      %v533 = vpop.f32.mrf.mxu0
      %v534 = vadd.f32 %v333, %v533
      %v535 = vpop.f32.mrf.mxu0
      %v536 = vadd.f32 %v333, %v535
      %537 = vmatprep.mubr.f32.mxu0 0.0
      %538 = vmatmul.mubr.f32.gmra.mxu0 %v355
      %v539 = vpop.f32.mrf.mxu0
      %v540 = vadd.f32 %v338, %v539
      %v541 = vpop.f32.mrf.mxu0
      %v542 = vadd.f32 %v338, %v541
      %543 = vdwg.mxu0
      %v544 = vmul.f32 %v310, 3.1415927
      %v545 = vmul.f32 %v311, 3.1415927
      %v546 = vand.u32 2147483647, %v544
      %vm547 = vcmp.le.f32.partialorder %v546, 0.7853982
      %vm548 = vcmp.lt.s32.totalorder %v544, 0
      %v549 = vand.u32 %v544, 2139095040
      %v550 = vshrl.u32 %v549, 23
      %v551 = vsub.s32 %v550, 127
      %v552 = vand.u32 2147483647, %v544
      %v553 = vand.u32 %v552, 8388607
      %v554 = vor.u32 %v553, 8388608
      %v555 = vsub.s32 0, %v554
      %v556 = vadd.s32 %v551, 1
      %vm557 = vcmp.gt.s32.totalorder %v556, 0
      %v558 = vsel %vm557, %v556, 0
      %v559 = vshrl.u32 %v558, 5
      %v560 = vand.u32 %v558, 31
      %v561 = vsub.s32 32, %v560
      %v562 = vshrl.u32 683565275, %v561
      %v563 = vshll.u32 683565275, %v560
      %v564 = vshrl.u32 2475754826, %v561
      %v565 = vor.u32 %v563, %v564
      %v566 = vshll.u32 2475754826, %v560
      %v567 = vshrl.u32 2131351028, %v561
      %v568 = vor.u32 %v566, %v567
      %v569 = vshll.u32 2131351028, %v560
      %v570 = vshrl.u32 2102212464, %v561
      %v571 = vor.u32 %v569, %v570
      %v572 = vshll.u32 2102212464, %v560
      %v573 = vshrl.u32 920167782, %v561
      %v574 = vor.u32 %v572, %v573
      %v575 = vshll.u32 920167782, %v560
      %v576 = vshrl.u32 1326507024, %v561
      %v577 = vor.u32 %v575, %v576
      %vm578 = vcmp.lt.s32.totalorder %v559, 1
      %vm579 = vcmp.lt.s32.totalorder %v559, 2
      %vm580 = vcmp.lt.s32.totalorder %v559, 3
      %vm581 = vcmp.lt.s32.totalorder %v559, 4
      %v582 = vsel %vm578, %v562, %v565
      %v583 = vsel %vm581, %v571, 2102212464
      %v584 = vsel %vm580, %v568, %v583
      %v585 = vsel %vm579, %v582, %v584
      %v586 = vsel %vm578, %v565, %v568
      %v587 = vsel %vm581, %v574, 920167782
      %v588 = vsel %vm580, %v571, %v587
      %v589 = vsel %vm579, %v586, %v588
      %v590 = vsel %vm578, %v568, %v571
      %v591 = vsel %vm581, %v577, 1326507024
      %v592 = vsel %vm580, %v574, %v591
      %v593 = vsel %vm579, %v590, %v592
      %v594 = vshll.u32 %v554, 8
      %v595 = vmul.u32.u64.compose %v594, %v593
      %v596 = vextract.low.u32 %v595
      %v597 = vextract.high.u32 %v595
      %v598 = vmul.u32.u64.compose %v594, %v589
      %v599 = vextract.low.u32 %v598
      %v600 = vextract.high.u32 %v598
      %v601 = vmul.u32 %v594, %v585
      %v602 = vadd.s32 %v597, %v599
      %vm603 = vc.u32 %v597, %v599
      %v604 = vadd.s32 %v600, 1
      %v605 = vsel %vm603, %v604, %v600
      %v606 = vadd.s32 %v601, %v605
      %v607 = vadd.s32 %v606, 536870912
      %v608 = vshrl.u32 %v607, 30
      %v609 = vshll.u32 %v608, 30
      %v610 = vsub.s32 %v606, %v609
      %vm611 = vcmp.lt.s32.totalorder %v610, 0
      %v612 = vsub.s32 0, %v610
      %v613 = vsel %vm611, %v612, %v610
      %v614 = vclz %v613
      %v615 = vsub.s32 %v614, 2
      %vm616 = vcmp.gt.s32.totalorder 0, %v615
      %v617 = vsel %vm616, 0, %v615
      %v618 = vsub.s32 32, %v617
      %v619 = vshll.u32 %v610, %v617
      %v620 = vshrl.u32 %v602, %v618
      %v621 = vor.u32 %v619, %v620
      %v622 = vsub.s32 4294967266, %v617
      %v623 = vadd.s32 %v622, 127
      %v624 = vshll.u32 %v623, 23
      %v625 = vor.u32 4788187, %v624
      %v626 = vand.u32 2147483647, %v625
      %v628 = vcvt.s32.f32 %v621
      %v629 = vmul.f32 %v628, %v626
      %v630 = vxor.u32 %v629, 2147483648
      %v631 = vsel %vm548, %v630, %v629
      %v632 = vsub.s32 4, %v608
      %v633 = vsel %vm548, %v632, %v608
      %v634 = vsel %vm547, %v544, %v631
      %v635 = vsel %vm547, 0, %v633
      %v636 = vcosq.f32.pop %v634
      %v637 = vsinq.f32.pop %v634
      %vm638 = vweird.f32 %v544
      %v639 = vadd.s32 %v635, 3
      %v640 = vand.u32 %v639, 3
      %vm641 = vcmp.lt.s32.totalorder %v640, 2
      %vm642 = vcmp.eq.s32.totalorder %v640, 0
      %v643 = vxor.u32 %v637, 2147483648
      %v644 = vsel %vm642, %v636, %v643
      %vm645 = vcmp.eq.s32.totalorder %v640, 2
      %v646 = vxor.u32 %v636, 2147483648
      %v647 = vsel %vm645, %v646, %v637
      %v648 = vsel %vm641, %v644, %v647
      %v649 = vsel %vm638, nan, %v648
      %v650 = vand.u32 2147483647, %v545
      %vm651 = vcmp.le.f32.partialorder %v650, 0.7853982
      %vm652 = vcmp.lt.s32.totalorder %v545, 0
      %v653 = vand.u32 %v545, 2139095040
      %v654 = vshrl.u32 %v653, 23
      %v655 = vsub.s32 %v654, 127
      %v656 = vand.u32 2147483647, %v545
      %v657 = vand.u32 %v656, 8388607
      %v658 = vor.u32 %v657, 8388608
      %v659 = vsub.s32 0, %v658
      %v660 = vadd.s32 %v655, 1
      %vm661 = vcmp.gt.s32.totalorder %v660, 0
      %v662 = vsel %vm661, %v660, 0
      %v663 = vshrl.u32 %v662, 5
      %v664 = vand.u32 %v662, 31
      %v665 = vsub.s32 32, %v664
      %v666 = vshrl.u32 683565275, %v665
      %v667 = vshll.u32 683565275, %v664
      %v668 = vshrl.u32 2475754826, %v665
      %v669 = vor.u32 %v667, %v668
      %v670 = vshll.u32 2475754826, %v664
      %v671 = vshrl.u32 2131351028, %v665
      %v672 = vor.u32 %v670, %v671
      %v673 = vshll.u32 2131351028, %v664
      %v674 = vshrl.u32 2102212464, %v665
      %v675 = vor.u32 %v673, %v674
      %v676 = vshll.u32 2102212464, %v664
      %v677 = vshrl.u32 920167782, %v665
      %v678 = vor.u32 %v676, %v677
      %v679 = vshll.u32 920167782, %v664
      %v680 = vshrl.u32 1326507024, %v665
      %v681 = vor.u32 %v679, %v680
      %vm682 = vcmp.lt.s32.totalorder %v663, 1
      %vm683 = vcmp.lt.s32.totalorder %v663, 2
      %vm684 = vcmp.lt.s32.totalorder %v663, 3
      %vm685 = vcmp.lt.s32.totalorder %v663, 4
      %v686 = vsel %vm682, %v666, %v669
      %v687 = vsel %vm685, %v675, 2102212464
      %v688 = vsel %vm684, %v672, %v687
      %v689 = vsel %vm683, %v686, %v688
      %v690 = vsel %vm682, %v669, %v672
      %v691 = vsel %vm685, %v678, 920167782
      %v692 = vsel %vm684, %v675, %v691
      %v693 = vsel %vm683, %v690, %v692
      %v694 = vsel %vm682, %v672, %v675
      %v695 = vsel %vm685, %v681, 1326507024
      %v696 = vsel %vm684, %v678, %v695
      %v697 = vsel %vm683, %v694, %v696
      %v698 = vshll.u32 %v658, 8
      %v699 = vmul.u32.u64.compose %v698, %v697
      %v700 = vextract.low.u32 %v699
      %v701 = vextract.high.u32 %v699
      %v702 = vmul.u32.u64.compose %v698, %v693
      %v703 = vextract.low.u32 %v702
      %v704 = vextract.high.u32 %v702
      %v705 = vmul.u32 %v698, %v689
      %v706 = vadd.s32 %v701, %v703
      %vm707 = vc.u32 %v701, %v703
      %v708 = vadd.s32 %v704, 1
      %v709 = vsel %vm707, %v708, %v704
      %v710 = vadd.s32 %v705, %v709
      %v711 = vadd.s32 %v710, 536870912
      %v712 = vshrl.u32 %v711, 30
      %v713 = vshll.u32 %v712, 30
      %v714 = vsub.s32 %v710, %v713
      %vm715 = vcmp.lt.s32.totalorder %v714, 0
      %v716 = vsub.s32 0, %v714
      %v717 = vsel %vm715, %v716, %v714
      %v718 = vclz %v717
      %v719 = vsub.s32 %v718, 2
      %vm720 = vcmp.gt.s32.totalorder 0, %v719
      %v721 = vsel %vm720, 0, %v719
      %v722 = vsub.s32 32, %v721
      %v723 = vshll.u32 %v714, %v721
      %v724 = vshrl.u32 %v706, %v722
      %v725 = vor.u32 %v723, %v724
      %v726 = vsub.s32 4294967266, %v721
      %v727 = vadd.s32 %v726, 127
      %v728 = vshll.u32 %v727, 23
      %v729 = vor.u32 4788187, %v728
      %v730 = vand.u32 2147483647, %v729
      %v732 = vcvt.s32.f32 %v725
      %v733 = vmul.f32 %v732, %v730
      %v734 = vxor.u32 %v733, 2147483648
      %v735 = vsel %vm652, %v734, %v733
      %v736 = vsub.s32 4, %v712
      %v737 = vsel %vm652, %v736, %v712
      %v738 = vsel %vm651, %v545, %v735
      %v739 = vsel %vm651, 0, %v737
      %v740 = vcosq.f32.pop %v738
      %v741 = vsinq.f32.pop %v738
      %vm742 = vweird.f32 %v545
      %v743 = vadd.s32 %v739, 3
      %v744 = vand.u32 %v743, 3
      %vm745 = vcmp.lt.s32.totalorder %v744, 2
      %vm746 = vcmp.eq.s32.totalorder %v744, 0
      %v747 = vxor.u32 %v741, 2147483648
      %v748 = vsel %vm746, %v740, %v747
      %vm749 = vcmp.eq.s32.totalorder %v744, 2
      %v750 = vxor.u32 %v740, 2147483648
      %v751 = vsel %vm749, %v750, %v741
      %v752 = vsel %vm745, %v748, %v751
      %v753 = vsel %vm742, nan, %v752
      %v754 = vand.u32 2147483647, %v544
      %vm755 = vcmp.le.f32.partialorder %v754, 0.7853982
      %vm756 = vcmp.lt.s32.totalorder %v544, 0
      %v757 = vand.u32 %v544, 2139095040
      %v758 = vshrl.u32 %v757, 23
      %v759 = vsub.s32 %v758, 127
      %v760 = vand.u32 2147483647, %v544
      %v761 = vand.u32 %v760, 8388607
      %v762 = vor.u32 %v761, 8388608
      %v763 = vsub.s32 0, %v762
      %v764 = vadd.s32 %v759, 1
      %vm765 = vcmp.gt.s32.totalorder %v764, 0
      %v766 = vsel %vm765, %v764, 0
      %v767 = vshrl.u32 %v766, 5
      %v768 = vand.u32 %v766, 31
      %v769 = vsub.s32 32, %v768
      %v770 = vshrl.u32 683565275, %v769
      %v771 = vshll.u32 683565275, %v768
      %v772 = vshrl.u32 2475754826, %v769
      %v773 = vor.u32 %v771, %v772
      %v774 = vshll.u32 2475754826, %v768
      %v775 = vshrl.u32 2131351028, %v769
      %v776 = vor.u32 %v774, %v775
      %v777 = vshll.u32 2131351028, %v768
      %v778 = vshrl.u32 2102212464, %v769
      %v779 = vor.u32 %v777, %v778
      %v780 = vshll.u32 2102212464, %v768
      %v781 = vshrl.u32 920167782, %v769
      %v782 = vor.u32 %v780, %v781
      %v783 = vshll.u32 920167782, %v768
      %v784 = vshrl.u32 1326507024, %v769
      %v785 = vor.u32 %v783, %v784
      %vm786 = vcmp.lt.s32.totalorder %v767, 1
      %vm787 = vcmp.lt.s32.totalorder %v767, 2
      %vm788 = vcmp.lt.s32.totalorder %v767, 3
      %vm789 = vcmp.lt.s32.totalorder %v767, 4
      %v790 = vsel %vm786, %v770, %v773
      %v791 = vsel %vm789, %v779, 2102212464
      %v792 = vsel %vm788, %v776, %v791
      %v793 = vsel %vm787, %v790, %v792
      %v794 = vsel %vm786, %v773, %v776
      %v795 = vsel %vm789, %v782, 920167782
      %v796 = vsel %vm788, %v779, %v795
      %v797 = vsel %vm787, %v794, %v796
      %v798 = vsel %vm786, %v776, %v779
      %v799 = vsel %vm789, %v785, 1326507024
      %v800 = vsel %vm788, %v782, %v799
      %v801 = vsel %vm787, %v798, %v800
      %v802 = vshll.u32 %v762, 8
      %v803 = vmul.u32.u64.compose %v802, %v801
      %v804 = vextract.low.u32 %v803
      %v805 = vextract.high.u32 %v803
      %v806 = vmul.u32.u64.compose %v802, %v797
      %v807 = vextract.low.u32 %v806
      %v808 = vextract.high.u32 %v806
      %v809 = vmul.u32 %v802, %v793
      %v810 = vadd.s32 %v805, %v807
      %vm811 = vc.u32 %v805, %v807
      %v812 = vadd.s32 %v808, 1
      %v813 = vsel %vm811, %v812, %v808
      %v814 = vadd.s32 %v809, %v813
      %v815 = vadd.s32 %v814, 536870912
      %v816 = vshrl.u32 %v815, 30
      %v817 = vshll.u32 %v816, 30
      %v818 = vsub.s32 %v814, %v817
      %vm819 = vcmp.lt.s32.totalorder %v818, 0
      %v820 = vsub.s32 0, %v818
      %v821 = vsel %vm819, %v820, %v818
      %v822 = vclz %v821
      %v823 = vsub.s32 %v822, 2
      %vm824 = vcmp.gt.s32.totalorder 0, %v823
      %v825 = vsel %vm824, 0, %v823
      %v826 = vsub.s32 32, %v825
      %v827 = vshll.u32 %v818, %v825
      %v828 = vshrl.u32 %v810, %v826
      %v829 = vor.u32 %v827, %v828
      %v830 = vsub.s32 4294967266, %v825
      %v831 = vadd.s32 %v830, 127
      %v832 = vshll.u32 %v831, 23
      %v833 = vor.u32 4788187, %v832
      %v834 = vand.u32 2147483647, %v833
      %v836 = vcvt.s32.f32 %v829
      %v837 = vmul.f32 %v836, %v834
      %v838 = vxor.u32 %v837, 2147483648
      %v839 = vsel %vm756, %v838, %v837
      %v840 = vsub.s32 4, %v816
      %v841 = vsel %vm756, %v840, %v816
      %v842 = vsel %vm755, %v544, %v839
      %v843 = vsel %vm755, 0, %v841
      %v844 = vcosq.f32.pop %v842
      %v845 = vsinq.f32.pop %v842
      %vm846 = vweird.f32 %v544
      %v847 = vand.u32 %v843, 3
      %vm848 = vcmp.lt.s32.totalorder %v847, 2
      %vm849 = vcmp.eq.s32.totalorder %v847, 0
      %v850 = vxor.u32 %v845, 2147483648
      %v851 = vsel %vm849, %v844, %v850
      %vm852 = vcmp.eq.s32.totalorder %v847, 2
      %v853 = vxor.u32 %v844, 2147483648
      %v854 = vsel %vm852, %v853, %v845
      %v855 = vsel %vm848, %v851, %v854
      %v856 = vsel %vm846, nan, %v855
      %v857 = vand.u32 2147483647, %v545
      %vm858 = vcmp.le.f32.partialorder %v857, 0.7853982
      %vm859 = vcmp.lt.s32.totalorder %v545, 0
      %v860 = vand.u32 %v545, 2139095040
      %v861 = vshrl.u32 %v860, 23
      %v862 = vsub.s32 %v861, 127
      %v863 = vand.u32 2147483647, %v545
      %v864 = vand.u32 %v863, 8388607
      %v865 = vor.u32 %v864, 8388608
      %v866 = vsub.s32 0, %v865
      %v867 = vadd.s32 %v862, 1
      %vm868 = vcmp.gt.s32.totalorder %v867, 0
      %v869 = vsel %vm868, %v867, 0
      %v870 = vshrl.u32 %v869, 5
      %v871 = vand.u32 %v869, 31
      %v872 = vsub.s32 32, %v871
      %v873 = vshrl.u32 683565275, %v872
      %v874 = vshll.u32 683565275, %v871
      %v875 = vshrl.u32 2475754826, %v872
      %v876 = vor.u32 %v874, %v875
      %v877 = vshll.u32 2475754826, %v871
      %v878 = vshrl.u32 2131351028, %v872
      %v879 = vor.u32 %v877, %v878
      %v880 = vshll.u32 2131351028, %v871
      %v881 = vshrl.u32 2102212464, %v872
      %v882 = vor.u32 %v880, %v881
      %v883 = vshll.u32 2102212464, %v871
      %v884 = vshrl.u32 920167782, %v872
      %v885 = vor.u32 %v883, %v884
      %v886 = vshll.u32 920167782, %v871
      %v887 = vshrl.u32 1326507024, %v872
      %v888 = vor.u32 %v886, %v887
      %vm889 = vcmp.lt.s32.totalorder %v870, 1
      %vm890 = vcmp.lt.s32.totalorder %v870, 2
      %vm891 = vcmp.lt.s32.totalorder %v870, 3
      %vm892 = vcmp.lt.s32.totalorder %v870, 4
      %v893 = vsel %vm889, %v873, %v876
      %v894 = vsel %vm892, %v882, 2102212464
      %v895 = vsel %vm891, %v879, %v894
      %v896 = vsel %vm890, %v893, %v895
      %v897 = vsel %vm889, %v876, %v879
      %v898 = vsel %vm892, %v885, 920167782
      %v899 = vsel %vm891, %v882, %v898
      %v900 = vsel %vm890, %v897, %v899
      %v901 = vsel %vm889, %v879, %v882
      %v902 = vsel %vm892, %v888, 1326507024
      %v903 = vsel %vm891, %v885, %v902
      %v904 = vsel %vm890, %v901, %v903
      %v905 = vshll.u32 %v865, 8
      %v906 = vmul.u32.u64.compose %v905, %v904
      %v907 = vextract.low.u32 %v906
      %v908 = vextract.high.u32 %v906
      %v909 = vmul.u32.u64.compose %v905, %v900
      %v910 = vextract.low.u32 %v909
      %v911 = vextract.high.u32 %v909
      %v912 = vmul.u32 %v905, %v896
      %v913 = vadd.s32 %v908, %v910
      %vm914 = vc.u32 %v908, %v910
      %v915 = vadd.s32 %v911, 1
      %v916 = vsel %vm914, %v915, %v911
      %v917 = vadd.s32 %v912, %v916
      %v918 = vadd.s32 %v917, 536870912
      %v919 = vshrl.u32 %v918, 30
      %v920 = vshll.u32 %v919, 30
      %v921 = vsub.s32 %v917, %v920
      %vm922 = vcmp.lt.s32.totalorder %v921, 0
      %v923 = vsub.s32 0, %v921
      %v924 = vsel %vm922, %v923, %v921
      %v925 = vclz %v924
      %v926 = vsub.s32 %v925, 2
      %vm927 = vcmp.gt.s32.totalorder 0, %v926
      %v928 = vsel %vm927, 0, %v926
      %v929 = vsub.s32 32, %v928
      %v930 = vshll.u32 %v921, %v928
      %v931 = vshrl.u32 %v913, %v929
      %v932 = vor.u32 %v930, %v931
      %v933 = vsub.s32 4294967266, %v928
      %v934 = vadd.s32 %v933, 127
      %v935 = vshll.u32 %v934, 23
      %v936 = vor.u32 4788187, %v935
      %v937 = vand.u32 2147483647, %v936
      %v939 = vcvt.s32.f32 %v932
      %v940 = vmul.f32 %v939, %v937
      %v941 = vxor.u32 %v940, 2147483648
      %v942 = vsel %vm859, %v941, %v940
      %v943 = vsub.s32 4, %v919
      %v944 = vsel %vm859, %v943, %v919
      %v945 = vsel %vm858, %v545, %v942
      %v946 = vsel %vm858, 0, %v944
      %v947 = vcosq.f32.pop %v945
      %v948 = vsinq.f32.pop %v945
      %vm949 = vweird.f32 %v545
      %v950 = vand.u32 %v946, 3
      %vm951 = vcmp.lt.s32.totalorder %v950, 2
      %vm952 = vcmp.eq.s32.totalorder %v950, 0
      %v953 = vxor.u32 %v948, 2147483648
      %v954 = vsel %vm952, %v947, %v953
      %vm955 = vcmp.eq.s32.totalorder %v950, 2
      %v956 = vxor.u32 %v947, 2147483648
      %v957 = vsel %vm955, %v956, %v948
      %v958 = vsel %vm951, %v954, %v957
      %v959 = vsel %vm949, nan, %v958
      %v960 = vmul.f32 %v649, 2.0
      %v961 = vmul.f32 %v753, 2.0
      %v962 = vmul.f32 %v960, %v856
      %v963 = vmul.f32 %v961, %v959
      %v964 = vsub.f32 %v856, %v649
      %v965 = vsub.f32 %v959, %v753
      %v966 = vadd.f32 %v856, %v649
      %v967 = vadd.f32 %v959, %v753
      %v968 = vmul.f32 %v964, %v966
      %v969 = vmul.f32 %v965, %v967
      %v970 = vmul.f32 %v962, 2.0
      %v971 = vmul.f32 %v963, 2.0
      %v972 = vmul.f32 %v970, %v968
      %v973 = vmul.f32 %v971, %v969
      %v974 = vsub.f32 %v968, %v962
      %v975 = vsub.f32 %v969, %v963
      %v976 = vadd.f32 %v968, %v962
      %v977 = vadd.f32 %v969, %v963
      %v978 = vmul.f32 %v974, %v976
      %v979 = vmul.f32 %v975, %v977
      %v980 = vmul.f32 %v972, 2.0
      %v981 = vmul.f32 %v973, 2.0
      %v982 = vmul.f32 %v980, %v978
      %v983 = vmul.f32 %v981, %v979
      %v984 = vsub.f32 %v978, %v972
      %v985 = vsub.f32 %v979, %v973
      %v986 = vadd.f32 %v978, %v972
      %v987 = vadd.f32 %v979, %v973
      %v988 = vmul.f32 %v984, %v986
      %v989 = vmul.f32 %v985, %v987
      %v990 = vmul.f32 %v982, 2.0
      %v991 = vmul.f32 %v983, 2.0
      %v992 = vmul.f32 %v990, %v988
      %v993 = vmul.f32 %v991, %v989
      %v994 = vsub.f32 %v988, %v982
      %v995 = vsub.f32 %v989, %v983
      %v996 = vadd.f32 %v988, %v982
      %v997 = vadd.f32 %v989, %v983
      %v998 = vmul.f32 %v994, %v996
      %v999 = vmul.f32 %v995, %v997
      %v1000 = vmul.f32 %v992, 2.0
      %v1001 = vmul.f32 %v993, 2.0
      %v1002 = vmul.f32 %v1000, %v998
      %v1003 = vmul.f32 %v1001, %v999
      %v1004 = vsub.f32 %v998, %v992
      %v1005 = vsub.f32 %v999, %v993
      %v1006 = vadd.f32 %v998, %v992
      %v1007 = vadd.f32 %v999, %v993
      %v1008 = vmul.f32 %v1004, %v1006
      %v1009 = vmul.f32 %v1005, %v1007
      %v1010 = vmul.f32 %v1002, 2.0
      %v1011 = vmul.f32 %v1003, 2.0
      %v1012 = vmul.f32 %v1010, %v1008
      %v1013 = vmul.f32 %v1011, %v1009
      %v1014 = vsub.f32 %v1008, %v1002
      %v1015 = vsub.f32 %v1009, %v1003
      %v1016 = vadd.f32 %v1008, %v1002
      %v1017 = vadd.f32 %v1009, %v1003
      %v1018 = vmul.f32 %v1014, %v1016
      %v1019 = vmul.f32 %v1015, %v1017
      %v1020 = vmul.f32 %v1012, 2.0
      %v1021 = vmul.f32 %v1013, 2.0
      %v1022 = vmul.f32 %v1020, %v1018
      %v1023 = vmul.f32 %v1021, %v1019
      %v1024 = vsub.f32 %v1018, %v1012
      %v1025 = vsub.f32 %v1019, %v1013
      %v1026 = vadd.f32 %v1018, %v1012
      %v1027 = vadd.f32 %v1019, %v1013
      %v1028 = vmul.f32 %v1024, %v1026
      %v1029 = vmul.f32 %v1025, %v1027
      %v1032 = vcombine.high %v649, %v649
      %v1033 = vcombine.high %v753, %v753
      %v1038 = vcombine.low %v962, %v962
      %v1039 = vcombine.low %v963, %v963
      %v1044 = vcombine.high %v972, %v972
      %v1045 = vcombine.high %v973, %v973
      %v1050 = vcombine.low %v982, %v982
      %v1051 = vcombine.low %v983, %v983
      %v1056 = vcombine.high %v992, %v992
      %v1057 = vcombine.high %v993, %v993
      %v1062 = vcombine.low %v1002, %v1002
      %v1063 = vcombine.low %v1003, %v1003
      %v1068 = vcombine.high %v1012, %v1012
      %v1069 = vcombine.high %v1013, %v1013
      %v1074 = vcombine.low %v1022, %v1022
      %v1075 = vcombine.low %v1023, %v1023
      %v1078 = vsel %vm357, %v649, %v1038
      %v1079 = vsel %vm357, %v1032, %v962
      %v1080 = vsel %vm357, %v753, %v1039
      %v1081 = vsel %vm357, %v1033, %v963
      %v1082 = vsel %vm357, %v972, %v1050
      %v1083 = vsel %vm357, %v1044, %v982
      %v1084 = vsel %vm357, %v973, %v1051
      %v1085 = vsel %vm357, %v1045, %v983
      %v1086 = vsel %vm357, %v992, %v1062
      %v1087 = vsel %vm357, %v1056, %v1002
      %v1088 = vsel %vm357, %v993, %v1063
      %v1089 = vsel %vm357, %v1057, %v1003
      %v1090 = vsel %vm357, %v1012, %v1074
      %v1091 = vsel %vm357, %v1068, %v1022
      %v1092 = vsel %vm357, %v1013, %v1075
      %v1093 = vsel %vm357, %v1069, %v1023
      %v1094 = vpack.c.bf16 %v1082, %v1078
      %v1095 = vpack.c.bf16 %v1083, %v1079
      %v1096 = vpack.c.bf16 %v1084, %v1080
      %v1097 = vpack.c.bf16 %v1085, %v1081
      %v1098 = vpack.c.bf16 %v1090, %v1086
      %v1099 = vpack.c.bf16 %v1091, %v1087
      %v1100 = vpack.c.bf16 %v1092, %v1088
      %v1101 = vpack.c.bf16 %v1093, %v1089
      %v1104 = vcombine.high %v856, %v856
      %v1105 = vcombine.high %v959, %v959
      %v1110 = vcombine.low %v968, %v968
      %v1111 = vcombine.low %v969, %v969
      %v1116 = vcombine.high %v978, %v978
      %v1117 = vcombine.high %v979, %v979
      %v1122 = vcombine.low %v988, %v988
      %v1123 = vcombine.low %v989, %v989
      %v1128 = vcombine.high %v998, %v998
      %v1129 = vcombine.high %v999, %v999
      %v1134 = vcombine.low %v1008, %v1008
      %v1135 = vcombine.low %v1009, %v1009
      %v1140 = vcombine.high %v1018, %v1018
      %v1141 = vcombine.high %v1019, %v1019
      %v1146 = vcombine.low %v1028, %v1028
      %v1147 = vcombine.low %v1029, %v1029
      %v1150 = vsel %vm357, %v856, %v1110
      %v1151 = vsel %vm357, %v1104, %v968
      %v1152 = vsel %vm357, %v959, %v1111
      %v1153 = vsel %vm357, %v1105, %v969
      %v1154 = vsel %vm357, %v978, %v1122
      %v1155 = vsel %vm357, %v1116, %v988
      %v1156 = vsel %vm357, %v979, %v1123
      %v1157 = vsel %vm357, %v1117, %v989
      %v1158 = vsel %vm357, %v998, %v1134
      %v1159 = vsel %vm357, %v1128, %v1008
      %v1160 = vsel %vm357, %v999, %v1135
      %v1161 = vsel %vm357, %v1129, %v1009
      %v1162 = vsel %vm357, %v1018, %v1146
      %v1163 = vsel %vm357, %v1140, %v1028
      %v1164 = vsel %vm357, %v1019, %v1147
      %v1165 = vsel %vm357, %v1141, %v1029
      %v1166 = vpack.c.bf16 %v1154, %v1150
      %v1167 = vpack.c.bf16 %v1155, %v1151
      %v1168 = vpack.c.bf16 %v1156, %v1152
      %v1169 = vpack.c.bf16 %v1157, %v1153
      %v1170 = vpack.c.bf16 %v1162, %v1158
      %v1171 = vpack.c.bf16 %v1163, %v1159
      %v1172 = vpack.c.bf16 %v1164, %v1160
      %v1173 = vpack.c.bf16 %v1165, %v1161
      %v1174 = vld [vmem:[%s3] sm:$0xf]
      %v1175 = vld [vmem:[%s3 + $0x4] sm:$0xf]
      %v1176 = vld [vmem:[%s3 + $0x8] sm:$0xf]
      %v1177 = vld [vmem:[%s3 + $0xc] sm:$0xf]
      %v1178 = vld [vmem:[%s3 + $0x10] sm:$0xf]
      %v1179 = vld [vmem:[%s3 + $0x14] sm:$0xf]
      %v1180 = vld [vmem:[%s3 + $0x18] sm:$0xf]
      %v1181 = vld [vmem:[%s3 + $0x1c] sm:$0xf]
      %v1182 = vld [vmem:[%s3 + $0x20] sm:$0xf]
      %v1183 = vld [vmem:[%s3 + $0x24] sm:$0xf]
      %v1184 = vld [vmem:[%s3 + $0x28] sm:$0xf]
      %v1185 = vld [vmem:[%s3 + $0x2c] sm:$0xf]
      %v1186 = vld [vmem:[%s3 + $0x30] sm:$0xf]
      %v1187 = vld [vmem:[%s3 + $0x34] sm:$0xf]
      %v1188 = vld [vmem:[%s3 + $0x38] sm:$0xf]
      %v1189 = vld [vmem:[%s3 + $0x3c] sm:$0xf]
      %v1190 = vld [vmem:[%s3 + $0x40] sm:$0xf]
      %v1191 = vld [vmem:[%s3 + $0x44] sm:$0xf]
      %v1192 = vld [vmem:[%s3 + $0x48] sm:$0xf]
      %v1193 = vld [vmem:[%s3 + $0x4c] sm:$0xf]
      %v1194 = vld [vmem:[%s3 + $0x50] sm:$0xf]
      %v1195 = vld [vmem:[%s3 + $0x54] sm:$0xf]
      %v1196 = vld [vmem:[%s3 + $0x58] sm:$0xf]
      %v1197 = vld [vmem:[%s3 + $0x5c] sm:$0xf]
      %v1198 = vld [vmem:[%s3 + $0x60] sm:$0xf]
      %v1199 = vld [vmem:[%s3 + $0x64] sm:$0xf]
      %v1200 = vld [vmem:[%s3 + $0x68] sm:$0xf]
      %v1201 = vld [vmem:[%s3 + $0x6c] sm:$0xf]
      %v1202 = vld [vmem:[%s3 + $0x70] sm:$0xf]
      %v1203 = vld [vmem:[%s3 + $0x74] sm:$0xf]
      %v1204 = vld [vmem:[%s3 + $0x78] sm:$0xf]
      %v1205 = vld [vmem:[%s3 + $0x7c] sm:$0xf]
      %v1206 = vld [vmem:[%s3 + $0x80] sm:$0xf]
      %v1207 = vld [vmem:[%s3 + $0x84] sm:$0xf]
      %v1208 = vld [vmem:[%s3 + $0x88] sm:$0xf]
      %v1209 = vld [vmem:[%s3 + $0x8c] sm:$0xf]
      %v1210 = vld [vmem:[%s3 + $0x90] sm:$0xf]
      %v1211 = vld [vmem:[%s3 + $0x94] sm:$0xf]
      %v1212 = vld [vmem:[%s3 + $0x98] sm:$0xf]
      %v1213 = vld [vmem:[%s3 + $0x9c] sm:$0xf]
      %v1214 = vld [vmem:[%s3 + $0xa0] sm:$0xf]
      %v1215 = vld [vmem:[%s3 + $0xa4] sm:$0xf]
      %v1216 = vld [vmem:[%s3 + $0xa8] sm:$0xf]
      %v1217 = vld [vmem:[%s3 + $0xac] sm:$0xf]
      %v1218 = vld [vmem:[%s3 + $0xb0] sm:$0xf]
      %v1219 = vld [vmem:[%s3 + $0xb4] sm:$0xf]
      %v1220 = vld [vmem:[%s3 + $0xb8] sm:$0xf]
      %v1221 = vld [vmem:[%s3 + $0xbc] sm:$0xf]
      %v1222 = vld [vmem:[%s5] sm:$0xff]
      %v1223 = vld [vmem:[%s5 + $0x8] sm:$0xff]
      %v1224 = vld [vmem:[%s5 + $0x10] sm:$0xff]
      %v1225 = vld [vmem:[%s5 + $0x18] sm:$0xff]
      %v1226 = vld [vmem:[%s5 + $0x20] sm:$0xff]
      %v1227 = vld [vmem:[%s5 + $0x28] sm:$0xff]
      %v1228 = vld [vmem:[%s5 + $0x30] sm:$0xff]
      %v1229 = vld [vmem:[%s5 + $0x38] sm:$0xff]
      %v1230 = vld [vmem:[%s5 + $0x40] sm:$0xff]
      %v1231 = vld [vmem:[%s5 + $0x48] sm:$0xff]
      %v1232 = vld [vmem:[%s5 + $0x50] sm:$0xff]
      %v1233 = vld [vmem:[%s5 + $0x58] sm:$0xff]
      %v1234 = vld [vmem:[%s5 + $0x60] sm:$0xff]
      %v1235 = vld [vmem:[%s5 + $0x68] sm:$0xff]
      %v1236 = vld [vmem:[%s5 + $0x70] sm:$0xff]
      %v1237 = vld [vmem:[%s5 + $0x78] sm:$0xff]
      %v1238 = vld [vmem:[%s5 + $0x80] sm:$0xff]
      %v1239 = vld [vmem:[%s5 + $0x88] sm:$0xff]
      %v1240 = vld [vmem:[%s5 + $0x90] sm:$0xff]
      %v1241 = vld [vmem:[%s5 + $0x98] sm:$0xff]
      %v1242 = vld [vmem:[%s5 + $0xa0] sm:$0xff]
      %v1243 = vld [vmem:[%s5 + $0xa8] sm:$0xff]
      %v1244 = vld [vmem:[%s5 + $0xb0] sm:$0xff]
      %v1245 = vld [vmem:[%s5 + $0xb8] sm:$0xff]
      %v1246 = vld [vmem:[%s5 + $0xc0] sm:$0xff]
      %v1247 = vld [vmem:[%s5 + $0xc8] sm:$0xff]
      %v1248 = vld [vmem:[%s5 + $0xd0] sm:$0xff]
      %v1249 = vld [vmem:[%s5 + $0xd8] sm:$0xff]
      %v1250 = vld [vmem:[%s5 + $0xe0] sm:$0xff]
      %v1251 = vld [vmem:[%s5 + $0xe8] sm:$0xff]
      %v1252 = vld [vmem:[%s5 + $0xf0] sm:$0xff]
      %v1253 = vld [vmem:[%s5 + $0xf8] sm:$0xff]
      %v1254 = vld [vmem:[%s5 + $0x100] sm:$0xff]
      %v1255 = vld [vmem:[%s5 + $0x108] sm:$0xff]
      %v1256 = vld [vmem:[%s5 + $0x110] sm:$0xff]
      %v1257 = vld [vmem:[%s5 + $0x118] sm:$0xff]
      %v1258 = vld [vmem:[%s5 + $0x120] sm:$0xff]
      %v1259 = vld [vmem:[%s5 + $0x128] sm:$0xff]
      %v1260 = vld [vmem:[%s5 + $0x130] sm:$0xff]
      %v1261 = vld [vmem:[%s5 + $0x138] sm:$0xff]
      %v1262 = vld [vmem:[%s5 + $0x140] sm:$0xff]
      %v1263 = vld [vmem:[%s5 + $0x148] sm:$0xff]
      %v1264 = vld [vmem:[%s5 + $0x150] sm:$0xff]
      %v1265 = vld [vmem:[%s5 + $0x158] sm:$0xff]
      %v1266 = vld [vmem:[%s5 + $0x160] sm:$0xff]
      %v1267 = vld [vmem:[%s5 + $0x168] sm:$0xff]
      %v1268 = vld [vmem:[%s5 + $0x170] sm:$0xff]
      %v1269 = vld [vmem:[%s5 + $0x178] sm:$0xff]
      %v1270 = vld [vmem:[%s5 + $0x180] sm:$0xff]
      %v1271 = vld [vmem:[%s5 + $0x188] sm:$0xff]
      %v1272 = vld [vmem:[%s5 + $0x190] sm:$0xff]
      %v1273 = vld [vmem:[%s5 + $0x198] sm:$0xff]
      %v1274 = vld [vmem:[%s5 + $0x1a0] sm:$0xff]
      %v1275 = vld [vmem:[%s5 + $0x1a8] sm:$0xff]
      %v1276 = vld [vmem:[%s5 + $0x1b0] sm:$0xff]
      %v1277 = vld [vmem:[%s5 + $0x1b8] sm:$0xff]
      %v1278 = vld [vmem:[%s5 + $0x1c0] sm:$0xff]
      %v1279 = vld [vmem:[%s5 + $0x1c8] sm:$0xff]
      %v1280 = vld [vmem:[%s5 + $0x1d0] sm:$0xff]
      %v1281 = vld [vmem:[%s5 + $0x1d8] sm:$0xff]
      %v1282 = vld [vmem:[%s5 + $0x1e0] sm:$0xff]
      %v1283 = vld [vmem:[%s5 + $0x1e8] sm:$0xff]
      %v1284 = vld [vmem:[%s5 + $0x1f0] sm:$0xff]
      %v1285 = vld [vmem:[%s5 + $0x1f8] sm:$0xff]
      %v1286 = vld [vmem:[%s4] sm:$0xf]
      %v1287 = vld [vmem:[%s4 + $0x4] sm:$0xf]
      %v1288 = vld [vmem:[%s4 + $0x8] sm:$0xf]
      %v1289 = vld [vmem:[%s4 + $0xc] sm:$0xf]
      %v1290 = vld [vmem:[%s4 + $0x10] sm:$0xf]
      %v1291 = vld [vmem:[%s4 + $0x14] sm:$0xf]
      %v1292 = vld [vmem:[%s4 + $0x18] sm:$0xf]
      %v1293 = vld [vmem:[%s4 + $0x1c] sm:$0xf]
      %v1294 = vld [vmem:[%s4 + $0x20] sm:$0xf]
      %v1295 = vld [vmem:[%s4 + $0x24] sm:$0xf]
      %v1296 = vld [vmem:[%s4 + $0x28] sm:$0xf]
      %v1297 = vld [vmem:[%s4 + $0x2c] sm:$0xf]
      %v1298 = vld [vmem:[%s4 + $0x30] sm:$0xf]
      %v1299 = vld [vmem:[%s4 + $0x34] sm:$0xf]
      %v1300 = vld [vmem:[%s4 + $0x38] sm:$0xf]
      %v1301 = vld [vmem:[%s4 + $0x3c] sm:$0xf]
      %v1302 = vld [vmem:[%s4 + $0x40] sm:$0xf]
      %v1303 = vld [vmem:[%s4 + $0x44] sm:$0xf]
      %v1304 = vld [vmem:[%s4 + $0x48] sm:$0xf]
      %v1305 = vld [vmem:[%s4 + $0x4c] sm:$0xf]
      %v1306 = vld [vmem:[%s4 + $0x50] sm:$0xf]
      %v1307 = vld [vmem:[%s4 + $0x54] sm:$0xf]
      %v1308 = vld [vmem:[%s4 + $0x58] sm:$0xf]
      %v1309 = vld [vmem:[%s4 + $0x5c] sm:$0xf]
      %v1310 = vld [vmem:[%s4 + $0x60] sm:$0xf]
      %v1311 = vld [vmem:[%s4 + $0x64] sm:$0xf]
      %v1312 = vld [vmem:[%s4 + $0x68] sm:$0xf]
      %v1313 = vld [vmem:[%s4 + $0x6c] sm:$0xf]
      %v1314 = vld [vmem:[%s4 + $0x70] sm:$0xf]
      %v1315 = vld [vmem:[%s4 + $0x74] sm:$0xf]
      %v1316 = vld [vmem:[%s4 + $0x78] sm:$0xf]
      %v1317 = vld [vmem:[%s4 + $0x7c] sm:$0xf]
      %v1318 = vld [vmem:[%s4 + $0x80] sm:$0xf]
      %v1319 = vld [vmem:[%s4 + $0x84] sm:$0xf]
      %v1320 = vld [vmem:[%s4 + $0x88] sm:$0xf]
      %v1321 = vld [vmem:[%s4 + $0x8c] sm:$0xf]
      %v1322 = vld [vmem:[%s4 + $0x90] sm:$0xf]
      %v1323 = vld [vmem:[%s4 + $0x94] sm:$0xf]
      %v1324 = vld [vmem:[%s4 + $0x98] sm:$0xf]
      %v1325 = vld [vmem:[%s4 + $0x9c] sm:$0xf]
      %v1326 = vld [vmem:[%s4 + $0xa0] sm:$0xf]
      %v1327 = vld [vmem:[%s4 + $0xa4] sm:$0xf]
      %v1328 = vld [vmem:[%s4 + $0xa8] sm:$0xf]
      %v1329 = vld [vmem:[%s4 + $0xac] sm:$0xf]
      %v1330 = vld [vmem:[%s4 + $0xb0] sm:$0xf]
      %v1331 = vld [vmem:[%s4 + $0xb4] sm:$0xf]
      %v1332 = vld [vmem:[%s4 + $0xb8] sm:$0xf]
      %v1333 = vld [vmem:[%s4 + $0xbc] sm:$0xf]
      %v1334 = vpack.c.bf16 %v439, %v433
      %v1335 = vpack.c.bf16 %v441, %v435
      %v1336 = vpack.c.bf16 %v528, %v522
      %v1337 = vpack.c.bf16 %v530, %v524
      %v1338 = vpack.c.bf16 %v451, %v445
      %v1339 = vpack.c.bf16 %v453, %v447
      %v1340 = vpack.c.bf16 %v540, %v534
      %v1341 = vpack.c.bf16 %v542, %v536
      %v1358 = vunpack.c.l.b16 %v1190
      %v1359 = vunpack.c.l.b16 %v1191
      %v1360 = vunpack.c.l.b16 %v1192
      %v1361 = vunpack.c.l.b16 %v1193
      %v1362 = vunpack.c.l.b16 %v1194
      %v1363 = vunpack.c.l.b16 %v1195
      %v1364 = vunpack.c.l.b16 %v1196
      %v1365 = vunpack.c.l.b16 %v1197
      %v1366 = vunpack.c.l.b16 %v1198
      %v1367 = vunpack.c.l.b16 %v1199
      %v1368 = vunpack.c.l.b16 %v1200
      %v1369 = vunpack.c.l.b16 %v1201
      %v1370 = vunpack.c.l.b16 %v1202
      %v1371 = vunpack.c.l.b16 %v1203
      %v1372 = vunpack.c.l.b16 %v1204
      %v1373 = vunpack.c.l.b16 %v1205
      %v1374 = vpack.c.b16 %v1359, %v1358
      %v1375 = vpack.c.b16 %v1361, %v1360
      %v1376 = vpack.c.b16 %v1363, %v1362
      %v1377 = vpack.c.b16 %v1365, %v1364
      %v1378 = vpack.c.b16 %v1367, %v1366
      %v1379 = vpack.c.b16 %v1369, %v1368
      %v1380 = vpack.c.b16 %v1371, %v1370
      %v1381 = vpack.c.b16 %v1373, %v1372
      %vm1382 = vcmask 261120
      %v1384 = vsel %vm1382, %v1374, 0
      %v1387 = vsel %vm1382, %v1375, 0
      %v1390 = vsel %vm1382, %v1376, 0
      %v1393 = vsel %vm1382, %v1377, 0
      %v1396 = vsel %vm1382, %v1378, 0
      %v1399 = vsel %vm1382, %v1379, 0
      %v1402 = vsel %vm1382, %v1380, 0
      %v1405 = vsel %vm1382, %v1381, 0
      %1407 = vmatprep.subr.bf16.mxu0 0
      %1408 = vmatpush1.bf16.msra.mxu0 0
      %1409 = vmatprep.subr.bf16.mxu0 0
      %1410 = vmatpush1.bf16.msra.mxu0 0
      %1411 = vmatprep.subr.bf16.mxu0 0
      %1412 = vmatpush1.bf16.msra.mxu0 0
      %1413 = vmatprep.subr.bf16.mxu0 0
      %1414 = vmatpush1.bf16.msra.mxu0 0
      %1415 = vmatprep.subr.bf16.mxu0 0
      %1416 = vmatpush1.bf16.msra.mxu0 0
      %1417 = vmatprep.subr.bf16.mxu0 0
      %1418 = vmatpush1.bf16.msra.mxu0 0
      %1419 = vmatprep.subr.bf16.mxu0 %v1099
      %1420 = vmatpush1.bf16.msra.mxu0 %v1098
      %1421 = vmatprep.subr.bf16.mxu0 %v1095
      %1422 = vmatpush1.bf16.msra.mxu0 %v1094
      %1423 = vmatprep.subr.bf16.mxu0 0
      %1424 = vmatpush2.bf16.msra.mxu0 0
      %1425 = vmatprep.subr.bf16.mxu0 0
      %1426 = vmatpush2.bf16.msra.mxu0 0
      %1427 = vmatprep.subr.bf16.mxu0 0
      %1428 = vmatpush2.bf16.msra.mxu0 0
      %1429 = vmatprep.subr.bf16.mxu0 0
      %1430 = vmatpush2.bf16.msra.mxu0 0
      %1431 = vmatprep.subr.bf16.mxu0 0
      %1432 = vmatpush2.bf16.msra.mxu0 0
      %1433 = vmatprep.subr.bf16.mxu0 0
      %1434 = vmatpush2.bf16.msra.mxu0 0
      %1435 = vmatprep.subr.bf16.mxu0 0
      %1436 = vmatpush2.bf16.msra.mxu0 0
      %1437 = vmatprep.subr.bf16.mxu0 0
      %1438 = vmatpush2.bf16.msra.mxu0 0
      %1439 = vmatprep.mubr.bf16.mxu0 0
      %1440 = vmatmul.mubr.bf16.gmra.mxu0 %v1384
      %v1441 = vpop.f32.mrf.mxu0
      %v1442 = vadd.f32 0.0, %v1441
      %v1443 = vpop.f32.mrf.mxu0
      %v1444 = vadd.f32 0.0, %v1443
      %v1445 = vpop.f32.mrf.mxu0
      %v1446 = vadd.f32 0.0, %v1445
      %v1447 = vpop.f32.mrf.mxu0
      %v1448 = vadd.f32 0.0, %v1447
      %1449 = vmatprep.mubr.bf16.mxu0 0
      %1450 = vmatmul.mubr.bf16.gmra.mxu0 %v1387
      %v1451 = vpop.f32.mrf.mxu0
      %v1452 = vadd.f32 0.0, %v1451
      %v1453 = vpop.f32.mrf.mxu0
      %v1454 = vadd.f32 0.0, %v1453
      %v1455 = vpop.f32.mrf.mxu0
      %v1456 = vadd.f32 0.0, %v1455
      %v1457 = vpop.f32.mrf.mxu0
      %v1458 = vadd.f32 0.0, %v1457
      %1459 = vmatprep.mubr.bf16.mxu0 0
      %1460 = vmatmul.mubr.bf16.gmra.mxu0 %v1390
      %v1461 = vpop.f32.mrf.mxu0
      %v1462 = vadd.f32 0.0, %v1461
      %v1463 = vpop.f32.mrf.mxu0
      %v1464 = vadd.f32 0.0, %v1463
      %v1465 = vpop.f32.mrf.mxu0
      %v1466 = vadd.f32 0.0, %v1465
      %v1467 = vpop.f32.mrf.mxu0
      %v1468 = vadd.f32 0.0, %v1467
      %1469 = vmatprep.mubr.bf16.mxu0 0
      %1470 = vmatmul.mubr.bf16.gmra.mxu0 %v1393
      %v1471 = vpop.f32.mrf.mxu0
      %v1472 = vadd.f32 0.0, %v1471
      %v1473 = vpop.f32.mrf.mxu0
      %v1474 = vadd.f32 0.0, %v1473
      %v1475 = vpop.f32.mrf.mxu0
      %v1476 = vadd.f32 0.0, %v1475
      %v1477 = vpop.f32.mrf.mxu0
      %v1478 = vadd.f32 0.0, %v1477
      %1479 = vmatprep.mubr.bf16.mxu0 0
      %1480 = vmatmul.mubr.bf16.gmra.mxu0 %v1396
      %v1481 = vpop.f32.mrf.mxu0
      %v1482 = vadd.f32 0.0, %v1481
      %v1483 = vpop.f32.mrf.mxu0
      %v1484 = vadd.f32 0.0, %v1483
      %v1485 = vpop.f32.mrf.mxu0
      %v1486 = vadd.f32 0.0, %v1485
      %v1487 = vpop.f32.mrf.mxu0
      %v1488 = vadd.f32 0.0, %v1487
      %1489 = vmatprep.mubr.bf16.mxu0 0
      %1490 = vmatmul.mubr.bf16.gmra.mxu0 %v1399
      %v1491 = vpop.f32.mrf.mxu0
      %v1492 = vadd.f32 0.0, %v1491
      %v1493 = vpop.f32.mrf.mxu0
      %v1494 = vadd.f32 0.0, %v1493
      %v1495 = vpop.f32.mrf.mxu0
      %v1496 = vadd.f32 0.0, %v1495
      %v1497 = vpop.f32.mrf.mxu0
      %v1498 = vadd.f32 0.0, %v1497
      %1499 = vmatprep.mubr.bf16.mxu0 0
      %1500 = vmatmul.mubr.bf16.gmra.mxu0 %v1402
      %v1501 = vpop.f32.mrf.mxu0
      %v1502 = vadd.f32 0.0, %v1501
      %v1503 = vpop.f32.mrf.mxu0
      %v1504 = vadd.f32 0.0, %v1503
      %v1505 = vpop.f32.mrf.mxu0
      %v1506 = vadd.f32 0.0, %v1505
      %v1507 = vpop.f32.mrf.mxu0
      %v1508 = vadd.f32 0.0, %v1507
      %1509 = vmatprep.mubr.bf16.mxu0 0
      %1510 = vmatmul.mubr.bf16.gmra.mxu0 %v1405
      %v1511 = vpop.f32.mrf.mxu0
      %v1512 = vadd.f32 0.0, %v1511
      %v1513 = vpop.f32.mrf.mxu0
      %v1514 = vadd.f32 0.0, %v1513
      %v1515 = vpop.f32.mrf.mxu0
      %v1516 = vadd.f32 0.0, %v1515
      %v1517 = vpop.f32.mrf.mxu0
      %v1518 = vadd.f32 0.0, %v1517
      %1519 = vdwg.mxu0
      %1520 = vmatprep.subr.bf16.mxu0 0
      %1521 = vmatpush1.bf16.msra.mxu0 0
      %1522 = vmatprep.subr.bf16.mxu0 0
      %1523 = vmatpush1.bf16.msra.mxu0 0
      %1524 = vmatprep.subr.bf16.mxu0 0
      %1525 = vmatpush1.bf16.msra.mxu0 0
      %1526 = vmatprep.subr.bf16.mxu0 0
      %1527 = vmatpush1.bf16.msra.mxu0 0
      %1528 = vmatprep.subr.bf16.mxu0 0
      %1529 = vmatpush1.bf16.msra.mxu0 0
      %1530 = vmatprep.subr.bf16.mxu0 0
      %1531 = vmatpush1.bf16.msra.mxu0 0
      %1532 = vmatprep.subr.bf16.mxu0 %v1101
      %1533 = vmatpush1.bf16.msra.mxu0 %v1100
      %1534 = vmatprep.subr.bf16.mxu0 %v1097
      %1535 = vmatpush1.bf16.msra.mxu0 %v1096
      %1536 = vmatprep.subr.bf16.mxu0 0
      %1537 = vmatpush2.bf16.msra.mxu0 0
      %1538 = vmatprep.subr.bf16.mxu0 0
      %1539 = vmatpush2.bf16.msra.mxu0 0
      %1540 = vmatprep.subr.bf16.mxu0 0
      %1541 = vmatpush2.bf16.msra.mxu0 0
      %1542 = vmatprep.subr.bf16.mxu0 0
      %1543 = vmatpush2.bf16.msra.mxu0 0
      %1544 = vmatprep.subr.bf16.mxu0 0
      %1545 = vmatpush2.bf16.msra.mxu0 0
      %1546 = vmatprep.subr.bf16.mxu0 0
      %1547 = vmatpush2.bf16.msra.mxu0 0
      %1548 = vmatprep.subr.bf16.mxu0 0
      %1549 = vmatpush2.bf16.msra.mxu0 0
      %1550 = vmatprep.subr.bf16.mxu0 0
      %1551 = vmatpush2.bf16.msra.mxu0 0
      %1552 = vmatprep.mubr.bf16.mxu0 0
      %1553 = vmatmul.mubr.bf16.gmra.mxu0 %v1384
      %v1554 = vpop.f32.mrf.mxu0
      %v1555 = vadd.f32 0.0, %v1554
      %v1556 = vpop.f32.mrf.mxu0
      %v1557 = vadd.f32 0.0, %v1556
      %v1558 = vpop.f32.mrf.mxu0
      %v1559 = vadd.f32 0.0, %v1558
      %v1560 = vpop.f32.mrf.mxu0
      %v1561 = vadd.f32 0.0, %v1560
      %1562 = vmatprep.mubr.bf16.mxu0 0
      %1563 = vmatmul.mubr.bf16.gmra.mxu0 %v1387
      %v1564 = vpop.f32.mrf.mxu0
      %v1565 = vadd.f32 0.0, %v1564
      %v1566 = vpop.f32.mrf.mxu0
      %v1567 = vadd.f32 0.0, %v1566
      %v1568 = vpop.f32.mrf.mxu0
      %v1569 = vadd.f32 0.0, %v1568
      %v1570 = vpop.f32.mrf.mxu0
      %v1571 = vadd.f32 0.0, %v1570
      %1572 = vmatprep.mubr.bf16.mxu0 0
      %1573 = vmatmul.mubr.bf16.gmra.mxu0 %v1390
      %v1574 = vpop.f32.mrf.mxu0
      %v1575 = vadd.f32 0.0, %v1574
      %v1576 = vpop.f32.mrf.mxu0
      %v1577 = vadd.f32 0.0, %v1576
      %v1578 = vpop.f32.mrf.mxu0
      %v1579 = vadd.f32 0.0, %v1578
      %v1580 = vpop.f32.mrf.mxu0
      %v1581 = vadd.f32 0.0, %v1580
      %1582 = vmatprep.mubr.bf16.mxu0 0
      %1583 = vmatmul.mubr.bf16.gmra.mxu0 %v1393
      %v1584 = vpop.f32.mrf.mxu0
      %v1585 = vadd.f32 0.0, %v1584
      %v1586 = vpop.f32.mrf.mxu0
      %v1587 = vadd.f32 0.0, %v1586
      %v1588 = vpop.f32.mrf.mxu0
      %v1589 = vadd.f32 0.0, %v1588
      %v1590 = vpop.f32.mrf.mxu0
      %v1591 = vadd.f32 0.0, %v1590
      %1592 = vmatprep.mubr.bf16.mxu0 0
      %1593 = vmatmul.mubr.bf16.gmra.mxu0 %v1396
      %v1594 = vpop.f32.mrf.mxu0
      %v1595 = vadd.f32 0.0, %v1594
      %v1596 = vpop.f32.mrf.mxu0
      %v1597 = vadd.f32 0.0, %v1596
      %v1598 = vpop.f32.mrf.mxu0
      %v1599 = vadd.f32 0.0, %v1598
      %v1600 = vpop.f32.mrf.mxu0
      %v1601 = vadd.f32 0.0, %v1600
      %1602 = vmatprep.mubr.bf16.mxu0 0
      %1603 = vmatmul.mubr.bf16.gmra.mxu0 %v1399
      %v1604 = vpop.f32.mrf.mxu0
      %v1605 = vadd.f32 0.0, %v1604
      %v1606 = vpop.f32.mrf.mxu0
      %v1607 = vadd.f32 0.0, %v1606
      %v1608 = vpop.f32.mrf.mxu0
      %v1609 = vadd.f32 0.0, %v1608
      %v1610 = vpop.f32.mrf.mxu0
      %v1611 = vadd.f32 0.0, %v1610
      %1612 = vmatprep.mubr.bf16.mxu0 0
      %1613 = vmatmul.mubr.bf16.gmra.mxu0 %v1402
      %v1614 = vpop.f32.mrf.mxu0
      %v1615 = vadd.f32 0.0, %v1614
      %v1616 = vpop.f32.mrf.mxu0
      %v1617 = vadd.f32 0.0, %v1616
      %v1618 = vpop.f32.mrf.mxu0
      %v1619 = vadd.f32 0.0, %v1618
      %v1620 = vpop.f32.mrf.mxu0
      %v1621 = vadd.f32 0.0, %v1620
      %1622 = vmatprep.mubr.bf16.mxu0 0
      %1623 = vmatmul.mubr.bf16.gmra.mxu0 %v1405
      %v1624 = vpop.f32.mrf.mxu0
      %v1625 = vadd.f32 0.0, %v1624
      %v1626 = vpop.f32.mrf.mxu0
      %v1627 = vadd.f32 0.0, %v1626
      %v1628 = vpop.f32.mrf.mxu0
      %v1629 = vadd.f32 0.0, %v1628
      %v1630 = vpop.f32.mrf.mxu0
      %v1631 = vadd.f32 0.0, %v1630
      %1632 = vdwg.mxu0
      %v1649 = vunpack.c.l.b16 %v1174
      %v1650 = vunpack.c.l.b16 %v1175
      %v1651 = vunpack.c.l.b16 %v1176
      %v1652 = vunpack.c.l.b16 %v1177
      %v1653 = vunpack.c.l.b16 %v1178
      %v1654 = vunpack.c.l.b16 %v1179
      %v1655 = vunpack.c.l.b16 %v1180
      %v1656 = vunpack.c.l.b16 %v1181
      %v1657 = vunpack.c.l.b16 %v1182
      %v1658 = vunpack.c.l.b16 %v1183
      %v1659 = vunpack.c.l.b16 %v1184
      %v1660 = vunpack.c.l.b16 %v1185
      %v1661 = vunpack.c.l.b16 %v1186
      %v1662 = vunpack.c.l.b16 %v1187
      %v1663 = vunpack.c.l.b16 %v1188
      %v1664 = vunpack.c.l.b16 %v1189
      %v1665 = vpack.c.b16 %v1650, %v1649
      %v1666 = vpack.c.b16 %v1652, %v1651
      %v1667 = vpack.c.b16 %v1654, %v1653
      %v1668 = vpack.c.b16 %v1656, %v1655
      %v1669 = vpack.c.b16 %v1658, %v1657
      %v1670 = vpack.c.b16 %v1660, %v1659
      %v1671 = vpack.c.b16 %v1662, %v1661
      %v1672 = vpack.c.b16 %v1664, %v1663
      %v1674 = vsel %vm1382, %v1665, 0
      %v1677 = vsel %vm1382, %v1666, 0
      %v1680 = vsel %vm1382, %v1667, 0
      %v1683 = vsel %vm1382, %v1668, 0
      %v1686 = vsel %vm1382, %v1669, 0
      %v1689 = vsel %vm1382, %v1670, 0
      %v1692 = vsel %vm1382, %v1671, 0
      %v1695 = vsel %vm1382, %v1672, 0
      %1697 = vmatprep.subr.bf16.mxu0 0
      %1698 = vmatpush1.bf16.msra.mxu0 0
      %1699 = vmatprep.subr.bf16.mxu0 0
      %1700 = vmatpush1.bf16.msra.mxu0 0
      %1701 = vmatprep.subr.bf16.mxu0 0
      %1702 = vmatpush1.bf16.msra.mxu0 0
      %1703 = vmatprep.subr.bf16.mxu0 0
      %1704 = vmatpush1.bf16.msra.mxu0 0
      %1705 = vmatprep.subr.bf16.mxu0 0
      %1706 = vmatpush1.bf16.msra.mxu0 0
      %1707 = vmatprep.subr.bf16.mxu0 0
      %1708 = vmatpush1.bf16.msra.mxu0 0
      %1709 = vmatprep.subr.bf16.mxu0 %v1339
      %1710 = vmatpush1.bf16.msra.mxu0 %v1338
      %1711 = vmatprep.subr.bf16.mxu0 %v1335
      %1712 = vmatpush1.bf16.msra.mxu0 %v1334
      %1713 = vmatprep.subr.bf16.mxu0 0
      %1714 = vmatpush2.bf16.msra.mxu0 0
      %1715 = vmatprep.subr.bf16.mxu0 0
      %1716 = vmatpush2.bf16.msra.mxu0 0
      %1717 = vmatprep.subr.bf16.mxu0 0
      %1718 = vmatpush2.bf16.msra.mxu0 0
      %1719 = vmatprep.subr.bf16.mxu0 0
      %1720 = vmatpush2.bf16.msra.mxu0 0
      %1721 = vmatprep.subr.bf16.mxu0 0
      %1722 = vmatpush2.bf16.msra.mxu0 0
      %1723 = vmatprep.subr.bf16.mxu0 0
      %1724 = vmatpush2.bf16.msra.mxu0 0
      %1725 = vmatprep.subr.bf16.mxu0 0
      %1726 = vmatpush2.bf16.msra.mxu0 0
      %1727 = vmatprep.subr.bf16.mxu0 0
      %1728 = vmatpush2.bf16.msra.mxu0 0
      %1729 = vmatprep.mubr.bf16.mxu0 0
      %1730 = vmatmul.mubr.bf16.gmra.mxu0 %v1674
      %v1731 = vpop.f32.mrf.mxu0
      %v1732 = vadd.f32 %v1442, %v1731
      %v1733 = vpop.f32.mrf.mxu0
      %v1734 = vadd.f32 %v1444, %v1733
      %v1735 = vpop.f32.mrf.mxu0
      %v1736 = vadd.f32 %v1446, %v1735
      %v1737 = vpop.f32.mrf.mxu0
      %v1738 = vadd.f32 %v1448, %v1737
      %1739 = vmatprep.mubr.bf16.mxu0 0
      %1740 = vmatmul.mubr.bf16.gmra.mxu0 %v1677
      %v1741 = vpop.f32.mrf.mxu0
      %v1742 = vadd.f32 %v1452, %v1741
      %v1743 = vpop.f32.mrf.mxu0
      %v1744 = vadd.f32 %v1454, %v1743
      %v1745 = vpop.f32.mrf.mxu0
      %v1746 = vadd.f32 %v1456, %v1745
      %v1747 = vpop.f32.mrf.mxu0
      %v1748 = vadd.f32 %v1458, %v1747
      %1749 = vmatprep.mubr.bf16.mxu0 0
      %1750 = vmatmul.mubr.bf16.gmra.mxu0 %v1680
      %v1751 = vpop.f32.mrf.mxu0
      %v1752 = vadd.f32 %v1462, %v1751
      %v1753 = vpop.f32.mrf.mxu0
      %v1754 = vadd.f32 %v1464, %v1753
      %v1755 = vpop.f32.mrf.mxu0
      %v1756 = vadd.f32 %v1466, %v1755
      %v1757 = vpop.f32.mrf.mxu0
      %v1758 = vadd.f32 %v1468, %v1757
      %1759 = vmatprep.mubr.bf16.mxu0 0
      %1760 = vmatmul.mubr.bf16.gmra.mxu0 %v1683
      %v1761 = vpop.f32.mrf.mxu0
      %v1762 = vadd.f32 %v1472, %v1761
      %v1763 = vpop.f32.mrf.mxu0
      %v1764 = vadd.f32 %v1474, %v1763
      %v1765 = vpop.f32.mrf.mxu0
      %v1766 = vadd.f32 %v1476, %v1765
      %v1767 = vpop.f32.mrf.mxu0
      %v1768 = vadd.f32 %v1478, %v1767
      %1769 = vmatprep.mubr.bf16.mxu0 0
      %1770 = vmatmul.mubr.bf16.gmra.mxu0 %v1686
      %v1771 = vpop.f32.mrf.mxu0
      %v1772 = vadd.f32 %v1482, %v1771
      %v1773 = vpop.f32.mrf.mxu0
      %v1774 = vadd.f32 %v1484, %v1773
      %v1775 = vpop.f32.mrf.mxu0
      %v1776 = vadd.f32 %v1486, %v1775
      %v1777 = vpop.f32.mrf.mxu0
      %v1778 = vadd.f32 %v1488, %v1777
      %1779 = vmatprep.mubr.bf16.mxu0 0
      %1780 = vmatmul.mubr.bf16.gmra.mxu0 %v1689
      %v1781 = vpop.f32.mrf.mxu0
      %v1782 = vadd.f32 %v1492, %v1781
      %v1783 = vpop.f32.mrf.mxu0
      %v1784 = vadd.f32 %v1494, %v1783
      %v1785 = vpop.f32.mrf.mxu0
      %v1786 = vadd.f32 %v1496, %v1785
      %v1787 = vpop.f32.mrf.mxu0
      %v1788 = vadd.f32 %v1498, %v1787
      %1789 = vmatprep.mubr.bf16.mxu0 0
      %1790 = vmatmul.mubr.bf16.gmra.mxu0 %v1692
      %v1791 = vpop.f32.mrf.mxu0
      %v1792 = vadd.f32 %v1502, %v1791
      %v1793 = vpop.f32.mrf.mxu0
      %v1794 = vadd.f32 %v1504, %v1793
      %v1795 = vpop.f32.mrf.mxu0
      %v1796 = vadd.f32 %v1506, %v1795
      %v1797 = vpop.f32.mrf.mxu0
      %v1798 = vadd.f32 %v1508, %v1797
      %1799 = vmatprep.mubr.bf16.mxu0 0
      %1800 = vmatmul.mubr.bf16.gmra.mxu0 %v1695
      %v1801 = vpop.f32.mrf.mxu0
      %v1802 = vadd.f32 %v1512, %v1801
      %v1803 = vpop.f32.mrf.mxu0
      %v1804 = vadd.f32 %v1514, %v1803
      %v1805 = vpop.f32.mrf.mxu0
      %v1806 = vadd.f32 %v1516, %v1805
      %v1807 = vpop.f32.mrf.mxu0
      %v1808 = vadd.f32 %v1518, %v1807
      %1809 = vdwg.mxu0
      %1810 = vmatprep.subr.bf16.mxu0 0
      %1811 = vmatpush1.bf16.msra.mxu0 0
      %1812 = vmatprep.subr.bf16.mxu0 0
      %1813 = vmatpush1.bf16.msra.mxu0 0
      %1814 = vmatprep.subr.bf16.mxu0 0
      %1815 = vmatpush1.bf16.msra.mxu0 0
      %1816 = vmatprep.subr.bf16.mxu0 0
      %1817 = vmatpush1.bf16.msra.mxu0 0
      %1818 = vmatprep.subr.bf16.mxu0 0
      %1819 = vmatpush1.bf16.msra.mxu0 0
      %1820 = vmatprep.subr.bf16.mxu0 0
      %1821 = vmatpush1.bf16.msra.mxu0 0
      %1822 = vmatprep.subr.bf16.mxu0 %v1341
      %1823 = vmatpush1.bf16.msra.mxu0 %v1340
      %1824 = vmatprep.subr.bf16.mxu0 %v1337
      %1825 = vmatpush1.bf16.msra.mxu0 %v1336
      %1826 = vmatprep.subr.bf16.mxu0 0
      %1827 = vmatpush2.bf16.msra.mxu0 0
      %1828 = vmatprep.subr.bf16.mxu0 0
      %1829 = vmatpush2.bf16.msra.mxu0 0
      %1830 = vmatprep.subr.bf16.mxu0 0
      %1831 = vmatpush2.bf16.msra.mxu0 0
      %1832 = vmatprep.subr.bf16.mxu0 0
      %1833 = vmatpush2.bf16.msra.mxu0 0
      %1834 = vmatprep.subr.bf16.mxu0 0
      %1835 = vmatpush2.bf16.msra.mxu0 0
      %1836 = vmatprep.subr.bf16.mxu0 0
      %1837 = vmatpush2.bf16.msra.mxu0 0
      %1838 = vmatprep.subr.bf16.mxu0 0
      %1839 = vmatpush2.bf16.msra.mxu0 0
      %1840 = vmatprep.subr.bf16.mxu0 0
      %1841 = vmatpush2.bf16.msra.mxu0 0
      %1842 = vmatprep.mubr.bf16.mxu0 0
      %1843 = vmatmul.mubr.bf16.gmra.mxu0 %v1674
      %v1844 = vpop.f32.mrf.mxu0
      %v1845 = vadd.f32 %v1555, %v1844
      %v1846 = vpop.f32.mrf.mxu0
      %v1847 = vadd.f32 %v1557, %v1846
      %v1848 = vpop.f32.mrf.mxu0
      %v1849 = vadd.f32 %v1559, %v1848
      %v1850 = vpop.f32.mrf.mxu0
      %v1851 = vadd.f32 %v1561, %v1850
      %1852 = vmatprep.mubr.bf16.mxu0 0
      %1853 = vmatmul.mubr.bf16.gmra.mxu0 %v1677
      %v1854 = vpop.f32.mrf.mxu0
      %v1855 = vadd.f32 %v1565, %v1854
      %v1856 = vpop.f32.mrf.mxu0
      %v1857 = vadd.f32 %v1567, %v1856
      %v1858 = vpop.f32.mrf.mxu0
      %v1859 = vadd.f32 %v1569, %v1858
      %v1860 = vpop.f32.mrf.mxu0
      %v1861 = vadd.f32 %v1571, %v1860
      %1862 = vmatprep.mubr.bf16.mxu0 0
      %1863 = vmatmul.mubr.bf16.gmra.mxu0 %v1680
      %v1864 = vpop.f32.mrf.mxu0
      %v1865 = vadd.f32 %v1575, %v1864
      %v1866 = vpop.f32.mrf.mxu0
      %v1867 = vadd.f32 %v1577, %v1866
      %v1868 = vpop.f32.mrf.mxu0
      %v1869 = vadd.f32 %v1579, %v1868
      %v1870 = vpop.f32.mrf.mxu0
      %v1871 = vadd.f32 %v1581, %v1870
      %1872 = vmatprep.mubr.bf16.mxu0 0
      %1873 = vmatmul.mubr.bf16.gmra.mxu0 %v1683
      %v1874 = vpop.f32.mrf.mxu0
      %v1875 = vadd.f32 %v1585, %v1874
      %v1876 = vpop.f32.mrf.mxu0
      %v1877 = vadd.f32 %v1587, %v1876
      %v1878 = vpop.f32.mrf.mxu0
      %v1879 = vadd.f32 %v1589, %v1878
      %v1880 = vpop.f32.mrf.mxu0
      %v1881 = vadd.f32 %v1591, %v1880
      %1882 = vmatprep.mubr.bf16.mxu0 0
      %1883 = vmatmul.mubr.bf16.gmra.mxu0 %v1686
      %v1884 = vpop.f32.mrf.mxu0
      %v1885 = vadd.f32 %v1595, %v1884
      %v1886 = vpop.f32.mrf.mxu0
      %v1887 = vadd.f32 %v1597, %v1886
      %v1888 = vpop.f32.mrf.mxu0
      %v1889 = vadd.f32 %v1599, %v1888
      %v1890 = vpop.f32.mrf.mxu0
      %v1891 = vadd.f32 %v1601, %v1890
      %1892 = vmatprep.mubr.bf16.mxu0 0
      %1893 = vmatmul.mubr.bf16.gmra.mxu0 %v1689
      %v1894 = vpop.f32.mrf.mxu0
      %v1895 = vadd.f32 %v1605, %v1894
      %v1896 = vpop.f32.mrf.mxu0
      %v1897 = vadd.f32 %v1607, %v1896
      %v1898 = vpop.f32.mrf.mxu0
      %v1899 = vadd.f32 %v1609, %v1898
      %v1900 = vpop.f32.mrf.mxu0
      %v1901 = vadd.f32 %v1611, %v1900
      %1902 = vmatprep.mubr.bf16.mxu0 0
      %1903 = vmatmul.mubr.bf16.gmra.mxu0 %v1692
      %v1904 = vpop.f32.mrf.mxu0
      %v1905 = vadd.f32 %v1615, %v1904
      %v1906 = vpop.f32.mrf.mxu0
      %v1907 = vadd.f32 %v1617, %v1906
      %v1908 = vpop.f32.mrf.mxu0
      %v1909 = vadd.f32 %v1619, %v1908
      %v1910 = vpop.f32.mrf.mxu0
      %v1911 = vadd.f32 %v1621, %v1910
      %1912 = vmatprep.mubr.bf16.mxu0 0
      %1913 = vmatmul.mubr.bf16.gmra.mxu0 %v1695
      %v1914 = vpop.f32.mrf.mxu0
      %v1915 = vadd.f32 %v1625, %v1914
      %v1916 = vpop.f32.mrf.mxu0
      %v1917 = vadd.f32 %v1627, %v1916
      %v1918 = vpop.f32.mrf.mxu0
      %v1919 = vadd.f32 %v1629, %v1918
      %v1920 = vpop.f32.mrf.mxu0
      %v1921 = vadd.f32 %v1631, %v1920
      %1922 = vdwg.mxu0
      %v1939 = vunpack.c.l.b16 %v1206
      %v1940 = vunpack.c.l.b16 %v1207
      %v1941 = vunpack.c.l.b16 %v1208
      %v1942 = vunpack.c.l.b16 %v1209
      %v1943 = vunpack.c.l.b16 %v1210
      %v1944 = vunpack.c.l.b16 %v1211
      %v1945 = vunpack.c.l.b16 %v1212
      %v1946 = vunpack.c.l.b16 %v1213
      %v1947 = vunpack.c.l.b16 %v1214
      %v1948 = vunpack.c.l.b16 %v1215
      %v1949 = vunpack.c.l.b16 %v1216
      %v1950 = vunpack.c.l.b16 %v1217
      %v1951 = vunpack.c.l.b16 %v1218
      %v1952 = vunpack.c.l.b16 %v1219
      %v1953 = vunpack.c.l.b16 %v1220
      %v1954 = vunpack.c.l.b16 %v1221
      %v1955 = vpack.c.b16 %v1940, %v1939
      %v1956 = vpack.c.b16 %v1942, %v1941
      %v1957 = vpack.c.b16 %v1944, %v1943
      %v1958 = vpack.c.b16 %v1946, %v1945
      %v1959 = vpack.c.b16 %v1948, %v1947
      %v1960 = vpack.c.b16 %v1950, %v1949
      %v1961 = vpack.c.b16 %v1952, %v1951
      %v1962 = vpack.c.b16 %v1954, %v1953
      %v1964 = vsel %vm1382, %v1955, 0
      %v1967 = vsel %vm1382, %v1956, 0
      %v1970 = vsel %vm1382, %v1957, 0
      %v1973 = vsel %vm1382, %v1958, 0
      %v1976 = vsel %vm1382, %v1959, 0
      %v1979 = vsel %vm1382, %v1960, 0
      %v1982 = vsel %vm1382, %v1961, 0
      %v1985 = vsel %vm1382, %v1962, 0
      %1987 = vmatprep.subr.bf16.mxu0 0
      %1988 = vmatpush1.bf16.msra.mxu0 0
      %1989 = vmatprep.subr.bf16.mxu0 0
      %1990 = vmatpush1.bf16.msra.mxu0 0
      %1991 = vmatprep.subr.bf16.mxu0 0
      %1992 = vmatpush1.bf16.msra.mxu0 0
      %1993 = vmatprep.subr.bf16.mxu0 0
      %1994 = vmatpush1.bf16.msra.mxu0 0
      %1995 = vmatprep.subr.bf16.mxu0 0
      %1996 = vmatpush1.bf16.msra.mxu0 0
      %1997 = vmatprep.subr.bf16.mxu0 0
      %1998 = vmatpush1.bf16.msra.mxu0 0
      %1999 = vmatprep.subr.bf16.mxu0 %v1171
      %2000 = vmatpush1.bf16.msra.mxu0 %v1170
      %2001 = vmatprep.subr.bf16.mxu0 %v1167
      %2002 = vmatpush1.bf16.msra.mxu0 %v1166
      %2003 = vmatprep.subr.bf16.mxu0 0
      %2004 = vmatpush2.bf16.msra.mxu0 0
      %2005 = vmatprep.subr.bf16.mxu0 0
      %2006 = vmatpush2.bf16.msra.mxu0 0
      %2007 = vmatprep.subr.bf16.mxu0 0
      %2008 = vmatpush2.bf16.msra.mxu0 0
      %2009 = vmatprep.subr.bf16.mxu0 0
      %2010 = vmatpush2.bf16.msra.mxu0 0
      %2011 = vmatprep.subr.bf16.mxu0 0
      %2012 = vmatpush2.bf16.msra.mxu0 0
      %2013 = vmatprep.subr.bf16.mxu0 0
      %2014 = vmatpush2.bf16.msra.mxu0 0
      %2015 = vmatprep.subr.bf16.mxu0 0
      %2016 = vmatpush2.bf16.msra.mxu0 0
      %2017 = vmatprep.subr.bf16.mxu0 0
      %2018 = vmatpush2.bf16.msra.mxu0 0
      %2019 = vmatprep.mubr.bf16.mxu0 0
      %2020 = vmatmul.mubr.bf16.gmra.mxu0 %v1964
      %v2021 = vpop.f32.mrf.mxu0
      %v2022 = vadd.f32 0.0, %v2021
      %v2023 = vpop.f32.mrf.mxu0
      %v2024 = vadd.f32 0.0, %v2023
      %v2025 = vpop.f32.mrf.mxu0
      %v2026 = vadd.f32 0.0, %v2025
      %v2027 = vpop.f32.mrf.mxu0
      %v2028 = vadd.f32 0.0, %v2027
      %2029 = vmatprep.mubr.bf16.mxu0 0
      %2030 = vmatmul.mubr.bf16.gmra.mxu0 %v1967
      %v2031 = vpop.f32.mrf.mxu0
      %v2032 = vadd.f32 0.0, %v2031
      %v2033 = vpop.f32.mrf.mxu0
      %v2034 = vadd.f32 0.0, %v2033
      %v2035 = vpop.f32.mrf.mxu0
      %v2036 = vadd.f32 0.0, %v2035
      %v2037 = vpop.f32.mrf.mxu0
      %v2038 = vadd.f32 0.0, %v2037
      %2039 = vmatprep.mubr.bf16.mxu0 0
      %2040 = vmatmul.mubr.bf16.gmra.mxu0 %v1970
      %v2041 = vpop.f32.mrf.mxu0
      %v2042 = vadd.f32 0.0, %v2041
      %v2043 = vpop.f32.mrf.mxu0
      %v2044 = vadd.f32 0.0, %v2043
      %v2045 = vpop.f32.mrf.mxu0
      %v2046 = vadd.f32 0.0, %v2045
      %v2047 = vpop.f32.mrf.mxu0
      %v2048 = vadd.f32 0.0, %v2047
      %2049 = vmatprep.mubr.bf16.mxu0 0
      %2050 = vmatmul.mubr.bf16.gmra.mxu0 %v1973
      %v2051 = vpop.f32.mrf.mxu0
      %v2052 = vadd.f32 0.0, %v2051
      %v2053 = vpop.f32.mrf.mxu0
      %v2054 = vadd.f32 0.0, %v2053
      %v2055 = vpop.f32.mrf.mxu0
      %v2056 = vadd.f32 0.0, %v2055
      %v2057 = vpop.f32.mrf.mxu0
      %v2058 = vadd.f32 0.0, %v2057
      %2059 = vmatprep.mubr.bf16.mxu0 0
      %2060 = vmatmul.mubr.bf16.gmra.mxu0 %v1976
      %v2061 = vpop.f32.mrf.mxu0
      %v2062 = vadd.f32 0.0, %v2061
      %v2063 = vpop.f32.mrf.mxu0
      %v2064 = vadd.f32 0.0, %v2063
      %v2065 = vpop.f32.mrf.mxu0
      %v2066 = vadd.f32 0.0, %v2065
      %v2067 = vpop.f32.mrf.mxu0
      %v2068 = vadd.f32 0.0, %v2067
      %2069 = vmatprep.mubr.bf16.mxu0 0
      %2070 = vmatmul.mubr.bf16.gmra.mxu0 %v1979
      %v2071 = vpop.f32.mrf.mxu0
      %v2072 = vadd.f32 0.0, %v2071
      %v2073 = vpop.f32.mrf.mxu0
      %v2074 = vadd.f32 0.0, %v2073
      %v2075 = vpop.f32.mrf.mxu0
      %v2076 = vadd.f32 0.0, %v2075
      %v2077 = vpop.f32.mrf.mxu0
      %v2078 = vadd.f32 0.0, %v2077
      %2079 = vmatprep.mubr.bf16.mxu0 0
      %2080 = vmatmul.mubr.bf16.gmra.mxu0 %v1982
      %v2081 = vpop.f32.mrf.mxu0
      %v2082 = vadd.f32 0.0, %v2081
      %v2083 = vpop.f32.mrf.mxu0
      %v2084 = vadd.f32 0.0, %v2083
      %v2085 = vpop.f32.mrf.mxu0
      %v2086 = vadd.f32 0.0, %v2085
      %v2087 = vpop.f32.mrf.mxu0
      %v2088 = vadd.f32 0.0, %v2087
      %2089 = vmatprep.mubr.bf16.mxu0 0
      %2090 = vmatmul.mubr.bf16.gmra.mxu0 %v1985
      %v2091 = vpop.f32.mrf.mxu0
      %v2092 = vadd.f32 0.0, %v2091
      %v2093 = vpop.f32.mrf.mxu0
      %v2094 = vadd.f32 0.0, %v2093
      %v2095 = vpop.f32.mrf.mxu0
      %v2096 = vadd.f32 0.0, %v2095
      %v2097 = vpop.f32.mrf.mxu0
      %v2098 = vadd.f32 0.0, %v2097
      %2099 = vdwg.mxu0
      %2100 = vmatprep.subr.bf16.mxu0 0
      %2101 = vmatpush1.bf16.msra.mxu0 0
      %2102 = vmatprep.subr.bf16.mxu0 0
      %2103 = vmatpush1.bf16.msra.mxu0 0
      %2104 = vmatprep.subr.bf16.mxu0 0
      %2105 = vmatpush1.bf16.msra.mxu0 0
      %2106 = vmatprep.subr.bf16.mxu0 0
      %2107 = vmatpush1.bf16.msra.mxu0 0
      %2108 = vmatprep.subr.bf16.mxu0 0
      %2109 = vmatpush1.bf16.msra.mxu0 0
      %2110 = vmatprep.subr.bf16.mxu0 0
      %2111 = vmatpush1.bf16.msra.mxu0 0
      %2112 = vmatprep.subr.bf16.mxu0 %v1173
      %2113 = vmatpush1.bf16.msra.mxu0 %v1172
      %2114 = vmatprep.subr.bf16.mxu0 %v1169
      %2115 = vmatpush1.bf16.msra.mxu0 %v1168
      %2116 = vmatprep.subr.bf16.mxu0 0
      %2117 = vmatpush2.bf16.msra.mxu0 0
      %2118 = vmatprep.subr.bf16.mxu0 0
      %2119 = vmatpush2.bf16.msra.mxu0 0
      %2120 = vmatprep.subr.bf16.mxu0 0
      %2121 = vmatpush2.bf16.msra.mxu0 0
      %2122 = vmatprep.subr.bf16.mxu0 0
      %2123 = vmatpush2.bf16.msra.mxu0 0
      %2124 = vmatprep.subr.bf16.mxu0 0
      %2125 = vmatpush2.bf16.msra.mxu0 0
      %2126 = vmatprep.subr.bf16.mxu0 0
      %2127 = vmatpush2.bf16.msra.mxu0 0
      %2128 = vmatprep.subr.bf16.mxu0 0
      %2129 = vmatpush2.bf16.msra.mxu0 0
      %2130 = vmatprep.subr.bf16.mxu0 0
      %2131 = vmatpush2.bf16.msra.mxu0 0
      %2132 = vmatprep.mubr.bf16.mxu0 0
      %2133 = vmatmul.mubr.bf16.gmra.mxu0 %v1964
      %v2134 = vpop.f32.mrf.mxu0
      %v2135 = vadd.f32 0.0, %v2134
      %v2136 = vpop.f32.mrf.mxu0
      %v2137 = vadd.f32 0.0, %v2136
      %v2138 = vpop.f32.mrf.mxu0
      %v2139 = vadd.f32 0.0, %v2138
      %v2140 = vpop.f32.mrf.mxu0
      %v2141 = vadd.f32 0.0, %v2140
      %2142 = vmatprep.mubr.bf16.mxu0 0
      %2143 = vmatmul.mubr.bf16.gmra.mxu0 %v1967
      %v2144 = vpop.f32.mrf.mxu0
      %v2145 = vadd.f32 0.0, %v2144
      %v2146 = vpop.f32.mrf.mxu0
      %v2147 = vadd.f32 0.0, %v2146
      %v2148 = vpop.f32.mrf.mxu0
      %v2149 = vadd.f32 0.0, %v2148
      %v2150 = vpop.f32.mrf.mxu0
      %v2151 = vadd.f32 0.0, %v2150
      %2152 = vmatprep.mubr.bf16.mxu0 0
      %2153 = vmatmul.mubr.bf16.gmra.mxu0 %v1970
      %v2154 = vpop.f32.mrf.mxu0
      %v2155 = vadd.f32 0.0, %v2154
      %v2156 = vpop.f32.mrf.mxu0
      %v2157 = vadd.f32 0.0, %v2156
      %v2158 = vpop.f32.mrf.mxu0
      %v2159 = vadd.f32 0.0, %v2158
      %v2160 = vpop.f32.mrf.mxu0
      %v2161 = vadd.f32 0.0, %v2160
      %2162 = vmatprep.mubr.bf16.mxu0 0
      %2163 = vmatmul.mubr.bf16.gmra.mxu0 %v1973
      %v2164 = vpop.f32.mrf.mxu0
      %v2165 = vadd.f32 0.0, %v2164
      %v2166 = vpop.f32.mrf.mxu0
      %v2167 = vadd.f32 0.0, %v2166
      %v2168 = vpop.f32.mrf.mxu0
      %v2169 = vadd.f32 0.0, %v2168
      %v2170 = vpop.f32.mrf.mxu0
      %v2171 = vadd.f32 0.0, %v2170
      %2172 = vmatprep.mubr.bf16.mxu0 0
      %2173 = vmatmul.mubr.bf16.gmra.mxu0 %v1976
      %v2174 = vpop.f32.mrf.mxu0
      %v2175 = vadd.f32 0.0, %v2174
      %v2176 = vpop.f32.mrf.mxu0
      %v2177 = vadd.f32 0.0, %v2176
      %v2178 = vpop.f32.mrf.mxu0
      %v2179 = vadd.f32 0.0, %v2178
      %v2180 = vpop.f32.mrf.mxu0
      %v2181 = vadd.f32 0.0, %v2180
      %2182 = vmatprep.mubr.bf16.mxu0 0
      %2183 = vmatmul.mubr.bf16.gmra.mxu0 %v1979
      %v2184 = vpop.f32.mrf.mxu0
      %v2185 = vadd.f32 0.0, %v2184
      %v2186 = vpop.f32.mrf.mxu0
      %v2187 = vadd.f32 0.0, %v2186
      %v2188 = vpop.f32.mrf.mxu0
      %v2189 = vadd.f32 0.0, %v2188
      %v2190 = vpop.f32.mrf.mxu0
      %v2191 = vadd.f32 0.0, %v2190
      %2192 = vmatprep.mubr.bf16.mxu0 0
      %2193 = vmatmul.mubr.bf16.gmra.mxu0 %v1982
      %v2194 = vpop.f32.mrf.mxu0
      %v2195 = vadd.f32 0.0, %v2194
      %v2196 = vpop.f32.mrf.mxu0
      %v2197 = vadd.f32 0.0, %v2196
      %v2198 = vpop.f32.mrf.mxu0
      %v2199 = vadd.f32 0.0, %v2198
      %v2200 = vpop.f32.mrf.mxu0
      %v2201 = vadd.f32 0.0, %v2200
      %2202 = vmatprep.mubr.bf16.mxu0 0
      %2203 = vmatmul.mubr.bf16.gmra.mxu0 %v1985
      %v2204 = vpop.f32.mrf.mxu0
      %v2205 = vadd.f32 0.0, %v2204
      %v2206 = vpop.f32.mrf.mxu0
      %v2207 = vadd.f32 0.0, %v2206
      %v2208 = vpop.f32.mrf.mxu0
      %v2209 = vadd.f32 0.0, %v2208
      %v2210 = vpop.f32.mrf.mxu0
      %v2211 = vadd.f32 0.0, %v2210
      %2212 = vdwg.mxu0
      %v2213 = vadd.f32 %v1732, %v2022
      %v2214 = vadd.f32 %v1734, %v2024
      %v2215 = vadd.f32 %v1845, %v2135
      %v2216 = vadd.f32 %v1847, %v2137
      %v2217 = vadd.f32 %v1736, %v2026
      %v2218 = vadd.f32 %v1738, %v2028
      %v2219 = vadd.f32 %v1849, %v2139
      %v2220 = vadd.f32 %v1851, %v2141
      %v2221 = vadd.f32 %v1742, %v2032
      %v2222 = vadd.f32 %v1744, %v2034
      %v2223 = vadd.f32 %v1855, %v2145
      %v2224 = vadd.f32 %v1857, %v2147
      %v2225 = vadd.f32 %v1746, %v2036
      %v2226 = vadd.f32 %v1748, %v2038
      %v2227 = vadd.f32 %v1859, %v2149
      %v2228 = vadd.f32 %v1861, %v2151
      %v2229 = vadd.f32 %v1752, %v2042
      %v2230 = vadd.f32 %v1754, %v2044
      %v2231 = vadd.f32 %v1865, %v2155
      %v2232 = vadd.f32 %v1867, %v2157
      %v2233 = vadd.f32 %v1756, %v2046
      %v2234 = vadd.f32 %v1758, %v2048
      %v2235 = vadd.f32 %v1869, %v2159
      %v2236 = vadd.f32 %v1871, %v2161
      %v2237 = vadd.f32 %v1762, %v2052
      %v2238 = vadd.f32 %v1764, %v2054
      %v2239 = vadd.f32 %v1875, %v2165
      %v2240 = vadd.f32 %v1877, %v2167
      %v2241 = vadd.f32 %v1766, %v2056
      %v2242 = vadd.f32 %v1768, %v2058
      %v2243 = vadd.f32 %v1879, %v2169
      %v2244 = vadd.f32 %v1881, %v2171
      %v2245 = vadd.f32 %v1772, %v2062
      %v2246 = vadd.f32 %v1774, %v2064
      %v2247 = vadd.f32 %v1885, %v2175
      %v2248 = vadd.f32 %v1887, %v2177
      %v2249 = vadd.f32 %v1776, %v2066
      %v2250 = vadd.f32 %v1778, %v2068
      %v2251 = vadd.f32 %v1889, %v2179
      %v2252 = vadd.f32 %v1891, %v2181
      %v2253 = vadd.f32 %v1782, %v2072
      %v2254 = vadd.f32 %v1784, %v2074
      %v2255 = vadd.f32 %v1895, %v2185
      %v2256 = vadd.f32 %v1897, %v2187
      %v2257 = vadd.f32 %v1786, %v2076
      %v2258 = vadd.f32 %v1788, %v2078
      %v2259 = vadd.f32 %v1899, %v2189
      %v2260 = vadd.f32 %v1901, %v2191
      %v2261 = vadd.f32 %v1792, %v2082
      %v2262 = vadd.f32 %v1794, %v2084
      %v2263 = vadd.f32 %v1905, %v2195
      %v2264 = vadd.f32 %v1907, %v2197
      %v2265 = vadd.f32 %v1796, %v2086
      %v2266 = vadd.f32 %v1798, %v2088
      %v2267 = vadd.f32 %v1909, %v2199
      %v2268 = vadd.f32 %v1911, %v2201
      %v2269 = vadd.f32 %v1802, %v2092
      %v2270 = vadd.f32 %v1804, %v2094
      %v2271 = vadd.f32 %v1915, %v2205
      %v2272 = vadd.f32 %v1917, %v2207
      %v2273 = vadd.f32 %v1806, %v2096
      %v2274 = vadd.f32 %v1808, %v2098
      %v2275 = vadd.f32 %v1919, %v2209
      %v2276 = vadd.f32 %v1921, %v2211
      %2278 = vset.pattern.permute.xlu0 0
      %2279 = vperm.xlu0 %2278, %v1222
      %v2280 = vpop.permute.xlu0 %2279
      %2283 = vset.pattern.permute.xlu0 0
      %2284 = vperm.xlu0 %2283, %v1223
      %v2285 = vpop.permute.xlu0 %2284
      %2288 = vset.pattern.permute.xlu0 0
      %2289 = vperm.xlu0 %2288, %v1224
      %v2290 = vpop.permute.xlu0 %2289
      %2293 = vset.pattern.permute.xlu0 0
      %2294 = vperm.xlu0 %2293, %v1225
      %v2295 = vpop.permute.xlu0 %2294
      %2298 = vset.pattern.permute.xlu0 0
      %2299 = vperm.xlu0 %2298, %v1226
      %v2300 = vpop.permute.xlu0 %2299
      %2303 = vset.pattern.permute.xlu0 0
      %2304 = vperm.xlu0 %2303, %v1227
      %v2305 = vpop.permute.xlu0 %2304
      %2308 = vset.pattern.permute.xlu0 0
      %2309 = vperm.xlu0 %2308, %v1228
      %v2310 = vpop.permute.xlu0 %2309
      %2313 = vset.pattern.permute.xlu0 0
      %2314 = vperm.xlu0 %2313, %v1229
      %v2315 = vpop.permute.xlu0 %2314
      %2318 = vset.pattern.permute.xlu0 0
      %2319 = vperm.xlu0 %2318, %v1230
      %v2320 = vpop.permute.xlu0 %2319
      %2323 = vset.pattern.permute.xlu0 0
      %2324 = vperm.xlu0 %2323, %v1231
      %v2325 = vpop.permute.xlu0 %2324
      %2328 = vset.pattern.permute.xlu0 0
      %2329 = vperm.xlu0 %2328, %v1232
      %v2330 = vpop.permute.xlu0 %2329
      %2333 = vset.pattern.permute.xlu0 0
      %2334 = vperm.xlu0 %2333, %v1233
      %v2335 = vpop.permute.xlu0 %2334
      %2338 = vset.pattern.permute.xlu0 0
      %2339 = vperm.xlu0 %2338, %v1234
      %v2340 = vpop.permute.xlu0 %2339
      %2343 = vset.pattern.permute.xlu0 0
      %2344 = vperm.xlu0 %2343, %v1235
      %v2345 = vpop.permute.xlu0 %2344
      %2348 = vset.pattern.permute.xlu0 0
      %2349 = vperm.xlu0 %2348, %v1236
      %v2350 = vpop.permute.xlu0 %2349
      %2353 = vset.pattern.permute.xlu0 0
      %2354 = vperm.xlu0 %2353, %v1237
      %v2355 = vpop.permute.xlu0 %2354
      %v2357 = vadd.f32 %v2213, %v2280
      %v2358 = vadd.f32 %v2214, %v2280
      %v2359 = vadd.f32 %v2215, %v2280
      %v2360 = vadd.f32 %v2216, %v2280
      %v2361 = vadd.f32 %v2217, %v2285
      %v2362 = vadd.f32 %v2218, %v2285
      %v2363 = vadd.f32 %v2219, %v2285
      %v2364 = vadd.f32 %v2220, %v2285
      %v2365 = vadd.f32 %v2221, %v2290
      %v2366 = vadd.f32 %v2222, %v2290
      %v2367 = vadd.f32 %v2223, %v2290
      %v2368 = vadd.f32 %v2224, %v2290
      %v2369 = vadd.f32 %v2225, %v2295
      %v2370 = vadd.f32 %v2226, %v2295
      %v2371 = vadd.f32 %v2227, %v2295
      %v2372 = vadd.f32 %v2228, %v2295
      %v2373 = vadd.f32 %v2229, %v2300
      %v2374 = vadd.f32 %v2230, %v2300
      %v2375 = vadd.f32 %v2231, %v2300
      %v2376 = vadd.f32 %v2232, %v2300
      %v2377 = vadd.f32 %v2233, %v2305
      %v2378 = vadd.f32 %v2234, %v2305
      %v2379 = vadd.f32 %v2235, %v2305
      %v2380 = vadd.f32 %v2236, %v2305
      %v2381 = vadd.f32 %v2237, %v2310
      %v2382 = vadd.f32 %v2238, %v2310
      %v2383 = vadd.f32 %v2239, %v2310
      %v2384 = vadd.f32 %v2240, %v2310
      %v2385 = vadd.f32 %v2241, %v2315
      %v2386 = vadd.f32 %v2242, %v2315
      %v2387 = vadd.f32 %v2243, %v2315
      %v2388 = vadd.f32 %v2244, %v2315
      %v2389 = vadd.f32 %v2245, %v2320
      %v2390 = vadd.f32 %v2246, %v2320
      %v2391 = vadd.f32 %v2247, %v2320
      %v2392 = vadd.f32 %v2248, %v2320
      %v2393 = vadd.f32 %v2249, %v2325
      %v2394 = vadd.f32 %v2250, %v2325
      %v2395 = vadd.f32 %v2251, %v2325
      %v2396 = vadd.f32 %v2252, %v2325
      %v2397 = vadd.f32 %v2253, %v2330
      %v2398 = vadd.f32 %v2254, %v2330
      %v2399 = vadd.f32 %v2255, %v2330
      %v2400 = vadd.f32 %v2256, %v2330
      %v2401 = vadd.f32 %v2257, %v2335
      %v2402 = vadd.f32 %v2258, %v2335
      %v2403 = vadd.f32 %v2259, %v2335
      %v2404 = vadd.f32 %v2260, %v2335
      %v2405 = vadd.f32 %v2261, %v2340
      %v2406 = vadd.f32 %v2262, %v2340
      %v2407 = vadd.f32 %v2263, %v2340
      %v2408 = vadd.f32 %v2264, %v2340
      %v2409 = vadd.f32 %v2265, %v2345
      %v2410 = vadd.f32 %v2266, %v2345
      %v2411 = vadd.f32 %v2267, %v2345
      %v2412 = vadd.f32 %v2268, %v2345
      %v2413 = vadd.f32 %v2269, %v2350
      %v2414 = vadd.f32 %v2270, %v2350
      %v2415 = vadd.f32 %v2271, %v2350
      %v2416 = vadd.f32 %v2272, %v2350
      %v2417 = vadd.f32 %v2273, %v2355
      %v2418 = vadd.f32 %v2274, %v2355
      %v2419 = vadd.f32 %v2275, %v2355
      %v2420 = vadd.f32 %v2276, %v2355
      %v2421 = vpack.c.bf16 %v2361, %v2357
      %v2422 = vpack.c.bf16 %v2362, %v2358
      %v2423 = vpack.c.bf16 %v2363, %v2359
      %v2424 = vpack.c.bf16 %v2364, %v2360
      %v2425 = vpack.c.bf16 %v2369, %v2365
      %v2426 = vpack.c.bf16 %v2370, %v2366
      %v2427 = vpack.c.bf16 %v2371, %v2367
      %v2428 = vpack.c.bf16 %v2372, %v2368
      %v2429 = vpack.c.bf16 %v2377, %v2373
      %v2430 = vpack.c.bf16 %v2378, %v2374
      %v2431 = vpack.c.bf16 %v2379, %v2375
      %v2432 = vpack.c.bf16 %v2380, %v2376
      %v2433 = vpack.c.bf16 %v2385, %v2381
      %v2434 = vpack.c.bf16 %v2386, %v2382
      %v2435 = vpack.c.bf16 %v2387, %v2383
      %v2436 = vpack.c.bf16 %v2388, %v2384
      %v2437 = vpack.c.bf16 %v2393, %v2389
      %v2438 = vpack.c.bf16 %v2394, %v2390
      %v2439 = vpack.c.bf16 %v2395, %v2391
      %v2440 = vpack.c.bf16 %v2396, %v2392
      %v2441 = vpack.c.bf16 %v2401, %v2397
      %v2442 = vpack.c.bf16 %v2402, %v2398
      %v2443 = vpack.c.bf16 %v2403, %v2399
      %v2444 = vpack.c.bf16 %v2404, %v2400
      %v2445 = vpack.c.bf16 %v2409, %v2405
      %v2446 = vpack.c.bf16 %v2410, %v2406
      %v2447 = vpack.c.bf16 %v2411, %v2407
      %v2448 = vpack.c.bf16 %v2412, %v2408
      %v2449 = vpack.c.bf16 %v2417, %v2413
      %v2450 = vpack.c.bf16 %v2418, %v2414
      %v2451 = vpack.c.bf16 %v2419, %v2415
      %v2452 = vpack.c.bf16 %v2420, %v2416
      %2454 = vset.pattern.permute.xlu0 0
      %2455 = vperm.xlu0 %2454, %v1238
      %v2456 = vpop.permute.xlu0 %2455
      %2459 = vset.pattern.permute.xlu0 0
      %2460 = vperm.xlu0 %2459, %v1239
      %v2461 = vpop.permute.xlu0 %2460
      %2464 = vset.pattern.permute.xlu0 0
      %2465 = vperm.xlu0 %2464, %v1240
      %v2466 = vpop.permute.xlu0 %2465
      %2469 = vset.pattern.permute.xlu0 0
      %2470 = vperm.xlu0 %2469, %v1241
      %v2471 = vpop.permute.xlu0 %2470
      %2474 = vset.pattern.permute.xlu0 0
      %2475 = vperm.xlu0 %2474, %v1242
      %v2476 = vpop.permute.xlu0 %2475
      %2479 = vset.pattern.permute.xlu0 0
      %2480 = vperm.xlu0 %2479, %v1243
      %v2481 = vpop.permute.xlu0 %2480
      %2484 = vset.pattern.permute.xlu0 0
      %2485 = vperm.xlu0 %2484, %v1244
      %v2486 = vpop.permute.xlu0 %2485
      %2489 = vset.pattern.permute.xlu0 0
      %2490 = vperm.xlu0 %2489, %v1245
      %v2491 = vpop.permute.xlu0 %2490
      %2494 = vset.pattern.permute.xlu0 0
      %2495 = vperm.xlu0 %2494, %v1246
      %v2496 = vpop.permute.xlu0 %2495
      %2499 = vset.pattern.permute.xlu0 0
      %2500 = vperm.xlu0 %2499, %v1247
      %v2501 = vpop.permute.xlu0 %2500
      %2504 = vset.pattern.permute.xlu0 0
      %2505 = vperm.xlu0 %2504, %v1248
      %v2506 = vpop.permute.xlu0 %2505
      %2509 = vset.pattern.permute.xlu0 0
      %2510 = vperm.xlu0 %2509, %v1249
      %v2511 = vpop.permute.xlu0 %2510
      %2514 = vset.pattern.permute.xlu0 0
      %2515 = vperm.xlu0 %2514, %v1250
      %v2516 = vpop.permute.xlu0 %2515
      %2519 = vset.pattern.permute.xlu0 0
      %2520 = vperm.xlu0 %2519, %v1251
      %v2521 = vpop.permute.xlu0 %2520
      %2524 = vset.pattern.permute.xlu0 0
      %2525 = vperm.xlu0 %2524, %v1252
      %v2526 = vpop.permute.xlu0 %2525
      %2529 = vset.pattern.permute.xlu0 0
      %2530 = vperm.xlu0 %2529, %v1253
      %v2531 = vpop.permute.xlu0 %2530
      %v2549 = vunpack.c.l.b16 %v1286
      %v2550 = vunpack.c.l.b16 %v1287
      %v2551 = vunpack.c.l.b16 %v1288
      %v2552 = vunpack.c.l.b16 %v1289
      %v2553 = vunpack.c.l.b16 %v1290
      %v2554 = vunpack.c.l.b16 %v1291
      %v2555 = vunpack.c.l.b16 %v1292
      %v2556 = vunpack.c.l.b16 %v1293
      %v2557 = vunpack.c.l.b16 %v1294
      %v2558 = vunpack.c.l.b16 %v1295
      %v2559 = vunpack.c.l.b16 %v1296
      %v2560 = vunpack.c.l.b16 %v1297
      %v2561 = vunpack.c.l.b16 %v1298
      %v2562 = vunpack.c.l.b16 %v1299
      %v2563 = vunpack.c.l.b16 %v1300
      %v2564 = vunpack.c.l.b16 %v1301
      %v2565 = vpack.c.b16 %v2550, %v2549
      %v2566 = vpack.c.b16 %v2552, %v2551
      %v2567 = vpack.c.b16 %v2554, %v2553
      %v2568 = vpack.c.b16 %v2556, %v2555
      %v2569 = vpack.c.b16 %v2558, %v2557
      %v2570 = vpack.c.b16 %v2560, %v2559
      %v2571 = vpack.c.b16 %v2562, %v2561
      %v2572 = vpack.c.b16 %v2564, %v2563
      %2581 = vmatprep.subr.bf16.mxu0 %v2450
      %2582 = vmatpush1.bf16.msra.mxu0 %v2449
      %2583 = vmatprep.subr.bf16.mxu0 %v2446
      %2584 = vmatpush1.bf16.msra.mxu0 %v2445
      %2585 = vmatprep.subr.bf16.mxu0 %v2442
      %2586 = vmatpush1.bf16.msra.mxu0 %v2441
      %2587 = vmatprep.subr.bf16.mxu0 %v2438
      %2588 = vmatpush1.bf16.msra.mxu0 %v2437
      %2589 = vmatprep.subr.bf16.mxu0 %v2434
      %2590 = vmatpush1.bf16.msra.mxu0 %v2433
      %2591 = vmatprep.subr.bf16.mxu0 %v2430
      %2592 = vmatpush1.bf16.msra.mxu0 %v2429
      %2593 = vmatprep.subr.bf16.mxu0 %v2426
      %2594 = vmatpush1.bf16.msra.mxu0 %v2425
      %2595 = vmatprep.subr.bf16.mxu0 %v2422
      %2596 = vmatpush1.bf16.msra.mxu0 %v2421
      %2597 = vmatprep.subr.bf16.mxu0 0
      %2598 = vmatpush2.bf16.msra.mxu0 0
      %2599 = vmatprep.subr.bf16.mxu0 0
      %2600 = vmatpush2.bf16.msra.mxu0 0
      %2601 = vmatprep.subr.bf16.mxu0 0
      %2602 = vmatpush2.bf16.msra.mxu0 0
      %2603 = vmatprep.subr.bf16.mxu0 0
      %2604 = vmatpush2.bf16.msra.mxu0 0
      %2605 = vmatprep.subr.bf16.mxu0 0
      %2606 = vmatpush2.bf16.msra.mxu0 0
      %2607 = vmatprep.subr.bf16.mxu0 0
      %2608 = vmatpush2.bf16.msra.mxu0 0
      %2609 = vmatprep.subr.bf16.mxu0 0
      %2610 = vmatpush2.bf16.msra.mxu0 0
      %2611 = vmatprep.subr.bf16.mxu0 0
      %2612 = vmatpush2.bf16.msra.mxu0 0
      %2613 = vmatprep.mubr.bf16.mxu0 0
      %2614 = vmatmul.mubr.bf16.gmra.mxu0 %v2565
      %v2615 = vpop.f32.mrf.mxu0
      %v2616 = vadd.f32 %v2456, %v2615
      %v2617 = vpop.f32.mrf.mxu0
      %v2618 = vadd.f32 %v2456, %v2617
      %v2619 = vpop.f32.mrf.mxu0
      %v2620 = vadd.f32 %v2461, %v2619
      %v2621 = vpop.f32.mrf.mxu0
      %v2622 = vadd.f32 %v2461, %v2621
      %2623 = vmatprep.mubr.bf16.mxu0 0
      %2624 = vmatmul.mubr.bf16.gmra.mxu0 %v2566
      %v2625 = vpop.f32.mrf.mxu0
      %v2626 = vadd.f32 %v2466, %v2625
      %v2627 = vpop.f32.mrf.mxu0
      %v2628 = vadd.f32 %v2466, %v2627
      %v2629 = vpop.f32.mrf.mxu0
      %v2630 = vadd.f32 %v2471, %v2629
      %v2631 = vpop.f32.mrf.mxu0
      %v2632 = vadd.f32 %v2471, %v2631
      %2633 = vmatprep.mubr.bf16.mxu0 0
      %2634 = vmatmul.mubr.bf16.gmra.mxu0 %v2567
      %v2635 = vpop.f32.mrf.mxu0
      %v2636 = vadd.f32 %v2476, %v2635
      %v2637 = vpop.f32.mrf.mxu0
      %v2638 = vadd.f32 %v2476, %v2637
      %v2639 = vpop.f32.mrf.mxu0
      %v2640 = vadd.f32 %v2481, %v2639
      %v2641 = vpop.f32.mrf.mxu0
      %v2642 = vadd.f32 %v2481, %v2641
      %2643 = vmatprep.mubr.bf16.mxu0 0
      %2644 = vmatmul.mubr.bf16.gmra.mxu0 %v2568
      %v2645 = vpop.f32.mrf.mxu0
      %v2646 = vadd.f32 %v2486, %v2645
      %v2647 = vpop.f32.mrf.mxu0
      %v2648 = vadd.f32 %v2486, %v2647
      %v2649 = vpop.f32.mrf.mxu0
      %v2650 = vadd.f32 %v2491, %v2649
      %v2651 = vpop.f32.mrf.mxu0
      %v2652 = vadd.f32 %v2491, %v2651
      %2653 = vmatprep.mubr.bf16.mxu0 0
      %2654 = vmatmul.mubr.bf16.gmra.mxu0 %v2569
      %v2655 = vpop.f32.mrf.mxu0
      %v2656 = vadd.f32 %v2496, %v2655
      %v2657 = vpop.f32.mrf.mxu0
      %v2658 = vadd.f32 %v2496, %v2657
      %v2659 = vpop.f32.mrf.mxu0
      %v2660 = vadd.f32 %v2501, %v2659
      %v2661 = vpop.f32.mrf.mxu0
      %v2662 = vadd.f32 %v2501, %v2661
      %2663 = vmatprep.mubr.bf16.mxu0 0
      %2664 = vmatmul.mubr.bf16.gmra.mxu0 %v2570
      %v2665 = vpop.f32.mrf.mxu0
      %v2666 = vadd.f32 %v2506, %v2665
      %v2667 = vpop.f32.mrf.mxu0
      %v2668 = vadd.f32 %v2506, %v2667
      %v2669 = vpop.f32.mrf.mxu0
      %v2670 = vadd.f32 %v2511, %v2669
      %v2671 = vpop.f32.mrf.mxu0
      %v2672 = vadd.f32 %v2511, %v2671
      %2673 = vmatprep.mubr.bf16.mxu0 0
      %2674 = vmatmul.mubr.bf16.gmra.mxu0 %v2571
      %v2675 = vpop.f32.mrf.mxu0
      %v2676 = vadd.f32 %v2516, %v2675
      %v2677 = vpop.f32.mrf.mxu0
      %v2678 = vadd.f32 %v2516, %v2677
      %v2679 = vpop.f32.mrf.mxu0
      %v2680 = vadd.f32 %v2521, %v2679
      %v2681 = vpop.f32.mrf.mxu0
      %v2682 = vadd.f32 %v2521, %v2681
      %2683 = vmatprep.mubr.bf16.mxu0 0
      %2684 = vmatmul.mubr.bf16.gmra.mxu0 %v2572
      %v2685 = vpop.f32.mrf.mxu0
      %v2686 = vadd.f32 %v2526, %v2685
      %v2687 = vpop.f32.mrf.mxu0
      %v2688 = vadd.f32 %v2526, %v2687
      %v2689 = vpop.f32.mrf.mxu0
      %v2690 = vadd.f32 %v2531, %v2689
      %v2691 = vpop.f32.mrf.mxu0
      %v2692 = vadd.f32 %v2531, %v2691
      %2693 = vdwg.mxu0
      %2694 = vmatprep.subr.bf16.mxu0 %v2452
      %2695 = vmatpush1.bf16.msra.mxu0 %v2451
      %2696 = vmatprep.subr.bf16.mxu0 %v2448
      %2697 = vmatpush1.bf16.msra.mxu0 %v2447
      %2698 = vmatprep.subr.bf16.mxu0 %v2444
      %2699 = vmatpush1.bf16.msra.mxu0 %v2443
      %2700 = vmatprep.subr.bf16.mxu0 %v2440
      %2701 = vmatpush1.bf16.msra.mxu0 %v2439
      %2702 = vmatprep.subr.bf16.mxu0 %v2436
      %2703 = vmatpush1.bf16.msra.mxu0 %v2435
      %2704 = vmatprep.subr.bf16.mxu0 %v2432
      %2705 = vmatpush1.bf16.msra.mxu0 %v2431
      %2706 = vmatprep.subr.bf16.mxu0 %v2428
      %2707 = vmatpush1.bf16.msra.mxu0 %v2427
      %2708 = vmatprep.subr.bf16.mxu0 %v2424
      %2709 = vmatpush1.bf16.msra.mxu0 %v2423
      %2710 = vmatprep.subr.bf16.mxu0 0
      %2711 = vmatpush2.bf16.msra.mxu0 0
      %2712 = vmatprep.subr.bf16.mxu0 0
      %2713 = vmatpush2.bf16.msra.mxu0 0
      %2714 = vmatprep.subr.bf16.mxu0 0
      %2715 = vmatpush2.bf16.msra.mxu0 0
      %2716 = vmatprep.subr.bf16.mxu0 0
      %2717 = vmatpush2.bf16.msra.mxu0 0
      %2718 = vmatprep.subr.bf16.mxu0 0
      %2719 = vmatpush2.bf16.msra.mxu0 0
      %2720 = vmatprep.subr.bf16.mxu0 0
      %2721 = vmatpush2.bf16.msra.mxu0 0
      %2722 = vmatprep.subr.bf16.mxu0 0
      %2723 = vmatpush2.bf16.msra.mxu0 0
      %2724 = vmatprep.subr.bf16.mxu0 0
      %2725 = vmatpush2.bf16.msra.mxu0 0
      %2726 = vmatprep.mubr.bf16.mxu0 0
      %2727 = vmatmul.mubr.bf16.gmra.mxu0 %v2565
      %v2728 = vpop.f32.mrf.mxu0
      %v2729 = vadd.f32 %v2456, %v2728
      %v2730 = vpop.f32.mrf.mxu0
      %v2731 = vadd.f32 %v2456, %v2730
      %v2732 = vpop.f32.mrf.mxu0
      %v2733 = vadd.f32 %v2461, %v2732
      %v2734 = vpop.f32.mrf.mxu0
      %v2735 = vadd.f32 %v2461, %v2734
      %2736 = vmatprep.mubr.bf16.mxu0 0
      %2737 = vmatmul.mubr.bf16.gmra.mxu0 %v2566
      %v2738 = vpop.f32.mrf.mxu0
      %v2739 = vadd.f32 %v2466, %v2738
      %v2740 = vpop.f32.mrf.mxu0
      %v2741 = vadd.f32 %v2466, %v2740
      %v2742 = vpop.f32.mrf.mxu0
      %v2743 = vadd.f32 %v2471, %v2742
      %v2744 = vpop.f32.mrf.mxu0
      %v2745 = vadd.f32 %v2471, %v2744
      %2746 = vmatprep.mubr.bf16.mxu0 0
      %2747 = vmatmul.mubr.bf16.gmra.mxu0 %v2567
      %v2748 = vpop.f32.mrf.mxu0
      %v2749 = vadd.f32 %v2476, %v2748
      %v2750 = vpop.f32.mrf.mxu0
      %v2751 = vadd.f32 %v2476, %v2750
      %v2752 = vpop.f32.mrf.mxu0
      %v2753 = vadd.f32 %v2481, %v2752
      %v2754 = vpop.f32.mrf.mxu0
      %v2755 = vadd.f32 %v2481, %v2754
      %2756 = vmatprep.mubr.bf16.mxu0 0
      %2757 = vmatmul.mubr.bf16.gmra.mxu0 %v2568
      %v2758 = vpop.f32.mrf.mxu0
      %v2759 = vadd.f32 %v2486, %v2758
      %v2760 = vpop.f32.mrf.mxu0
      %v2761 = vadd.f32 %v2486, %v2760
      %v2762 = vpop.f32.mrf.mxu0
      %v2763 = vadd.f32 %v2491, %v2762
      %v2764 = vpop.f32.mrf.mxu0
      %v2765 = vadd.f32 %v2491, %v2764
      %2766 = vmatprep.mubr.bf16.mxu0 0
      %2767 = vmatmul.mubr.bf16.gmra.mxu0 %v2569
      %v2768 = vpop.f32.mrf.mxu0
      %v2769 = vadd.f32 %v2496, %v2768
      %v2770 = vpop.f32.mrf.mxu0
      %v2771 = vadd.f32 %v2496, %v2770
      %v2772 = vpop.f32.mrf.mxu0
      %v2773 = vadd.f32 %v2501, %v2772
      %v2774 = vpop.f32.mrf.mxu0
      %v2775 = vadd.f32 %v2501, %v2774
      %2776 = vmatprep.mubr.bf16.mxu0 0
      %2777 = vmatmul.mubr.bf16.gmra.mxu0 %v2570
      %v2778 = vpop.f32.mrf.mxu0
      %v2779 = vadd.f32 %v2506, %v2778
      %v2780 = vpop.f32.mrf.mxu0
      %v2781 = vadd.f32 %v2506, %v2780
      %v2782 = vpop.f32.mrf.mxu0
      %v2783 = vadd.f32 %v2511, %v2782
      %v2784 = vpop.f32.mrf.mxu0
      %v2785 = vadd.f32 %v2511, %v2784
      %2786 = vmatprep.mubr.bf16.mxu0 0
      %2787 = vmatmul.mubr.bf16.gmra.mxu0 %v2571
      %v2788 = vpop.f32.mrf.mxu0
      %v2789 = vadd.f32 %v2516, %v2788
      %v2790 = vpop.f32.mrf.mxu0
      %v2791 = vadd.f32 %v2516, %v2790
      %v2792 = vpop.f32.mrf.mxu0
      %v2793 = vadd.f32 %v2521, %v2792
      %v2794 = vpop.f32.mrf.mxu0
      %v2795 = vadd.f32 %v2521, %v2794
      %2796 = vmatprep.mubr.bf16.mxu0 0
      %2797 = vmatmul.mubr.bf16.gmra.mxu0 %v2572
      %v2798 = vpop.f32.mrf.mxu0
      %v2799 = vadd.f32 %v2526, %v2798
      %v2800 = vpop.f32.mrf.mxu0
      %v2801 = vadd.f32 %v2526, %v2800
      %v2802 = vpop.f32.mrf.mxu0
      %v2803 = vadd.f32 %v2531, %v2802
      %v2804 = vpop.f32.mrf.mxu0
      %v2805 = vadd.f32 %v2531, %v2804
      %2806 = vdwg.mxu0
      %v2807 = vtanh.pop %v2616
      %v2808 = vtanh.pop %v2618
      %v2809 = vtanh.pop %v2729
      %v2810 = vtanh.pop %v2731
      %v2811 = vtanh.pop %v2620
      %v2812 = vtanh.pop %v2622
      %v2813 = vtanh.pop %v2733
      %v2814 = vtanh.pop %v2735
      %v2815 = vtanh.pop %v2626
      %v2816 = vtanh.pop %v2628
      %v2817 = vtanh.pop %v2739
      %v2818 = vtanh.pop %v2741
      %v2819 = vtanh.pop %v2630
      %v2820 = vtanh.pop %v2632
      %v2821 = vtanh.pop %v2743
      %v2822 = vtanh.pop %v2745
      %v2823 = vtanh.pop %v2636
      %v2824 = vtanh.pop %v2638
      %v2825 = vtanh.pop %v2749
      %v2826 = vtanh.pop %v2751
      %v2827 = vtanh.pop %v2640
      %v2828 = vtanh.pop %v2642
      %v2829 = vtanh.pop %v2753
      %v2830 = vtanh.pop %v2755
      %v2831 = vtanh.pop %v2646
      %v2832 = vtanh.pop %v2648
      %v2833 = vtanh.pop %v2759
      %v2834 = vtanh.pop %v2761
      %v2835 = vtanh.pop %v2650
      %v2836 = vtanh.pop %v2652
      %v2837 = vtanh.pop %v2763
      %v2838 = vtanh.pop %v2765
      %v2839 = vtanh.pop %v2656
      %v2840 = vtanh.pop %v2658
      %v2841 = vtanh.pop %v2769
      %v2842 = vtanh.pop %v2771
      %v2843 = vtanh.pop %v2660
      %v2844 = vtanh.pop %v2662
      %v2845 = vtanh.pop %v2773
      %v2846 = vtanh.pop %v2775
      %v2847 = vtanh.pop %v2666
      %v2848 = vtanh.pop %v2668
      %v2849 = vtanh.pop %v2779
      %v2850 = vtanh.pop %v2781
      %v2851 = vtanh.pop %v2670
      %v2852 = vtanh.pop %v2672
      %v2853 = vtanh.pop %v2783
      %v2854 = vtanh.pop %v2785
      %v2855 = vtanh.pop %v2676
      %v2856 = vtanh.pop %v2678
      %v2857 = vtanh.pop %v2789
      %v2858 = vtanh.pop %v2791
      %v2859 = vtanh.pop %v2680
      %v2860 = vtanh.pop %v2682
      %v2861 = vtanh.pop %v2793
      %v2862 = vtanh.pop %v2795
      %v2863 = vtanh.pop %v2686
      %v2864 = vtanh.pop %v2688
      %v2865 = vtanh.pop %v2799
      %v2866 = vtanh.pop %v2801
      %v2867 = vtanh.pop %v2690
      %v2868 = vtanh.pop %v2692
      %v2869 = vtanh.pop %v2803
      %v2870 = vtanh.pop %v2805
      %v2871 = vpack.c.bf16 %v2811, %v2807
      %v2872 = vpack.c.bf16 %v2812, %v2808
      %v2873 = vpack.c.bf16 %v2813, %v2809
      %v2874 = vpack.c.bf16 %v2814, %v2810
      %v2875 = vpack.c.bf16 %v2819, %v2815
      %v2876 = vpack.c.bf16 %v2820, %v2816
      %v2877 = vpack.c.bf16 %v2821, %v2817
      %v2878 = vpack.c.bf16 %v2822, %v2818
      %v2879 = vpack.c.bf16 %v2827, %v2823
      %v2880 = vpack.c.bf16 %v2828, %v2824
      %v2881 = vpack.c.bf16 %v2829, %v2825
      %v2882 = vpack.c.bf16 %v2830, %v2826
      %v2883 = vpack.c.bf16 %v2835, %v2831
      %v2884 = vpack.c.bf16 %v2836, %v2832
      %v2885 = vpack.c.bf16 %v2837, %v2833
      %v2886 = vpack.c.bf16 %v2838, %v2834
      %v2887 = vpack.c.bf16 %v2843, %v2839
      %v2888 = vpack.c.bf16 %v2844, %v2840
      %v2889 = vpack.c.bf16 %v2845, %v2841
      %v2890 = vpack.c.bf16 %v2846, %v2842
      %v2891 = vpack.c.bf16 %v2851, %v2847
      %v2892 = vpack.c.bf16 %v2852, %v2848
      %v2893 = vpack.c.bf16 %v2853, %v2849
      %v2894 = vpack.c.bf16 %v2854, %v2850
      %v2895 = vpack.c.bf16 %v2859, %v2855
      %v2896 = vpack.c.bf16 %v2860, %v2856
      %v2897 = vpack.c.bf16 %v2861, %v2857
      %v2898 = vpack.c.bf16 %v2862, %v2858
      %v2899 = vpack.c.bf16 %v2867, %v2863
      %v2900 = vpack.c.bf16 %v2868, %v2864
      %v2901 = vpack.c.bf16 %v2869, %v2865
      %v2902 = vpack.c.bf16 %v2870, %v2866
      %2904 = vset.pattern.permute.xlu0 0
      %2905 = vperm.xlu0 %2904, %v1254
      %v2906 = vpop.permute.xlu0 %2905
      %2909 = vset.pattern.permute.xlu0 0
      %2910 = vperm.xlu0 %2909, %v1255
      %v2911 = vpop.permute.xlu0 %2910
      %2914 = vset.pattern.permute.xlu0 0
      %2915 = vperm.xlu0 %2914, %v1256
      %v2916 = vpop.permute.xlu0 %2915
      %2919 = vset.pattern.permute.xlu0 0
      %2920 = vperm.xlu0 %2919, %v1257
      %v2921 = vpop.permute.xlu0 %2920
      %2924 = vset.pattern.permute.xlu0 0
      %2925 = vperm.xlu0 %2924, %v1258
      %v2926 = vpop.permute.xlu0 %2925
      %2929 = vset.pattern.permute.xlu0 0
      %2930 = vperm.xlu0 %2929, %v1259
      %v2931 = vpop.permute.xlu0 %2930
      %2934 = vset.pattern.permute.xlu0 0
      %2935 = vperm.xlu0 %2934, %v1260
      %v2936 = vpop.permute.xlu0 %2935
      %2939 = vset.pattern.permute.xlu0 0
      %2940 = vperm.xlu0 %2939, %v1261
      %v2941 = vpop.permute.xlu0 %2940
      %2944 = vset.pattern.permute.xlu0 0
      %2945 = vperm.xlu0 %2944, %v1262
      %v2946 = vpop.permute.xlu0 %2945
      %2949 = vset.pattern.permute.xlu0 0
      %2950 = vperm.xlu0 %2949, %v1263
      %v2951 = vpop.permute.xlu0 %2950
      %2954 = vset.pattern.permute.xlu0 0
      %2955 = vperm.xlu0 %2954, %v1264
      %v2956 = vpop.permute.xlu0 %2955
      %2959 = vset.pattern.permute.xlu0 0
      %2960 = vperm.xlu0 %2959, %v1265
      %v2961 = vpop.permute.xlu0 %2960
      %2964 = vset.pattern.permute.xlu0 0
      %2965 = vperm.xlu0 %2964, %v1266
      %v2966 = vpop.permute.xlu0 %2965
      %2969 = vset.pattern.permute.xlu0 0
      %2970 = vperm.xlu0 %2969, %v1267
      %v2971 = vpop.permute.xlu0 %2970
      %2974 = vset.pattern.permute.xlu0 0
      %2975 = vperm.xlu0 %2974, %v1268
      %v2976 = vpop.permute.xlu0 %2975
      %2979 = vset.pattern.permute.xlu0 0
      %2980 = vperm.xlu0 %2979, %v1269
      %v2981 = vpop.permute.xlu0 %2980
      %v2999 = vunpack.c.l.b16 %v1302
      %v3000 = vunpack.c.l.b16 %v1303
      %v3001 = vunpack.c.l.b16 %v1304
      %v3002 = vunpack.c.l.b16 %v1305
      %v3003 = vunpack.c.l.b16 %v1306
      %v3004 = vunpack.c.l.b16 %v1307
      %v3005 = vunpack.c.l.b16 %v1308
      %v3006 = vunpack.c.l.b16 %v1309
      %v3007 = vunpack.c.l.b16 %v1310
      %v3008 = vunpack.c.l.b16 %v1311
      %v3009 = vunpack.c.l.b16 %v1312
      %v3010 = vunpack.c.l.b16 %v1313
      %v3011 = vunpack.c.l.b16 %v1314
      %v3012 = vunpack.c.l.b16 %v1315
      %v3013 = vunpack.c.l.b16 %v1316
      %v3014 = vunpack.c.l.b16 %v1317
      %v3015 = vpack.c.b16 %v3000, %v2999
      %v3016 = vpack.c.b16 %v3002, %v3001
      %v3017 = vpack.c.b16 %v3004, %v3003
      %v3018 = vpack.c.b16 %v3006, %v3005
      %v3019 = vpack.c.b16 %v3008, %v3007
      %v3020 = vpack.c.b16 %v3010, %v3009
      %v3021 = vpack.c.b16 %v3012, %v3011
      %v3022 = vpack.c.b16 %v3014, %v3013
      %3031 = vmatprep.subr.bf16.mxu0 %v2900
      %3032 = vmatpush1.bf16.msra.mxu0 %v2899
      %3033 = vmatprep.subr.bf16.mxu0 %v2896
      %3034 = vmatpush1.bf16.msra.mxu0 %v2895
      %3035 = vmatprep.subr.bf16.mxu0 %v2892
      %3036 = vmatpush1.bf16.msra.mxu0 %v2891
      %3037 = vmatprep.subr.bf16.mxu0 %v2888
      %3038 = vmatpush1.bf16.msra.mxu0 %v2887
      %3039 = vmatprep.subr.bf16.mxu0 %v2884
      %3040 = vmatpush1.bf16.msra.mxu0 %v2883
      %3041 = vmatprep.subr.bf16.mxu0 %v2880
      %3042 = vmatpush1.bf16.msra.mxu0 %v2879
      %3043 = vmatprep.subr.bf16.mxu0 %v2876
      %3044 = vmatpush1.bf16.msra.mxu0 %v2875
      %3045 = vmatprep.subr.bf16.mxu0 %v2872
      %3046 = vmatpush1.bf16.msra.mxu0 %v2871
      %3047 = vmatprep.subr.bf16.mxu0 0
      %3048 = vmatpush2.bf16.msra.mxu0 0
      %3049 = vmatprep.subr.bf16.mxu0 0
      %3050 = vmatpush2.bf16.msra.mxu0 0
      %3051 = vmatprep.subr.bf16.mxu0 0
      %3052 = vmatpush2.bf16.msra.mxu0 0
      %3053 = vmatprep.subr.bf16.mxu0 0
      %3054 = vmatpush2.bf16.msra.mxu0 0
      %3055 = vmatprep.subr.bf16.mxu0 0
      %3056 = vmatpush2.bf16.msra.mxu0 0
      %3057 = vmatprep.subr.bf16.mxu0 0
      %3058 = vmatpush2.bf16.msra.mxu0 0
      %3059 = vmatprep.subr.bf16.mxu0 0
      %3060 = vmatpush2.bf16.msra.mxu0 0
      %3061 = vmatprep.subr.bf16.mxu0 0
      %3062 = vmatpush2.bf16.msra.mxu0 0
      %3063 = vmatprep.mubr.bf16.mxu0 0
      %3064 = vmatmul.mubr.bf16.gmra.mxu0 %v3015
      %v3065 = vpop.f32.mrf.mxu0
      %v3066 = vadd.f32 %v2906, %v3065
      %v3067 = vpop.f32.mrf.mxu0
      %v3068 = vadd.f32 %v2906, %v3067
      %v3069 = vpop.f32.mrf.mxu0
      %v3070 = vadd.f32 %v2911, %v3069
      %v3071 = vpop.f32.mrf.mxu0
      %v3072 = vadd.f32 %v2911, %v3071
      %3073 = vmatprep.mubr.bf16.mxu0 0
      %3074 = vmatmul.mubr.bf16.gmra.mxu0 %v3016
      %v3075 = vpop.f32.mrf.mxu0
      %v3076 = vadd.f32 %v2916, %v3075
      %v3077 = vpop.f32.mrf.mxu0
      %v3078 = vadd.f32 %v2916, %v3077
      %v3079 = vpop.f32.mrf.mxu0
      %v3080 = vadd.f32 %v2921, %v3079
      %v3081 = vpop.f32.mrf.mxu0
      %v3082 = vadd.f32 %v2921, %v3081
      %3083 = vmatprep.mubr.bf16.mxu0 0
      %3084 = vmatmul.mubr.bf16.gmra.mxu0 %v3017
      %v3085 = vpop.f32.mrf.mxu0
      %v3086 = vadd.f32 %v2926, %v3085
      %v3087 = vpop.f32.mrf.mxu0
      %v3088 = vadd.f32 %v2926, %v3087
      %v3089 = vpop.f32.mrf.mxu0
      %v3090 = vadd.f32 %v2931, %v3089
      %v3091 = vpop.f32.mrf.mxu0
      %v3092 = vadd.f32 %v2931, %v3091
      %3093 = vmatprep.mubr.bf16.mxu0 0
      %3094 = vmatmul.mubr.bf16.gmra.mxu0 %v3018
      %v3095 = vpop.f32.mrf.mxu0
      %v3096 = vadd.f32 %v2936, %v3095
      %v3097 = vpop.f32.mrf.mxu0
      %v3098 = vadd.f32 %v2936, %v3097
      %v3099 = vpop.f32.mrf.mxu0
      %v3100 = vadd.f32 %v2941, %v3099
      %v3101 = vpop.f32.mrf.mxu0
      %v3102 = vadd.f32 %v2941, %v3101
      %3103 = vmatprep.mubr.bf16.mxu0 0
      %3104 = vmatmul.mubr.bf16.gmra.mxu0 %v3019
      %v3105 = vpop.f32.mrf.mxu0
      %v3106 = vadd.f32 %v2946, %v3105
      %v3107 = vpop.f32.mrf.mxu0
      %v3108 = vadd.f32 %v2946, %v3107
      %v3109 = vpop.f32.mrf.mxu0
      %v3110 = vadd.f32 %v2951, %v3109
      %v3111 = vpop.f32.mrf.mxu0
      %v3112 = vadd.f32 %v2951, %v3111
      %3113 = vmatprep.mubr.bf16.mxu0 0
      %3114 = vmatmul.mubr.bf16.gmra.mxu0 %v3020
      %v3115 = vpop.f32.mrf.mxu0
      %v3116 = vadd.f32 %v2956, %v3115
      %v3117 = vpop.f32.mrf.mxu0
      %v3118 = vadd.f32 %v2956, %v3117
      %v3119 = vpop.f32.mrf.mxu0
      %v3120 = vadd.f32 %v2961, %v3119
      %v3121 = vpop.f32.mrf.mxu0
      %v3122 = vadd.f32 %v2961, %v3121
      %3123 = vmatprep.mubr.bf16.mxu0 0
      %3124 = vmatmul.mubr.bf16.gmra.mxu0 %v3021
      %v3125 = vpop.f32.mrf.mxu0
      %v3126 = vadd.f32 %v2966, %v3125
      %v3127 = vpop.f32.mrf.mxu0
      %v3128 = vadd.f32 %v2966, %v3127
      %v3129 = vpop.f32.mrf.mxu0
      %v3130 = vadd.f32 %v2971, %v3129
      %v3131 = vpop.f32.mrf.mxu0
      %v3132 = vadd.f32 %v2971, %v3131
      %3133 = vmatprep.mubr.bf16.mxu0 0
      %3134 = vmatmul.mubr.bf16.gmra.mxu0 %v3022
      %v3135 = vpop.f32.mrf.mxu0
      %v3136 = vadd.f32 %v2976, %v3135
      %v3137 = vpop.f32.mrf.mxu0
      %v3138 = vadd.f32 %v2976, %v3137
      %v3139 = vpop.f32.mrf.mxu0
      %v3140 = vadd.f32 %v2981, %v3139
      %v3141 = vpop.f32.mrf.mxu0
      %v3142 = vadd.f32 %v2981, %v3141
      %3143 = vdwg.mxu0
      %3144 = vmatprep.subr.bf16.mxu0 %v2902
      %3145 = vmatpush1.bf16.msra.mxu0 %v2901
      %3146 = vmatprep.subr.bf16.mxu0 %v2898
      %3147 = vmatpush1.bf16.msra.mxu0 %v2897
      %3148 = vmatprep.subr.bf16.mxu0 %v2894
      %3149 = vmatpush1.bf16.msra.mxu0 %v2893
      %3150 = vmatprep.subr.bf16.mxu0 %v2890
      %3151 = vmatpush1.bf16.msra.mxu0 %v2889
      %3152 = vmatprep.subr.bf16.mxu0 %v2886
      %3153 = vmatpush1.bf16.msra.mxu0 %v2885
      %3154 = vmatprep.subr.bf16.mxu0 %v2882
      %3155 = vmatpush1.bf16.msra.mxu0 %v2881
      %3156 = vmatprep.subr.bf16.mxu0 %v2878
      %3157 = vmatpush1.bf16.msra.mxu0 %v2877
      %3158 = vmatprep.subr.bf16.mxu0 %v2874
      %3159 = vmatpush1.bf16.msra.mxu0 %v2873
      %3160 = vmatprep.subr.bf16.mxu0 0
      %3161 = vmatpush2.bf16.msra.mxu0 0
      %3162 = vmatprep.subr.bf16.mxu0 0
      %3163 = vmatpush2.bf16.msra.mxu0 0
      %3164 = vmatprep.subr.bf16.mxu0 0
      %3165 = vmatpush2.bf16.msra.mxu0 0
      %3166 = vmatprep.subr.bf16.mxu0 0
      %3167 = vmatpush2.bf16.msra.mxu0 0
      %3168 = vmatprep.subr.bf16.mxu0 0
      %3169 = vmatpush2.bf16.msra.mxu0 0
      %3170 = vmatprep.subr.bf16.mxu0 0
      %3171 = vmatpush2.bf16.msra.mxu0 0
      %3172 = vmatprep.subr.bf16.mxu0 0
      %3173 = vmatpush2.bf16.msra.mxu0 0
      %3174 = vmatprep.subr.bf16.mxu0 0
      %3175 = vmatpush2.bf16.msra.mxu0 0
      %3176 = vmatprep.mubr.bf16.mxu0 0
      %3177 = vmatmul.mubr.bf16.gmra.mxu0 %v3015
      %v3178 = vpop.f32.mrf.mxu0
      %v3179 = vadd.f32 %v2906, %v3178
      %v3180 = vpop.f32.mrf.mxu0
      %v3181 = vadd.f32 %v2906, %v3180
      %v3182 = vpop.f32.mrf.mxu0
      %v3183 = vadd.f32 %v2911, %v3182
      %v3184 = vpop.f32.mrf.mxu0
      %v3185 = vadd.f32 %v2911, %v3184
      %3186 = vmatprep.mubr.bf16.mxu0 0
      %3187 = vmatmul.mubr.bf16.gmra.mxu0 %v3016
      %v3188 = vpop.f32.mrf.mxu0
      %v3189 = vadd.f32 %v2916, %v3188
      %v3190 = vpop.f32.mrf.mxu0
      %v3191 = vadd.f32 %v2916, %v3190
      %v3192 = vpop.f32.mrf.mxu0
      %v3193 = vadd.f32 %v2921, %v3192
      %v3194 = vpop.f32.mrf.mxu0
      %v3195 = vadd.f32 %v2921, %v3194
      %3196 = vmatprep.mubr.bf16.mxu0 0
      %3197 = vmatmul.mubr.bf16.gmra.mxu0 %v3017
      %v3198 = vpop.f32.mrf.mxu0
      %v3199 = vadd.f32 %v2926, %v3198
      %v3200 = vpop.f32.mrf.mxu0
      %v3201 = vadd.f32 %v2926, %v3200
      %v3202 = vpop.f32.mrf.mxu0
      %v3203 = vadd.f32 %v2931, %v3202
      %v3204 = vpop.f32.mrf.mxu0
      %v3205 = vadd.f32 %v2931, %v3204
      %3206 = vmatprep.mubr.bf16.mxu0 0
      %3207 = vmatmul.mubr.bf16.gmra.mxu0 %v3018
      %v3208 = vpop.f32.mrf.mxu0
      %v3209 = vadd.f32 %v2936, %v3208
      %v3210 = vpop.f32.mrf.mxu0
      %v3211 = vadd.f32 %v2936, %v3210
      %v3212 = vpop.f32.mrf.mxu0
      %v3213 = vadd.f32 %v2941, %v3212
      %v3214 = vpop.f32.mrf.mxu0
      %v3215 = vadd.f32 %v2941, %v3214
      %3216 = vmatprep.mubr.bf16.mxu0 0
      %3217 = vmatmul.mubr.bf16.gmra.mxu0 %v3019
      %v3218 = vpop.f32.mrf.mxu0
      %v3219 = vadd.f32 %v2946, %v3218
      %v3220 = vpop.f32.mrf.mxu0
      %v3221 = vadd.f32 %v2946, %v3220
      %v3222 = vpop.f32.mrf.mxu0
      %v3223 = vadd.f32 %v2951, %v3222
      %v3224 = vpop.f32.mrf.mxu0
      %v3225 = vadd.f32 %v2951, %v3224
      %3226 = vmatprep.mubr.bf16.mxu0 0
      %3227 = vmatmul.mubr.bf16.gmra.mxu0 %v3020
      %v3228 = vpop.f32.mrf.mxu0
      %v3229 = vadd.f32 %v2956, %v3228
      %v3230 = vpop.f32.mrf.mxu0
      %v3231 = vadd.f32 %v2956, %v3230
      %v3232 = vpop.f32.mrf.mxu0
      %v3233 = vadd.f32 %v2961, %v3232
      %v3234 = vpop.f32.mrf.mxu0
      %v3235 = vadd.f32 %v2961, %v3234
      %3236 = vmatprep.mubr.bf16.mxu0 0
      %3237 = vmatmul.mubr.bf16.gmra.mxu0 %v3021
      %v3238 = vpop.f32.mrf.mxu0
      %v3239 = vadd.f32 %v2966, %v3238
      %v3240 = vpop.f32.mrf.mxu0
      %v3241 = vadd.f32 %v2966, %v3240
      %v3242 = vpop.f32.mrf.mxu0
      %v3243 = vadd.f32 %v2971, %v3242
      %v3244 = vpop.f32.mrf.mxu0
      %v3245 = vadd.f32 %v2971, %v3244
      %3246 = vmatprep.mubr.bf16.mxu0 0
      %3247 = vmatmul.mubr.bf16.gmra.mxu0 %v3022
      %v3248 = vpop.f32.mrf.mxu0
      %v3249 = vadd.f32 %v2976, %v3248
      %v3250 = vpop.f32.mrf.mxu0
      %v3251 = vadd.f32 %v2976, %v3250
      %v3252 = vpop.f32.mrf.mxu0
      %v3253 = vadd.f32 %v2981, %v3252
      %v3254 = vpop.f32.mrf.mxu0
      %v3255 = vadd.f32 %v2981, %v3254
      %3256 = vdwg.mxu0
      %v3257 = vtanh.pop %v3066
      %v3258 = vtanh.pop %v3068
      %v3259 = vtanh.pop %v3179
      %v3260 = vtanh.pop %v3181
      %v3261 = vtanh.pop %v3070
      %v3262 = vtanh.pop %v3072
      %v3263 = vtanh.pop %v3183
      %v3264 = vtanh.pop %v3185
      %v3265 = vtanh.pop %v3076
      %v3266 = vtanh.pop %v3078
      %v3267 = vtanh.pop %v3189
      %v3268 = vtanh.pop %v3191
      %v3269 = vtanh.pop %v3080
      %v3270 = vtanh.pop %v3082
      %v3271 = vtanh.pop %v3193
      %v3272 = vtanh.pop %v3195
      %v3273 = vtanh.pop %v3086
      %v3274 = vtanh.pop %v3088
      %v3275 = vtanh.pop %v3199
      %v3276 = vtanh.pop %v3201
      %v3277 = vtanh.pop %v3090
      %v3278 = vtanh.pop %v3092
      %v3279 = vtanh.pop %v3203
      %v3280 = vtanh.pop %v3205
      %v3281 = vtanh.pop %v3096
      %v3282 = vtanh.pop %v3098
      %v3283 = vtanh.pop %v3209
      %v3284 = vtanh.pop %v3211
      %v3285 = vtanh.pop %v3100
      %v3286 = vtanh.pop %v3102
      %v3287 = vtanh.pop %v3213
      %v3288 = vtanh.pop %v3215
      %v3289 = vtanh.pop %v3106
      %v3290 = vtanh.pop %v3108
      %v3291 = vtanh.pop %v3219
      %v3292 = vtanh.pop %v3221
      %v3293 = vtanh.pop %v3110
      %v3294 = vtanh.pop %v3112
      %v3295 = vtanh.pop %v3223
      %v3296 = vtanh.pop %v3225
      %v3297 = vtanh.pop %v3116
      %v3298 = vtanh.pop %v3118
      %v3299 = vtanh.pop %v3229
      %v3300 = vtanh.pop %v3231
      %v3301 = vtanh.pop %v3120
      %v3302 = vtanh.pop %v3122
      %v3303 = vtanh.pop %v3233
      %v3304 = vtanh.pop %v3235
      %v3305 = vtanh.pop %v3126
      %v3306 = vtanh.pop %v3128
      %v3307 = vtanh.pop %v3239
      %v3308 = vtanh.pop %v3241
      %v3309 = vtanh.pop %v3130
      %v3310 = vtanh.pop %v3132
      %v3311 = vtanh.pop %v3243
      %v3312 = vtanh.pop %v3245
      %v3313 = vtanh.pop %v3136
      %v3314 = vtanh.pop %v3138
      %v3315 = vtanh.pop %v3249
      %v3316 = vtanh.pop %v3251
      %v3317 = vtanh.pop %v3140
      %v3318 = vtanh.pop %v3142
      %v3319 = vtanh.pop %v3253
      %v3320 = vtanh.pop %v3255
      %v3321 = vpack.c.bf16 %v3261, %v3257
      %v3322 = vpack.c.bf16 %v3262, %v3258
      %v3323 = vpack.c.bf16 %v3263, %v3259
      %v3324 = vpack.c.bf16 %v3264, %v3260
      %v3325 = vpack.c.bf16 %v3269, %v3265
      %v3326 = vpack.c.bf16 %v3270, %v3266
      %v3327 = vpack.c.bf16 %v3271, %v3267
      %v3328 = vpack.c.bf16 %v3272, %v3268
      %v3329 = vpack.c.bf16 %v3277, %v3273
      %v3330 = vpack.c.bf16 %v3278, %v3274
      %v3331 = vpack.c.bf16 %v3279, %v3275
      %v3332 = vpack.c.bf16 %v3280, %v3276
      %v3333 = vpack.c.bf16 %v3285, %v3281
      %v3334 = vpack.c.bf16 %v3286, %v3282
      %v3335 = vpack.c.bf16 %v3287, %v3283
      %v3336 = vpack.c.bf16 %v3288, %v3284
      %v3337 = vpack.c.bf16 %v3293, %v3289
      %v3338 = vpack.c.bf16 %v3294, %v3290
      %v3339 = vpack.c.bf16 %v3295, %v3291
      %v3340 = vpack.c.bf16 %v3296, %v3292
      %v3341 = vpack.c.bf16 %v3301, %v3297
      %v3342 = vpack.c.bf16 %v3302, %v3298
      %v3343 = vpack.c.bf16 %v3303, %v3299
      %v3344 = vpack.c.bf16 %v3304, %v3300
      %v3345 = vpack.c.bf16 %v3309, %v3305
      %v3346 = vpack.c.bf16 %v3310, %v3306
      %v3347 = vpack.c.bf16 %v3311, %v3307
      %v3348 = vpack.c.bf16 %v3312, %v3308
      %v3349 = vpack.c.bf16 %v3317, %v3313
      %v3350 = vpack.c.bf16 %v3318, %v3314
      %v3351 = vpack.c.bf16 %v3319, %v3315
      %v3352 = vpack.c.bf16 %v3320, %v3316
      %3354 = vset.pattern.permute.xlu0 0
      %3355 = vperm.xlu0 %3354, %v1270
      %v3356 = vpop.permute.xlu0 %3355
      %3359 = vset.pattern.permute.xlu0 0
      %3360 = vperm.xlu0 %3359, %v1271
      %v3361 = vpop.permute.xlu0 %3360
      %3364 = vset.pattern.permute.xlu0 0
      %3365 = vperm.xlu0 %3364, %v1272
      %v3366 = vpop.permute.xlu0 %3365
      %3369 = vset.pattern.permute.xlu0 0
      %3370 = vperm.xlu0 %3369, %v1273
      %v3371 = vpop.permute.xlu0 %3370
      %3374 = vset.pattern.permute.xlu0 0
      %3375 = vperm.xlu0 %3374, %v1274
      %v3376 = vpop.permute.xlu0 %3375
      %3379 = vset.pattern.permute.xlu0 0
      %3380 = vperm.xlu0 %3379, %v1275
      %v3381 = vpop.permute.xlu0 %3380
      %3384 = vset.pattern.permute.xlu0 0
      %3385 = vperm.xlu0 %3384, %v1276
      %v3386 = vpop.permute.xlu0 %3385
      %3389 = vset.pattern.permute.xlu0 0
      %3390 = vperm.xlu0 %3389, %v1277
      %v3391 = vpop.permute.xlu0 %3390
      %3394 = vset.pattern.permute.xlu0 0
      %3395 = vperm.xlu0 %3394, %v1278
      %v3396 = vpop.permute.xlu0 %3395
      %3399 = vset.pattern.permute.xlu0 0
      %3400 = vperm.xlu0 %3399, %v1279
      %v3401 = vpop.permute.xlu0 %3400
      %3404 = vset.pattern.permute.xlu0 0
      %3405 = vperm.xlu0 %3404, %v1280
      %v3406 = vpop.permute.xlu0 %3405
      %3409 = vset.pattern.permute.xlu0 0
      %3410 = vperm.xlu0 %3409, %v1281
      %v3411 = vpop.permute.xlu0 %3410
      %3414 = vset.pattern.permute.xlu0 0
      %3415 = vperm.xlu0 %3414, %v1282
      %v3416 = vpop.permute.xlu0 %3415
      %3419 = vset.pattern.permute.xlu0 0
      %3420 = vperm.xlu0 %3419, %v1283
      %v3421 = vpop.permute.xlu0 %3420
      %3424 = vset.pattern.permute.xlu0 0
      %3425 = vperm.xlu0 %3424, %v1284
      %v3426 = vpop.permute.xlu0 %3425
      %3429 = vset.pattern.permute.xlu0 0
      %3430 = vperm.xlu0 %3429, %v1285
      %v3431 = vpop.permute.xlu0 %3430
      %v3449 = vunpack.c.l.b16 %v1318
      %v3450 = vunpack.c.l.b16 %v1319
      %v3451 = vunpack.c.l.b16 %v1320
      %v3452 = vunpack.c.l.b16 %v1321
      %v3453 = vunpack.c.l.b16 %v1322
      %v3454 = vunpack.c.l.b16 %v1323
      %v3455 = vunpack.c.l.b16 %v1324
      %v3456 = vunpack.c.l.b16 %v1325
      %v3457 = vunpack.c.l.b16 %v1326
      %v3458 = vunpack.c.l.b16 %v1327
      %v3459 = vunpack.c.l.b16 %v1328
      %v3460 = vunpack.c.l.b16 %v1329
      %v3461 = vunpack.c.l.b16 %v1330
      %v3462 = vunpack.c.l.b16 %v1331
      %v3463 = vunpack.c.l.b16 %v1332
      %v3464 = vunpack.c.l.b16 %v1333
      %v3465 = vpack.c.b16 %v3450, %v3449
      %v3466 = vpack.c.b16 %v3452, %v3451
      %v3467 = vpack.c.b16 %v3454, %v3453
      %v3468 = vpack.c.b16 %v3456, %v3455
      %v3469 = vpack.c.b16 %v3458, %v3457
      %v3470 = vpack.c.b16 %v3460, %v3459
      %v3471 = vpack.c.b16 %v3462, %v3461
      %v3472 = vpack.c.b16 %v3464, %v3463
      %3481 = vmatprep.subr.bf16.mxu0 %v3350
      %3482 = vmatpush1.bf16.msra.mxu0 %v3349
      %3483 = vmatprep.subr.bf16.mxu0 %v3346
      %3484 = vmatpush1.bf16.msra.mxu0 %v3345
      %3485 = vmatprep.subr.bf16.mxu0 %v3342
      %3486 = vmatpush1.bf16.msra.mxu0 %v3341
      %3487 = vmatprep.subr.bf16.mxu0 %v3338
      %3488 = vmatpush1.bf16.msra.mxu0 %v3337
      %3489 = vmatprep.subr.bf16.mxu0 %v3334
      %3490 = vmatpush1.bf16.msra.mxu0 %v3333
      %3491 = vmatprep.subr.bf16.mxu0 %v3330
      %3492 = vmatpush1.bf16.msra.mxu0 %v3329
      %3493 = vmatprep.subr.bf16.mxu0 %v3326
      %3494 = vmatpush1.bf16.msra.mxu0 %v3325
      %3495 = vmatprep.subr.bf16.mxu0 %v3322
      %3496 = vmatpush1.bf16.msra.mxu0 %v3321
      %3497 = vmatprep.subr.bf16.mxu0 0
      %3498 = vmatpush2.bf16.msra.mxu0 0
      %3499 = vmatprep.subr.bf16.mxu0 0
      %3500 = vmatpush2.bf16.msra.mxu0 0
      %3501 = vmatprep.subr.bf16.mxu0 0
      %3502 = vmatpush2.bf16.msra.mxu0 0
      %3503 = vmatprep.subr.bf16.mxu0 0
      %3504 = vmatpush2.bf16.msra.mxu0 0
      %3505 = vmatprep.subr.bf16.mxu0 0
      %3506 = vmatpush2.bf16.msra.mxu0 0
      %3507 = vmatprep.subr.bf16.mxu0 0
      %3508 = vmatpush2.bf16.msra.mxu0 0
      %3509 = vmatprep.subr.bf16.mxu0 0
      %3510 = vmatpush2.bf16.msra.mxu0 0
      %3511 = vmatprep.subr.bf16.mxu0 0
      %3512 = vmatpush2.bf16.msra.mxu0 0
      %3513 = vmatprep.mubr.bf16.mxu0 0
      %3514 = vmatmul.mubr.bf16.gmra.mxu0 %v3465
      %v3515 = vpop.f32.mrf.mxu0
      %v3516 = vadd.f32 %v3356, %v3515
      %v3517 = vpop.f32.mrf.mxu0
      %v3518 = vadd.f32 %v3356, %v3517
      %v3519 = vpop.f32.mrf.mxu0
      %v3520 = vadd.f32 %v3361, %v3519
      %v3521 = vpop.f32.mrf.mxu0
      %v3522 = vadd.f32 %v3361, %v3521
      %3523 = vmatprep.mubr.bf16.mxu0 0
      %3524 = vmatmul.mubr.bf16.gmra.mxu0 %v3466
      %v3525 = vpop.f32.mrf.mxu0
      %v3526 = vadd.f32 %v3366, %v3525
      %v3527 = vpop.f32.mrf.mxu0
      %v3528 = vadd.f32 %v3366, %v3527
      %v3529 = vpop.f32.mrf.mxu0
      %v3530 = vadd.f32 %v3371, %v3529
      %v3531 = vpop.f32.mrf.mxu0
      %v3532 = vadd.f32 %v3371, %v3531
      %3533 = vmatprep.mubr.bf16.mxu0 0
      %3534 = vmatmul.mubr.bf16.gmra.mxu0 %v3467
      %v3535 = vpop.f32.mrf.mxu0
      %v3536 = vadd.f32 %v3376, %v3535
      %v3537 = vpop.f32.mrf.mxu0
      %v3538 = vadd.f32 %v3376, %v3537
      %v3539 = vpop.f32.mrf.mxu0
      %v3540 = vadd.f32 %v3381, %v3539
      %v3541 = vpop.f32.mrf.mxu0
      %v3542 = vadd.f32 %v3381, %v3541
      %3543 = vmatprep.mubr.bf16.mxu0 0
      %3544 = vmatmul.mubr.bf16.gmra.mxu0 %v3468
      %v3545 = vpop.f32.mrf.mxu0
      %v3546 = vadd.f32 %v3386, %v3545
      %v3547 = vpop.f32.mrf.mxu0
      %v3548 = vadd.f32 %v3386, %v3547
      %v3549 = vpop.f32.mrf.mxu0
      %v3550 = vadd.f32 %v3391, %v3549
      %v3551 = vpop.f32.mrf.mxu0
      %v3552 = vadd.f32 %v3391, %v3551
      %3553 = vmatprep.mubr.bf16.mxu0 0
      %3554 = vmatmul.mubr.bf16.gmra.mxu0 %v3469
      %v3555 = vpop.f32.mrf.mxu0
      %v3556 = vadd.f32 %v3396, %v3555
      %v3557 = vpop.f32.mrf.mxu0
      %v3558 = vadd.f32 %v3396, %v3557
      %v3559 = vpop.f32.mrf.mxu0
      %v3560 = vadd.f32 %v3401, %v3559
      %v3561 = vpop.f32.mrf.mxu0
      %v3562 = vadd.f32 %v3401, %v3561
      %3563 = vmatprep.mubr.bf16.mxu0 0
      %3564 = vmatmul.mubr.bf16.gmra.mxu0 %v3470
      %v3565 = vpop.f32.mrf.mxu0
      %v3566 = vadd.f32 %v3406, %v3565
      %v3567 = vpop.f32.mrf.mxu0
      %v3568 = vadd.f32 %v3406, %v3567
      %v3569 = vpop.f32.mrf.mxu0
      %v3570 = vadd.f32 %v3411, %v3569
      %v3571 = vpop.f32.mrf.mxu0
      %v3572 = vadd.f32 %v3411, %v3571
      %3573 = vmatprep.mubr.bf16.mxu0 0
      %3574 = vmatmul.mubr.bf16.gmra.mxu0 %v3471
      %v3575 = vpop.f32.mrf.mxu0
      %v3576 = vadd.f32 %v3416, %v3575
      %v3577 = vpop.f32.mrf.mxu0
      %v3578 = vadd.f32 %v3416, %v3577
      %v3579 = vpop.f32.mrf.mxu0
      %v3580 = vadd.f32 %v3421, %v3579
      %v3581 = vpop.f32.mrf.mxu0
      %v3582 = vadd.f32 %v3421, %v3581
      %3583 = vmatprep.mubr.bf16.mxu0 0
      %3584 = vmatmul.mubr.bf16.gmra.mxu0 %v3472
      %v3585 = vpop.f32.mrf.mxu0
      %v3586 = vadd.f32 %v3426, %v3585
      %v3587 = vpop.f32.mrf.mxu0
      %v3588 = vadd.f32 %v3426, %v3587
      %v3589 = vpop.f32.mrf.mxu0
      %v3590 = vadd.f32 %v3431, %v3589
      %v3591 = vpop.f32.mrf.mxu0
      %v3592 = vadd.f32 %v3431, %v3591
      %3593 = vdwg.mxu0
      %3594 = vmatprep.subr.bf16.mxu0 %v3352
      %3595 = vmatpush1.bf16.msra.mxu0 %v3351
      %3596 = vmatprep.subr.bf16.mxu0 %v3348
      %3597 = vmatpush1.bf16.msra.mxu0 %v3347
      %3598 = vmatprep.subr.bf16.mxu0 %v3344
      %3599 = vmatpush1.bf16.msra.mxu0 %v3343
      %3600 = vmatprep.subr.bf16.mxu0 %v3340
      %3601 = vmatpush1.bf16.msra.mxu0 %v3339
      %3602 = vmatprep.subr.bf16.mxu0 %v3336
      %3603 = vmatpush1.bf16.msra.mxu0 %v3335
      %3604 = vmatprep.subr.bf16.mxu0 %v3332
      %3605 = vmatpush1.bf16.msra.mxu0 %v3331
      %3606 = vmatprep.subr.bf16.mxu0 %v3328
      %3607 = vmatpush1.bf16.msra.mxu0 %v3327
      %3608 = vmatprep.subr.bf16.mxu0 %v3324
      %3609 = vmatpush1.bf16.msra.mxu0 %v3323
      %3610 = vmatprep.subr.bf16.mxu0 0
      %3611 = vmatpush2.bf16.msra.mxu0 0
      %3612 = vmatprep.subr.bf16.mxu0 0
      %3613 = vmatpush2.bf16.msra.mxu0 0
      %3614 = vmatprep.subr.bf16.mxu0 0
      %3615 = vmatpush2.bf16.msra.mxu0 0
      %3616 = vmatprep.subr.bf16.mxu0 0
      %3617 = vmatpush2.bf16.msra.mxu0 0
      %3618 = vmatprep.subr.bf16.mxu0 0
      %3619 = vmatpush2.bf16.msra.mxu0 0
      %3620 = vmatprep.subr.bf16.mxu0 0
      %3621 = vmatpush2.bf16.msra.mxu0 0
      %3622 = vmatprep.subr.bf16.mxu0 0
      %3623 = vmatpush2.bf16.msra.mxu0 0
      %3624 = vmatprep.subr.bf16.mxu0 0
      %3625 = vmatpush2.bf16.msra.mxu0 0
      %3626 = vmatprep.mubr.bf16.mxu0 0
      %3627 = vmatmul.mubr.bf16.gmra.mxu0 %v3465
      %v3628 = vpop.f32.mrf.mxu0
      %v3629 = vadd.f32 %v3356, %v3628
      %v3630 = vpop.f32.mrf.mxu0
      %v3631 = vadd.f32 %v3356, %v3630
      %v3632 = vpop.f32.mrf.mxu0
      %v3633 = vadd.f32 %v3361, %v3632
      %v3634 = vpop.f32.mrf.mxu0
      %v3635 = vadd.f32 %v3361, %v3634
      %3636 = vmatprep.mubr.bf16.mxu0 0
      %3637 = vmatmul.mubr.bf16.gmra.mxu0 %v3466
      %v3638 = vpop.f32.mrf.mxu0
      %v3639 = vadd.f32 %v3366, %v3638
      %v3640 = vpop.f32.mrf.mxu0
      %v3641 = vadd.f32 %v3366, %v3640
      %v3642 = vpop.f32.mrf.mxu0
      %v3643 = vadd.f32 %v3371, %v3642
      %v3644 = vpop.f32.mrf.mxu0
      %v3645 = vadd.f32 %v3371, %v3644
      %3646 = vmatprep.mubr.bf16.mxu0 0
      %3647 = vmatmul.mubr.bf16.gmra.mxu0 %v3467
      %v3648 = vpop.f32.mrf.mxu0
      %v3649 = vadd.f32 %v3376, %v3648
      %v3650 = vpop.f32.mrf.mxu0
      %v3651 = vadd.f32 %v3376, %v3650
      %v3652 = vpop.f32.mrf.mxu0
      %v3653 = vadd.f32 %v3381, %v3652
      %v3654 = vpop.f32.mrf.mxu0
      %v3655 = vadd.f32 %v3381, %v3654
      %3656 = vmatprep.mubr.bf16.mxu0 0
      %3657 = vmatmul.mubr.bf16.gmra.mxu0 %v3468
      %v3658 = vpop.f32.mrf.mxu0
      %v3659 = vadd.f32 %v3386, %v3658
      %v3660 = vpop.f32.mrf.mxu0
      %v3661 = vadd.f32 %v3386, %v3660
      %v3662 = vpop.f32.mrf.mxu0
      %v3663 = vadd.f32 %v3391, %v3662
      %v3664 = vpop.f32.mrf.mxu0
      %v3665 = vadd.f32 %v3391, %v3664
      %3666 = vmatprep.mubr.bf16.mxu0 0
      %3667 = vmatmul.mubr.bf16.gmra.mxu0 %v3469
      %v3668 = vpop.f32.mrf.mxu0
      %v3669 = vadd.f32 %v3396, %v3668
      %v3670 = vpop.f32.mrf.mxu0
      %v3671 = vadd.f32 %v3396, %v3670
      %v3672 = vpop.f32.mrf.mxu0
      %v3673 = vadd.f32 %v3401, %v3672
      %v3674 = vpop.f32.mrf.mxu0
      %v3675 = vadd.f32 %v3401, %v3674
      %3676 = vmatprep.mubr.bf16.mxu0 0
      %3677 = vmatmul.mubr.bf16.gmra.mxu0 %v3470
      %v3678 = vpop.f32.mrf.mxu0
      %v3679 = vadd.f32 %v3406, %v3678
      %v3680 = vpop.f32.mrf.mxu0
      %v3681 = vadd.f32 %v3406, %v3680
      %v3682 = vpop.f32.mrf.mxu0
      %v3683 = vadd.f32 %v3411, %v3682
      %v3684 = vpop.f32.mrf.mxu0
      %v3685 = vadd.f32 %v3411, %v3684
      %3686 = vmatprep.mubr.bf16.mxu0 0
      %3687 = vmatmul.mubr.bf16.gmra.mxu0 %v3471
      %v3688 = vpop.f32.mrf.mxu0
      %v3689 = vadd.f32 %v3416, %v3688
      %v3690 = vpop.f32.mrf.mxu0
      %v3691 = vadd.f32 %v3416, %v3690
      %v3692 = vpop.f32.mrf.mxu0
      %v3693 = vadd.f32 %v3421, %v3692
      %v3694 = vpop.f32.mrf.mxu0
      %v3695 = vadd.f32 %v3421, %v3694
      %3696 = vmatprep.mubr.bf16.mxu0 0
      %3697 = vmatmul.mubr.bf16.gmra.mxu0 %v3472
      %v3698 = vpop.f32.mrf.mxu0
      %v3699 = vadd.f32 %v3426, %v3698
      %v3700 = vpop.f32.mrf.mxu0
      %v3701 = vadd.f32 %v3426, %v3700
      %v3702 = vpop.f32.mrf.mxu0
      %v3703 = vadd.f32 %v3431, %v3702
      %v3704 = vpop.f32.mrf.mxu0
      %v3705 = vadd.f32 %v3431, %v3704
      %3706 = vdwg.mxu0
      %v3707 = vtanh.pop %v3516
      %v3708 = vtanh.pop %v3518
      %v3709 = vtanh.pop %v3629
      %v3710 = vtanh.pop %v3631
      %v3711 = vtanh.pop %v3520
      %v3712 = vtanh.pop %v3522
      %v3713 = vtanh.pop %v3633
      %v3714 = vtanh.pop %v3635
      %v3715 = vtanh.pop %v3526
      %v3716 = vtanh.pop %v3528
      %v3717 = vtanh.pop %v3639
      %v3718 = vtanh.pop %v3641
      %v3719 = vtanh.pop %v3530
      %v3720 = vtanh.pop %v3532
      %v3721 = vtanh.pop %v3643
      %v3722 = vtanh.pop %v3645
      %v3723 = vtanh.pop %v3536
      %v3724 = vtanh.pop %v3538
      %v3725 = vtanh.pop %v3649
      %v3726 = vtanh.pop %v3651
      %v3727 = vtanh.pop %v3540
      %v3728 = vtanh.pop %v3542
      %v3729 = vtanh.pop %v3653
      %v3730 = vtanh.pop %v3655
      %v3731 = vtanh.pop %v3546
      %v3732 = vtanh.pop %v3548
      %v3733 = vtanh.pop %v3659
      %v3734 = vtanh.pop %v3661
      %v3735 = vtanh.pop %v3550
      %v3736 = vtanh.pop %v3552
      %v3737 = vtanh.pop %v3663
      %v3738 = vtanh.pop %v3665
      %v3739 = vtanh.pop %v3556
      %v3740 = vtanh.pop %v3558
      %v3741 = vtanh.pop %v3669
      %v3742 = vtanh.pop %v3671
      %v3743 = vtanh.pop %v3560
      %v3744 = vtanh.pop %v3562
      %v3745 = vtanh.pop %v3673
      %v3746 = vtanh.pop %v3675
      %v3747 = vtanh.pop %v3566
      %v3748 = vtanh.pop %v3568
      %v3749 = vtanh.pop %v3679
      %v3750 = vtanh.pop %v3681
      %v3751 = vtanh.pop %v3570
      %v3752 = vtanh.pop %v3572
      %v3753 = vtanh.pop %v3683
      %v3754 = vtanh.pop %v3685
      %v3755 = vtanh.pop %v3576
      %v3756 = vtanh.pop %v3578
      %v3757 = vtanh.pop %v3689
      %v3758 = vtanh.pop %v3691
      %v3759 = vtanh.pop %v3580
      %v3760 = vtanh.pop %v3582
      %v3761 = vtanh.pop %v3693
      %v3762 = vtanh.pop %v3695
      %v3763 = vtanh.pop %v3586
      %v3764 = vtanh.pop %v3588
      %v3765 = vtanh.pop %v3699
      %v3766 = vtanh.pop %v3701
      %v3767 = vtanh.pop %v3590
      %v3768 = vtanh.pop %v3592
      %v3769 = vtanh.pop %v3703
      %v3770 = vtanh.pop %v3705
      %v3771 = vpack.c.bf16 %v3711, %v3707
      %v3772 = vpack.c.bf16 %v3712, %v3708
      %v3773 = vpack.c.bf16 %v3713, %v3709
      %v3774 = vpack.c.bf16 %v3714, %v3710
      %v3775 = vpack.c.bf16 %v3719, %v3715
      %v3776 = vpack.c.bf16 %v3720, %v3716
      %v3777 = vpack.c.bf16 %v3721, %v3717
      %v3778 = vpack.c.bf16 %v3722, %v3718
      %v3779 = vpack.c.bf16 %v3727, %v3723
      %v3780 = vpack.c.bf16 %v3728, %v3724
      %v3781 = vpack.c.bf16 %v3729, %v3725
      %v3782 = vpack.c.bf16 %v3730, %v3726
      %v3783 = vpack.c.bf16 %v3735, %v3731
      %v3784 = vpack.c.bf16 %v3736, %v3732
      %v3785 = vpack.c.bf16 %v3737, %v3733
      %v3786 = vpack.c.bf16 %v3738, %v3734
      %v3787 = vpack.c.bf16 %v3743, %v3739
      %v3788 = vpack.c.bf16 %v3744, %v3740
      %v3789 = vpack.c.bf16 %v3745, %v3741
      %v3790 = vpack.c.bf16 %v3746, %v3742
      %v3791 = vpack.c.bf16 %v3751, %v3747
      %v3792 = vpack.c.bf16 %v3752, %v3748
      %v3793 = vpack.c.bf16 %v3753, %v3749
      %v3794 = vpack.c.bf16 %v3754, %v3750
      %v3795 = vpack.c.bf16 %v3759, %v3755
      %v3796 = vpack.c.bf16 %v3760, %v3756
      %v3797 = vpack.c.bf16 %v3761, %v3757
      %v3798 = vpack.c.bf16 %v3762, %v3758
      %v3799 = vpack.c.bf16 %v3767, %v3763
      %v3800 = vpack.c.bf16 %v3768, %v3764
      %v3801 = vpack.c.bf16 %v3769, %v3765
      %v3802 = vpack.c.bf16 %v3770, %v3766
      %v3803 = vld [vmem:[%s6] sm:$0x3]
      %v3804 = vld [vmem:[%s7] sm:$0xf]
      %3806 = vset.pattern.permute.xlu0 0
      %3807 = vperm.xlu0 %3806, %v3804
      %v3808 = vpop.permute.xlu0 %3807
      %3810 = vmatprep.subr.bf16.mxu0 %v3800
      %3811 = vmatpush1.bf16.msra.mxu0 %v3799
      %3812 = vmatprep.subr.bf16.mxu0 %v3796
      %3813 = vmatpush1.bf16.msra.mxu0 %v3795
      %3814 = vmatprep.subr.bf16.mxu0 %v3792
      %3815 = vmatpush1.bf16.msra.mxu0 %v3791
      %3816 = vmatprep.subr.bf16.mxu0 %v3788
      %3817 = vmatpush1.bf16.msra.mxu0 %v3787
      %3818 = vmatprep.subr.bf16.mxu0 %v3784
      %3819 = vmatpush1.bf16.msra.mxu0 %v3783
      %3820 = vmatprep.subr.bf16.mxu0 %v3780
      %3821 = vmatpush1.bf16.msra.mxu0 %v3779
      %3822 = vmatprep.subr.bf16.mxu0 %v3776
      %3823 = vmatpush1.bf16.msra.mxu0 %v3775
      %3824 = vmatprep.subr.bf16.mxu0 %v3772
      %3825 = vmatpush1.bf16.msra.mxu0 %v3771
      %3826 = vmatprep.subr.bf16.mxu0 0
      %3827 = vmatpush2.bf16.msra.mxu0 0
      %3828 = vmatprep.subr.bf16.mxu0 0
      %3829 = vmatpush2.bf16.msra.mxu0 0
      %3830 = vmatprep.subr.bf16.mxu0 0
      %3831 = vmatpush2.bf16.msra.mxu0 0
      %3832 = vmatprep.subr.bf16.mxu0 0
      %3833 = vmatpush2.bf16.msra.mxu0 0
      %3834 = vmatprep.subr.bf16.mxu0 0
      %3835 = vmatpush2.bf16.msra.mxu0 0
      %3836 = vmatprep.subr.bf16.mxu0 0
      %3837 = vmatpush2.bf16.msra.mxu0 0
      %3838 = vmatprep.subr.bf16.mxu0 0
      %3839 = vmatpush2.bf16.msra.mxu0 0
      %3840 = vmatprep.subr.bf16.mxu0 0
      %3841 = vmatpush2.bf16.msra.mxu0 0
      %3842 = vmatprep.mubr.bf16.mxu0 0
      %3843 = vmatmul.mubr.bf16.gmra.mxu0 %v3803
      %v3844 = vpop.f32.mrf.mxu0
      %v3845 = vadd.f32 %v3808, %v3844
      %v3846 = vpop.f32.mrf.mxu0
      %v3847 = vadd.f32 %v3808, %v3846
      %v3848 = vpop.f32.mrf.mxu0
      %v3849 = vpop.f32.mrf.mxu0
      %3850 = vdwg.mxu0
      %3851 = vmatprep.subr.bf16.mxu0 %v3802
      %3852 = vmatpush1.bf16.msra.mxu0 %v3801
      %3853 = vmatprep.subr.bf16.mxu0 %v3798
      %3854 = vmatpush1.bf16.msra.mxu0 %v3797
      %3855 = vmatprep.subr.bf16.mxu0 %v3794
      %3856 = vmatpush1.bf16.msra.mxu0 %v3793
      %3857 = vmatprep.subr.bf16.mxu0 %v3790
      %3858 = vmatpush1.bf16.msra.mxu0 %v3789
      %3859 = vmatprep.subr.bf16.mxu0 %v3786
      %3860 = vmatpush1.bf16.msra.mxu0 %v3785
      %3861 = vmatprep.subr.bf16.mxu0 %v3782
      %3862 = vmatpush1.bf16.msra.mxu0 %v3781
      %3863 = vmatprep.subr.bf16.mxu0 %v3778
      %3864 = vmatpush1.bf16.msra.mxu0 %v3777
      %3865 = vmatprep.subr.bf16.mxu0 %v3774
      %3866 = vmatpush1.bf16.msra.mxu0 %v3773
      %3867 = vmatprep.subr.bf16.mxu0 0
      %3868 = vmatpush2.bf16.msra.mxu0 0
      %3869 = vmatprep.subr.bf16.mxu0 0
      %3870 = vmatpush2.bf16.msra.mxu0 0
      %3871 = vmatprep.subr.bf16.mxu0 0
      %3872 = vmatpush2.bf16.msra.mxu0 0
      %3873 = vmatprep.subr.bf16.mxu0 0
      %3874 = vmatpush2.bf16.msra.mxu0 0
      %3875 = vmatprep.subr.bf16.mxu0 0
      %3876 = vmatpush2.bf16.msra.mxu0 0
      %3877 = vmatprep.subr.bf16.mxu0 0
      %3878 = vmatpush2.bf16.msra.mxu0 0
      %3879 = vmatprep.subr.bf16.mxu0 0
      %3880 = vmatpush2.bf16.msra.mxu0 0
      %3881 = vmatprep.subr.bf16.mxu0 0
      %3882 = vmatpush2.bf16.msra.mxu0 0
      %3883 = vmatprep.mubr.bf16.mxu0 0
      %3884 = vmatmul.mubr.bf16.gmra.mxu0 %v3803
      %v3885 = vpop.f32.mrf.mxu0
      %v3886 = vadd.f32 %v3808, %v3885
      %v3887 = vpop.f32.mrf.mxu0
      %v3888 = vadd.f32 %v3808, %v3887
      %v3889 = vpop.f32.mrf.mxu0
      %v3890 = vpop.f32.mrf.mxu0
      %3891 = vdwg.mxu0
      %v3896 = vcombine.low %v3845, %v3847
      %v3897 = vcombine.low %v3886, %v3888
      %v3900 = vmul.f32 %v310, %v3896
      %v3901 = vmul.f32 %v311, %v3897
      %v3902 = vadd.f32 %v310, %v3900
      %v3903 = vadd.f32 %v311, %v3901
      %3904 = vst [vmem:[%s307] sm:$0xff] %v3902
      %3905 = vst [vmem:[%s307 + $0x8] sm:$0xff] %v3903
      %s3906 = smul.u32 4, %s19
      %p3907 = scmp.lt.s32.totalorder %s3906, 15
      %s3908 = scalar_select %p3907, %s3906, 15
      %s3909 = smul.addr %s3908, 4
      %s3910 = scalar_lea.vmem %s8, %s3909
      // Predicated region
      $region53: #{iphi_forward.1} parent=51 // pred_check
        %p3911 = pneg %p210
      $region54: #{iphi_forward.1} parent=51 // pred_check_branch
        %3913 = sbr.rel (%p3911) target = $region56
      $region55: #{iphi_forward.1} parent=51 // pred_region
        %s3914 = smul.u32 4, %s19
      $region56: #{iphi_forward.1} parent=51 // pred_fallthru
        _
    $region52: #{iphi_forward.1} parent=5 // pred_fallthru
      _
    %p3915 = scmp.le.s32.totalorder 2, %s14
    // Predicated region
    $region57: #{iphi_forward.1} parent=5 // pred_check
      %p3916 = pneg %p3915
    $region58: #{iphi_forward.1} parent=5 // pred_check_branch
      %3918 = sbr.rel (%p3916) target = $region60
    $region59: #{iphi_forward.1} parent=5 // pred_region
      %s3919 = ssub.s32 %s14, 2
      // Predicated region
      $region61: #{iphi_forward.1} parent=59 // pred_check
        %p3920 = pneg %p216
      $region62: #{iphi_forward.1} parent=59 // pred_check_branch
        %3922 = sbr.rel (%p3920) target = $region64
      $region63: #{iphi_forward.1} parent=59 // pred_region
        %s3923 = smul.u32 4, %s20
        %p3924 = scmp.lt.s32.totalorder %s3923, 15
        %s3925 = scalar_select %p3924, %s3923, 15
        %s3926 = smul.addr %s3925, 4
        %s3927 = scalar_lea.vmem %s8, %s3926
      $region64: #{iphi_forward.1} parent=59 // pred_fallthru
        _
    $region60: #{iphi_forward.1} parent=5 // pred_fallthru
      _
  $region6: #{iphi_forward.1} parent=0 // loop_footer
    %s18 = sadd.s32 1, %s14
  $region7: #{iphi_forward.1} parent=0 // loop_footer_branch
    %13 = sbr.rel target = $region3
  $region8: #{iphi_forward.1} parent=0 // loop_exit
    _

</llo_original>
